<compile_context>
chip_gen: v7x
topology: tpu7x:2x2x1
jax: 0.10.0
libtpu: 0.0.40
codegen_flags: <defaults>
</compile_context>

<pallas_src>
import functools

import jax
import jax.numpy as jnp
import numpy as np
from jax import lax
from jax.experimental import pallas as pl
from jax.experimental.pallas import tpu as pltpu

EPS = 1e-5
LANE = 128


def _round_up(x, m):
    return (x + m - 1) // m * m


# ---------------------------------------------------------------------------
# Fused kernel: per image b
#   x_ref    : (1, HP*WP, Cin)  zero-padded image, rows flattened row-major
#   mask_ref : (HP*WP, 1)       1.0 on interior pixels, 0.0 on the pad ring
#   s1_ref   : (1, Cin)   b1_ref : (1, Cin)   folded BN1 scale / shift
#   w1_ref   : (Cin, Dp)                      1x1 conv weight * BN2 scale (padded)
#   b2_ref   : (1, Dp)                        BN2 shift (padded)
#   w2_ref   : (9, Dp, Gp)                    3x3 conv weights, tap-major (padded)
#   o_ref    : (1, H*WP, Gp)                  flat residual output (lane-dense)
#   a_scr    : (SCR_ROWS, Dp) VMEM f32        padded intermediate activations
# ---------------------------------------------------------------------------
def _bottleneck_kernel(x_ref, mask_ref, s1_ref, b1_ref, w1_ref, b2_ref,
                       w2_ref, o_ref, a_scr, *, wp):
    hpwp = x_ref.shape[1]          # (H+2)*(W+2)
    rows_out = o_ref.shape[1]      # H*(W+2)

    # -- Stage 1 (pointwise): BN1 -> ReLU -> 1x1 conv -> +shift2 -> ReLU ------
    x = x_ref[0]                                                 # (HP*WP, Cin)
    h = jnp.maximum(x * s1_ref[...] + b1_ref[...], 0.0)
    a = jnp.dot(h, w1_ref[...], preferred_element_type=jnp.float32)
    a = jnp.maximum(a + b2_ref[...], 0.0) * mask_ref[...]        # zero pad ring

    # Stage the padded activations in VMEM scratch (tail rows stay zero).
    a_scr[...] = jnp.zeros_like(a_scr)
    a_scr[pl.ds(0, hpwp), :] = a

    # -- Stage 2: 3x3 conv as 9 shifted matmuls, accumulated in the out block -
    for ky in range(3):
        for kx in range(3):
            tap = a_scr[pl.ds(ky * wp + kx, rows_out), :]        # (H*WP, Dp)
            contrib = jnp.dot(tap, w2_ref[ky * 3 + kx],
                              preferred_element_type=jnp.float32)
            if ky == 0 and kx == 0:
                o_ref[0] = contrib
            else:
                o_ref[0] += contrib


# ---------------------------------------------------------------------------
# Full BottleNeckBlock forward (Pallas)
# ---------------------------------------------------------------------------
def bottleneck_forward(x_nchw, params):
    N, Cin, H, W = x_nchw.shape
    D = params["w1"].shape[0]          # 4 * growth_rate (OIHW: (D, Cin, 1, 1))
    G = params["w2"].shape[0]          # growth_rate     (OIHW: (G, D, 3, 3))
    Dp = _round_up(D, LANE)
    Gp = _round_up(G, LANE)
    HP, WP = H + 2, W + 2
    HPWP = HP * WP
    ROWS_OUT = H * WP
    SCR_ROWS = _round_up(2 * WP + 2 + ROWS_OUT, 8)
    f32 = jnp.float32

    # BatchNorm (eval) fold: y = x * scale + shift
    def fold(gamma, beta, mean, var):
        scale = gamma / jnp.sqrt(var + EPS)
        return scale, beta - mean * scale

    s1, t1 = fold(params["bn1_gamma"], params["bn1_beta"],
                  params["bn1_mean"], params["bn1_var"])
    s2, t2 = fold(params["bn2_gamma"], params["bn2_beta"],
                  params["bn2_mean"], params["bn2_var"])

    # Weight prep (glue): fold BN2 scale into the 1x1 conv, pad channels to 128.
    w1_mat = jnp.transpose(params["w1"][:, :, 0, 0], (1, 0)) * s2[None, :]
    w1_mat = jnp.pad(w1_mat, ((0, 0), (0, Dp - D))).astype(f32)      # (Cin, Dp)
    b2_row = jnp.pad(t2, (0, Dp - D)).reshape(1, Dp).astype(f32)
    w2_mat = jnp.transpose(params["w2"], (2, 3, 1, 0)).reshape(9, D, G)
    w2_mat = jnp.pad(w2_mat, ((0, 0), (0, Dp - D), (0, Gp - G))).astype(f32)
    s1_row = s1.reshape(1, Cin).astype(f32)
    b1_row = t1.reshape(1, Cin).astype(f32)

    # Input prep (glue): NCHW -> NHWC, spatial zero-pad, flatten rows.
    x_nhwc = jnp.transpose(x_nchw, (0, 2, 3, 1)).astype(f32)
    x_pad = jnp.pad(x_nhwc, ((0, 0), (1, 1), (1, 1), (0, 0)))
    x_flat = x_pad.reshape(N, HPWP, Cin)

    # Interior mask: 1.0 for real pixels, 0.0 for the conv zero-pad ring.
    row_ok = (jnp.arange(HP) >= 1) & (jnp.arange(HP) <= H)
    col_ok = (jnp.arange(WP) >= 1) & (jnp.arange(WP) <= W)
    mask = (row_ok[:, None] & col_ok[None, :]).astype(f32).reshape(HPWP, 1)

    kernel = functools.partial(_bottleneck_kernel, wp=WP)

    flops = 2 * N * (HPWP * Cin * Dp + 9 * ROWS_OUT * Dp * Gp)
    bytes_accessed = 4 * (x_flat.size + N * ROWS_OUT * Gp + w2_mat.size
                          + w1_mat.size + 2 * Cin + 2 * Dp + HPWP)

    out_flat = pl.pallas_call(
        kernel,
        out_shape=jax.ShapeDtypeStruct((N, ROWS_OUT, Gp), f32),
        grid_spec=pltpu.PrefetchScalarGridSpec(
            num_scalar_prefetch=0,
            grid=(N,),
            in_specs=[
                pl.BlockSpec((1, HPWP, Cin), lambda b: (b, 0, 0)),
                pl.BlockSpec((HPWP, 1), lambda b: (0, 0)),
                pl.BlockSpec((1, Cin), lambda b: (0, 0)),
                pl.BlockSpec((1, Cin), lambda b: (0, 0)),
                pl.BlockSpec((Cin, Dp), lambda b: (0, 0)),
                pl.BlockSpec((1, Dp), lambda b: (0, 0)),
                pl.BlockSpec((9, Dp, Gp), lambda b: (0, 0, 0)),
            ],
            out_specs=pl.BlockSpec((1, ROWS_OUT, Gp), lambda b: (b, 0, 0)),
            scratch_shapes=[pltpu.VMEM((SCR_ROWS, Dp), f32)],
        ),
        compiler_params=pltpu.CompilerParams(
            dimension_semantics=("parallel",),
            vmem_limit_bytes=32 * 1024 * 1024,
        ),
        cost_estimate=pl.CostEstimate(flops=flops, transcendentals=0,
                                      bytes_accessed=bytes_accessed),
    )(x_flat, mask, s1_row, b1_row, w1_mat, b2_row, w2_mat)

    # Output glue: drop W-stride / channel padding, back to NCHW, dense concat.
    res = out_flat.reshape(N, H, WP, Gp)[:, :, :W, :G]
    res_nchw = jnp.transpose(res, (0, 3, 1, 2))
    # TODO(synk): a channels-last DenseNet would make this transpose + concat a
    #             nearly-free lane-axis concat; NCHW is kept to match the
    #             original module's API.
    return jnp.concatenate([x_nchw.astype(f32), res_nchw], axis=1)


# ---------------------------------------------------------------------------
# Pure-JAX reference (NCHW, lax.conv) for validation
# ---------------------------------------------------------------------------
def reference_forward(x, p):
    def bn(h, g, b, m, v):
        sc = g / jnp.sqrt(v + EPS)
        sh = b - m * sc
        return h * sc[None, :, None, None] + sh[None, :, None, None]

    h = jnp.maximum(bn(x, p["bn1_gamma"], p["bn1_beta"], p["bn1_mean"],
                       p["bn1_var"]), 0.0)
    h = lax.conv_general_dilated(h, p["w1"], (1, 1), "VALID",
                                 dimension_numbers=("NCHW", "OIHW", "NCHW"))
    h = jnp.maximum(bn(h, p["bn2_gamma"], p["bn2_beta"], p["bn2_mean"],
                       p["bn2_var"]), 0.0)
    h = lax.conv_general_dilated(h, p["w2"], (1, 1), ((1, 1), (1, 1)),
                                 dimension_numbers=("NCHW", "OIHW", "NCHW"))
    return jnp.concatenate([x, h], axis=1)


def make_params(key, in_channels, growth_rate):
    D = growth_rate * 4
    ks = jax.random.split(key, 10)
    return {
        # ConvBlock 1: BN(in_channels) + Conv2d(in_channels, D, 1, 1, 0)
        "bn1_gamma": 1.0 + 0.1 * jax.random.normal(ks[0], (in_channels,)),
        "bn1_beta": 0.1 * jax.random.normal(ks[1], (in_channels,)),
        "bn1_mean": 0.1 * jax.random.normal(ks[2], (in_channels,)),
        "bn1_var": jnp.abs(jax.random.normal(ks[3], (in_channels,))) + 0.5,
        "w1": 0.2 * jax.random.normal(ks[4], (D, in_channels, 1, 1)),
        # ConvBlock 2: BN(D) + Conv2d(D, growth_rate, 3, 1, 1)
        "bn2_gamma": 1.0 + 0.1 * jax.random.normal(ks[5], (D,)),
        "bn2_beta": 0.1 * jax.random.normal(ks[6], (D,)),
        "bn2_mean": 0.1 * jax.random.normal(ks[7], (D,)),
        "bn2_var": jnp.abs(jax.random.normal(ks[8], (D,))) + 0.5,
        "w2": 0.2 * jax.random.normal(ks[9], (growth_rate, D, 3, 3)),
    }


if __name__ == "__main__":
    key = jax.random.PRNGKey(0)
    k_x, k_p = jax.random.split(key)

    N, Cin, H, W = 2, 4, 16, 16
    growth_rate = 4

    x = jax.random.normal(k_x, (N, Cin, H, W), dtype=jnp.float32)
    params = jax.tree_util.tree_map(lambda a: a.astype(jnp.float32),
                                    make_params(k_p, Cin, growth_rate))

    out = jax.block_until_ready(bottleneck_forward(x, params))
    ref = jax.block_until_ready(reference_forward(x, params))

    assert out.shape == (N, Cin + growth_rate, H, W), out.shape
    np.testing.assert_allclose(np.asarray(out), np.asarray(ref),
                               rtol=1e-4, atol=1e-4)
    print("KERNEL_OK")
</pallas_src>

<mosaic_0001>
module attributes {stable_mosaic.version = 11 : i64} {
  func.func @_bottleneck_kernel(%arg0: i32, %arg1: memref<1x324x4xf32, #tpu.memory_space<vmem>>, %arg2: memref<324x1xf32, #tpu.memory_space<vmem>>, %arg3: memref<1x4xf32, #tpu.memory_space<vmem>>, %arg4: memref<1x4xf32, #tpu.memory_space<vmem>>, %arg5: memref<4x128xf32, #tpu.memory_space<vmem>>, %arg6: memref<1x128xf32, #tpu.memory_space<vmem>>, %arg7: memref<9x128x128xf32, #tpu.memory_space<vmem>>, %arg8: memref<1x288x128xf32, #tpu.memory_space<vmem>>, %arg9: memref<328x128xf32, #tpu.memory_space<vmem>>) attributes {dimension_semantics = [#tpu.dimension_semantics<parallel>], iteration_bounds = array<i64: 2>, scalar_prefetch = 0 : i64, scratch_operands = 1 : i64, tpu.core_type = #tpu.core_type<tc>, window_params = [{transform_indices = @transform_0, window_bounds = array<i64: 1, 324, 4>}, {pipeline_mode = #tpu.pipeline_mode<synchronous>, transform_indices = @transform_1, window_bounds = array<i64: 324, 1>}, {pipeline_mode = #tpu.pipeline_mode<synchronous>, transform_indices = @transform_2, window_bounds = array<i64: 1, 4>}, {pipeline_mode = #tpu.pipeline_mode<synchronous>, transform_indices = @transform_3, window_bounds = array<i64: 1, 4>}, {pipeline_mode = #tpu.pipeline_mode<synchronous>, transform_indices = @transform_4, window_bounds = array<i64: 4, 128>}, {pipeline_mode = #tpu.pipeline_mode<synchronous>, transform_indices = @transform_5, window_bounds = array<i64: 1, 128>}, {pipeline_mode = #tpu.pipeline_mode<synchronous>, transform_indices = @transform_6, window_bounds = array<i64: 9, 128, 128>}, {transform_indices = @transform_7, window_bounds = array<i64: 1, 288, 128>}]} {
    %c0 = arith.constant 0 : index
    %c0_0 = arith.constant 0 : index
    %c0_1 = arith.constant 0 : index
    %0 = vector.load %arg1[%c0, %c0_0, %c0_1] : memref<1x324x4xf32, #tpu.memory_space<vmem>>, vector<1x324x4xf32>
    %1 = vector.shape_cast %0 : vector<1x324x4xf32> to vector<324x4xf32>
    %c0_2 = arith.constant 0 : index
    %c0_3 = arith.constant 0 : index
    %2 = vector.load %arg3[%c0_2, %c0_3] : memref<1x4xf32, #tpu.memory_space<vmem>>, vector<1x4xf32>
    %3 = vector.broadcast %2 : vector<1x4xf32> to vector<324x4xf32>
    %4 = arith.mulf %1, %3 : vector<324x4xf32>
    %c0_4 = arith.constant 0 : index
    %c0_5 = arith.constant 0 : index
    %5 = vector.load %arg4[%c0_4, %c0_5] : memref<1x4xf32, #tpu.memory_space<vmem>>, vector<1x4xf32>
    %6 = vector.broadcast %5 : vector<1x4xf32> to vector<324x4xf32>
    %7 = arith.addf %4, %6 : vector<324x4xf32>
    %cst = arith.constant 0.000000e+00 : f32
    %8 = vector.broadcast %cst : f32 to vector<324x4xf32>
    %9 = arith.maximumf %7, %8 : vector<324x4xf32>
    %c0_6 = arith.constant 0 : index
    %c0_7 = arith.constant 0 : index
    %10 = vector.load %arg5[%c0_6, %c0_7] : memref<4x128xf32, #tpu.memory_space<vmem>>, vector<4x128xf32>
    %cst_8 = arith.constant dense<0.000000e+00> : vector<324x128xf32>
    %11 = tpu.matmul %9, %10, %cst_8 {dimension_numbers = #tpu.dot_dimension_numbers<[1], [0], [0], [1], [0, 0, 1, 1], [], []>} : vector<324x4xf32>, vector<4x128xf32>, vector<324x128xf32> -> vector<324x128xf32>
    %c0_9 = arith.constant 0 : index
    %c0_10 = arith.constant 0 : index
    %12 = vector.load %arg6[%c0_9, %c0_10] : memref<1x128xf32, #tpu.memory_space<vmem>>, vector<1x128xf32>
    %13 = vector.broadcast %12 : vector<1x128xf32> to vector<324x128xf32>
    %14 = arith.addf %11, %13 : vector<324x128xf32>
    %cst_11 = arith.constant 0.000000e+00 : f32
    %15 = vector.broadcast %cst_11 : f32 to vector<324x128xf32>
    %16 = arith.maximumf %14, %15 : vector<324x128xf32>
    %c0_12 = arith.constant 0 : index
    %c0_13 = arith.constant 0 : index
    %17 = vector.load %arg2[%c0_12, %c0_13] : memref<324x1xf32, #tpu.memory_space<vmem>>, vector<324x1xf32>
    %18 = vector.broadcast %17 : vector<324x1xf32> to vector<324x128xf32>
    %19 = arith.mulf %16, %18 : vector<324x128xf32>
    %cst_14 = arith.constant 0.000000e+00 : f32
    %20 = vector.broadcast %cst_14 : f32 to vector<328x128xf32>
    %c0_15 = arith.constant 0 : index
    %c0_16 = arith.constant 0 : index
    %21 = vector.load %arg9[%c0_15, %c0_16] : memref<328x128xf32, #tpu.memory_space<vmem>>, vector<328x128xf32>
    tpu.vector_store %arg9[%c0_15, %c0_16], %20 {strides = array<i32>} : memref<328x128xf32, #tpu.memory_space<vmem>>, vector<328x128xf32>,
    %c0_17 = arith.constant 0 : index
    %c0_18 = arith.constant 0 : index
    %22 = vector.load %arg9[%c0_17, %c0_18] : memref<328x128xf32, #tpu.memory_space<vmem>>, vector<324x128xf32>
    tpu.vector_store %arg9[%c0_17, %c0_18], %19 {strides = array<i32>} : memref<328x128xf32, #tpu.memory_space<vmem>>, vector<324x128xf32>,
    %c0_19 = arith.constant 0 : index
    %c0_20 = arith.constant 0 : index
    %23 = vector.load %arg9[%c0_19, %c0_20] : memref<328x128xf32, #tpu.memory_space<vmem>>, vector<288x128xf32>
    %c0_21 = arith.constant 0 : index
    %c0_22 = arith.constant 0 : index
    %c0_23 = arith.constant 0 : index
    %24 = vector.load %arg7[%c0_21, %c0_22, %c0_23] : memref<9x128x128xf32, #tpu.memory_space<vmem>>, vector<1x128x128xf32>
    %25 = vector.shape_cast %24 : vector<1x128x128xf32> to vector<128x128xf32>
    %cst_24 = arith.constant dense<0.000000e+00> : vector<288x128xf32>
    %26 = tpu.matmul %23, %25, %cst_24 {dimension_numbers = #tpu.dot_dimension_numbers<[1], [0], [0], [1], [0, 0, 1, 1], [], []>} : vector<288x128xf32>, vector<128x128xf32>, vector<288x128xf32> -> vector<288x128xf32>
    %c0_25 = arith.constant 0 : index
    %c0_26 = arith.constant 0 : index
    %c0_27 = arith.constant 0 : index
    %27 = vector.load %arg8[%c0_25, %c0_26, %c0_27] : memref<1x288x128xf32, #tpu.memory_space<vmem>>, vector<1x288x128xf32>
    %28 = vector.shape_cast %27 : vector<1x288x128xf32> to vector<288x128xf32>
    %29 = vector.shape_cast %26 : vector<288x128xf32> to vector<1x288x128xf32>
    tpu.vector_store %arg8[%c0_25, %c0_26, %c0_27], %29 {strides = array<i32>} : memref<1x288x128xf32, #tpu.memory_space<vmem>>, vector<1x288x128xf32>,
    %c1 = arith.constant 1 : index
    %c0_28 = arith.constant 0 : index
    %30 = vector.load %arg9[%c1, %c0_28] : memref<328x128xf32, #tpu.memory_space<vmem>>, vector<288x128xf32>
    %c1_29 = arith.constant 1 : index
    %c0_30 = arith.constant 0 : index
    %c0_31 = arith.constant 0 : index
    %31 = vector.load %arg7[%c1_29, %c0_30, %c0_31] : memref<9x128x128xf32, #tpu.memory_space<vmem>>, vector<1x128x128xf32>
    %32 = vector.shape_cast %31 : vector<1x128x128xf32> to vector<128x128xf32>
    %cst_32 = arith.constant dense<0.000000e+00> : vector<288x128xf32>
    %33 = tpu.matmul %30, %32, %cst_32 {dimension_numbers = #tpu.dot_dimension_numbers<[1], [0], [0], [1], [0, 0, 1, 1], [], []>} : vector<288x128xf32>, vector<128x128xf32>, vector<288x128xf32> -> vector<288x128xf32>
    %c0_33 = arith.constant 0 : index
    %c0_34 = arith.constant 0 : index
    %c0_35 = arith.constant 0 : index
    %34 = vector.load %arg8[%c0_33, %c0_34, %c0_35] : memref<1x288x128xf32, #tpu.memory_space<vmem>>, vector<1x288x128xf32>
    %35 = vector.shape_cast %34 : vector<1x288x128xf32> to vector<288x128xf32>
    %36 = arith.addf %35, %33 : vector<288x128xf32>
    %c0_36 = arith.constant 0 : index
    %c0_37 = arith.constant 0 : index
    %c0_38 = arith.constant 0 : index
    %37 = vector.load %arg8[%c0_36, %c0_37, %c0_38] : memref<1x288x128xf32, #tpu.memory_space<vmem>>, vector<1x288x128xf32>
    %38 = vector.shape_cast %37 : vector<1x288x128xf32> to vector<288x128xf32>
    %39 = vector.shape_cast %36 : vector<288x128xf32> to vector<1x288x128xf32>
    tpu.vector_store %arg8[%c0_36, %c0_37, %c0_38], %39 {strides = array<i32>} : memref<1x288x128xf32, #tpu.memory_space<vmem>>, vector<1x288x128xf32>,
    %c2 = arith.constant 2 : index
    %c0_39 = arith.constant 0 : index
    %40 = vector.load %arg9[%c2, %c0_39] : memref<328x128xf32, #tpu.memory_space<vmem>>, vector<288x128xf32>
    %c2_40 = arith.constant 2 : index
    %c0_41 = arith.constant 0 : index
    %c0_42 = arith.constant 0 : index
    %41 = vector.load %arg7[%c2_40, %c0_41, %c0_42] : memref<9x128x128xf32, #tpu.memory_space<vmem>>, vector<1x128x128xf32>
    %42 = vector.shape_cast %41 : vector<1x128x128xf32> to vector<128x128xf32>
    %cst_43 = arith.constant dense<0.000000e+00> : vector<288x128xf32>
    %43 = tpu.matmul %40, %42, %cst_43 {dimension_numbers = #tpu.dot_dimension_numbers<[1], [0], [0], [1], [0, 0, 1, 1], [], []>} : vector<288x128xf32>, vector<128x128xf32>, vector<288x128xf32> -> vector<288x128xf32>
    %c0_44 = arith.constant 0 : index
    %c0_45 = arith.constant 0 : index
    %c0_46 = arith.constant 0 : index
    %44 = vector.load %arg8[%c0_44, %c0_45, %c0_46] : memref<1x288x128xf32, #tpu.memory_space<vmem>>, vector<1x288x128xf32>
    %45 = vector.shape_cast %44 : vector<1x288x128xf32> to vector<288x128xf32>
    %46 = arith.addf %45, %43 : vector<288x128xf32>
    %c0_47 = arith.constant 0 : index
    %c0_48 = arith.constant 0 : index
    %c0_49 = arith.constant 0 : index
    %47 = vector.load %arg8[%c0_47, %c0_48, %c0_49] : memref<1x288x128xf32, #tpu.memory_space<vmem>>, vector<1x288x128xf32>
    %48 = vector.shape_cast %47 : vector<1x288x128xf32> to vector<288x128xf32>
    %49 = vector.shape_cast %46 : vector<288x128xf32> to vector<1x288x128xf32>
    tpu.vector_store %arg8[%c0_47, %c0_48, %c0_49], %49 {strides = array<i32>} : memref<1x288x128xf32, #tpu.memory_space<vmem>>, vector<1x288x128xf32>,
    %c18 = arith.constant 18 : index
    %c0_50 = arith.constant 0 : index
    %50 = vector.load %arg9[%c18, %c0_50] : memref<328x128xf32, #tpu.memory_space<vmem>>, vector<288x128xf32>
    %c3 = arith.constant 3 : index
    %c0_51 = arith.constant 0 : index
    %c0_52 = arith.constant 0 : index
    %51 = vector.load %arg7[%c3, %c0_51, %c0_52] : memref<9x128x128xf32, #tpu.memory_space<vmem>>, vector<1x128x128xf32>
    %52 = vector.shape_cast %51 : vector<1x128x128xf32> to vector<128x128xf32>
    %cst_53 = arith.constant dense<0.000000e+00> : vector<288x128xf32>
    %53 = tpu.matmul %50, %52, %cst_53 {dimension_numbers = #tpu.dot_dimension_numbers<[1], [0], [0], [1], [0, 0, 1, 1], [], []>} : vector<288x128xf32>, vector<128x128xf32>, vector<288x128xf32> -> vector<288x128xf32>
    %c0_54 = arith.constant 0 : index
    %c0_55 = arith.constant 0 : index
    %c0_56 = arith.constant 0 : index
    %54 = vector.load %arg8[%c0_54, %c0_55, %c0_56] : memref<1x288x128xf32, #tpu.memory_space<vmem>>, vector<1x288x128xf32>
    %55 = vector.shape_cast %54 : vector<1x288x128xf32> to vector<288x128xf32>
    %56 = arith.addf %55, %53 : vector<288x128xf32>
    %c0_57 = arith.constant 0 : index
    %c0_58 = arith.constant 0 : index
    %c0_59 = arith.constant 0 : index
    %57 = vector.load %arg8[%c0_57, %c0_58, %c0_59] : memref<1x288x128xf32, #tpu.memory_space<vmem>>, vector<1x288x128xf32>
    %58 = vector.shape_cast %57 : vector<1x288x128xf32> to vector<288x128xf32>
    %59 = vector.shape_cast %56 : vector<288x128xf32> to vector<1x288x128xf32>
    tpu.vector_store %arg8[%c0_57, %c0_58, %c0_59], %59 {strides = array<i32>} : memref<1x288x128xf32, #tpu.memory_space<vmem>>, vector<1x288x128xf32>,
    %c19 = arith.constant 19 : index
    %c0_60 = arith.constant 0 : index
    %60 = vector.load %arg9[%c19, %c0_60] : memref<328x128xf32, #tpu.memory_space<vmem>>, vector<288x128xf32>
    %c4 = arith.constant 4 : index
    %c0_61 = arith.constant 0 : index
    %c0_62 = arith.constant 0 : index
    %61 = vector.load %arg7[%c4, %c0_61, %c0_62] : memref<9x128x128xf32, #tpu.memory_space<vmem>>, vector<1x128x128xf32>
    %62 = vector.shape_cast %61 : vector<1x128x128xf32> to vector<128x128xf32>
    %cst_63 = arith.constant dense<0.000000e+00> : vector<288x128xf32>
    %63 = tpu.matmul %60, %62, %cst_63 {dimension_numbers = #tpu.dot_dimension_numbers<[1], [0], [0], [1], [0, 0, 1, 1], [], []>} : vector<288x128xf32>, vector<128x128xf32>, vector<288x128xf32> -> vector<288x128xf32>
    %c0_64 = arith.constant 0 : index
    %c0_65 = arith.constant 0 : index
    %c0_66 = arith.constant 0 : index
    %64 = vector.load %arg8[%c0_64, %c0_65, %c0_66] : memref<1x288x128xf32, #tpu.memory_space<vmem>>, vector<1x288x128xf32>
    %65 = vector.shape_cast %64 : vector<1x288x128xf32> to vector<288x128xf32>
    %66 = arith.addf %65, %63 : vector<288x128xf32>
    %c0_67 = arith.constant 0 : index
    %c0_68 = arith.constant 0 : index
    %c0_69 = arith.constant 0 : index
    %67 = vector.load %arg8[%c0_67, %c0_68, %c0_69] : memref<1x288x128xf32, #tpu.memory_space<vmem>>, vector<1x288x128xf32>
    %68 = vector.shape_cast %67 : vector<1x288x128xf32> to vector<288x128xf32>
    %69 = vector.shape_cast %66 : vector<288x128xf32> to vector<1x288x128xf32>
    tpu.vector_store %arg8[%c0_67, %c0_68, %c0_69], %69 {strides = array<i32>} : memref<1x288x128xf32, #tpu.memory_space<vmem>>, vector<1x288x128xf32>,
    %c20 = arith.constant 20 : index
    %c0_70 = arith.constant 0 : index
    %70 = vector.load %arg9[%c20, %c0_70] : memref<328x128xf32, #tpu.memory_space<vmem>>, vector<288x128xf32>
    %c5 = arith.constant 5 : index
    %c0_71 = arith.constant 0 : index
    %c0_72 = arith.constant 0 : index
    %71 = vector.load %arg7[%c5, %c0_71, %c0_72] : memref<9x128x128xf32, #tpu.memory_space<vmem>>, vector<1x128x128xf32>
    %72 = vector.shape_cast %71 : vector<1x128x128xf32> to vector<128x128xf32>
    %cst_73 = arith.constant dense<0.000000e+00> : vector<288x128xf32>
    %73 = tpu.matmul %70, %72, %cst_73 {dimension_numbers = #tpu.dot_dimension_numbers<[1], [0], [0], [1], [0, 0, 1, 1], [], []>} : vector<288x128xf32>, vector<128x128xf32>, vector<288x128xf32> -> vector<288x128xf32>
    %c0_74 = arith.constant 0 : index
    %c0_75 = arith.constant 0 : index
    %c0_76 = arith.constant 0 : index
    %74 = vector.load %arg8[%c0_74, %c0_75, %c0_76] : memref<1x288x128xf32, #tpu.memory_space<vmem>>, vector<1x288x128xf32>
    %75 = vector.shape_cast %74 : vector<1x288x128xf32> to vector<288x128xf32>
    %76 = arith.addf %75, %73 : vector<288x128xf32>
    %c0_77 = arith.constant 0 : index
    %c0_78 = arith.constant 0 : index
    %c0_79 = arith.constant 0 : index
    %77 = vector.load %arg8[%c0_77, %c0_78, %c0_79] : memref<1x288x128xf32, #tpu.memory_space<vmem>>, vector<1x288x128xf32>
    %78 = vector.shape_cast %77 : vector<1x288x128xf32> to vector<288x128xf32>
    %79 = vector.shape_cast %76 : vector<288x128xf32> to vector<1x288x128xf32>
    tpu.vector_store %arg8[%c0_77, %c0_78, %c0_79], %79 {strides = array<i32>} : memref<1x288x128xf32, #tpu.memory_space<vmem>>, vector<1x288x128xf32>,
    %c36 = arith.constant 36 : index
    %c0_80 = arith.constant 0 : index
    %80 = vector.load %arg9[%c36, %c0_80] : memref<328x128xf32, #tpu.memory_space<vmem>>, vector<288x128xf32>
    %c6 = arith.constant 6 : index
    %c0_81 = arith.constant 0 : index
    %c0_82 = arith.constant 0 : index
    %81 = vector.load %arg7[%c6, %c0_81, %c0_82] : memref<9x128x128xf32, #tpu.memory_space<vmem>>, vector<1x128x128xf32>
    %82 = vector.shape_cast %81 : vector<1x128x128xf32> to vector<128x128xf32>
    %cst_83 = arith.constant dense<0.000000e+00> : vector<288x128xf32>
    %83 = tpu.matmul %80, %82, %cst_83 {dimension_numbers = #tpu.dot_dimension_numbers<[1], [0], [0], [1], [0, 0, 1, 1], [], []>} : vector<288x128xf32>, vector<128x128xf32>, vector<288x128xf32> -> vector<288x128xf32>
    %c0_84 = arith.constant 0 : index
    %c0_85 = arith.constant 0 : index
    %c0_86 = arith.constant 0 : index
    %84 = vector.load %arg8[%c0_84, %c0_85, %c0_86] : memref<1x288x128xf32, #tpu.memory_space<vmem>>, vector<1x288x128xf32>
    %85 = vector.shape_cast %84 : vector<1x288x128xf32> to vector<288x128xf32>
    %86 = arith.addf %85, %83 : vector<288x128xf32>
    %c0_87 = arith.constant 0 : index
    %c0_88 = arith.constant 0 : index
    %c0_89 = arith.constant 0 : index
    %87 = vector.load %arg8[%c0_87, %c0_88, %c0_89] : memref<1x288x128xf32, #tpu.memory_space<vmem>>, vector<1x288x128xf32>
    %88 = vector.shape_cast %87 : vector<1x288x128xf32> to vector<288x128xf32>
    %89 = vector.shape_cast %86 : vector<288x128xf32> to vector<1x288x128xf32>
    tpu.vector_store %arg8[%c0_87, %c0_88, %c0_89], %89 {strides = array<i32>} : memref<1x288x128xf32, #tpu.memory_space<vmem>>, vector<1x288x128xf32>,
    %c37 = arith.constant 37 : index
    %c0_90 = arith.constant 0 : index
    %90 = vector.load %arg9[%c37, %c0_90] : memref<328x128xf32, #tpu.memory_space<vmem>>, vector<288x128xf32>
    %c7 = arith.constant 7 : index
    %c0_91 = arith.constant 0 : index
    %c0_92 = arith.constant 0 : index
    %91 = vector.load %arg7[%c7, %c0_91, %c0_92] : memref<9x128x128xf32, #tpu.memory_space<vmem>>, vector<1x128x128xf32>
    %92 = vector.shape_cast %91 : vector<1x128x128xf32> to vector<128x128xf32>
    %cst_93 = arith.constant dense<0.000000e+00> : vector<288x128xf32>
    %93 = tpu.matmul %90, %92, %cst_93 {dimension_numbers = #tpu.dot_dimension_numbers<[1], [0], [0], [1], [0, 0, 1, 1], [], []>} : vector<288x128xf32>, vector<128x128xf32>, vector<288x128xf32> -> vector<288x128xf32>
    %c0_94 = arith.constant 0 : index
    %c0_95 = arith.constant 0 : index
    %c0_96 = arith.constant 0 : index
    %94 = vector.load %arg8[%c0_94, %c0_95, %c0_96] : memref<1x288x128xf32, #tpu.memory_space<vmem>>, vector<1x288x128xf32>
    %95 = vector.shape_cast %94 : vector<1x288x128xf32> to vector<288x128xf32>
    %96 = arith.addf %95, %93 : vector<288x128xf32>
    %c0_97 = arith.constant 0 : index
    %c0_98 = arith.constant 0 : index
    %c0_99 = arith.constant 0 : index
    %97 = vector.load %arg8[%c0_97, %c0_98, %c0_99] : memref<1x288x128xf32, #tpu.memory_space<vmem>>, vector<1x288x128xf32>
    %98 = vector.shape_cast %97 : vector<1x288x128xf32> to vector<288x128xf32>
    %99 = vector.shape_cast %96 : vector<288x128xf32> to vector<1x288x128xf32>
    tpu.vector_store %arg8[%c0_97, %c0_98, %c0_99], %99 {strides = array<i32>} : memref<1x288x128xf32, #tpu.memory_space<vmem>>, vector<1x288x128xf32>,
    %c38 = arith.constant 38 : index
    %c0_100 = arith.constant 0 : index
    %100 = vector.load %arg9[%c38, %c0_100] : memref<328x128xf32, #tpu.memory_space<vmem>>, vector<288x128xf32>
    %c8 = arith.constant 8 : index
    %c0_101 = arith.constant 0 : index
    %c0_102 = arith.constant 0 : index
    %101 = vector.load %arg7[%c8, %c0_101, %c0_102] : memref<9x128x128xf32, #tpu.memory_space<vmem>>, vector<1x128x128xf32>
    %102 = vector.shape_cast %101 : vector<1x128x128xf32> to vector<128x128xf32>
    %cst_103 = arith.constant dense<0.000000e+00> : vector<288x128xf32>
    %103 = tpu.matmul %100, %102, %cst_103 {dimension_numbers = #tpu.dot_dimension_numbers<[1], [0], [0], [1], [0, 0, 1, 1], [], []>} : vector<288x128xf32>, vector<128x128xf32>, vector<288x128xf32> -> vector<288x128xf32>
    %c0_104 = arith.constant 0 : index
    %c0_105 = arith.constant 0 : index
    %c0_106 = arith.constant 0 : index
    %104 = vector.load %arg8[%c0_104, %c0_105, %c0_106] : memref<1x288x128xf32, #tpu.memory_space<vmem>>, vector<1x288x128xf32>
    %105 = vector.shape_cast %104 : vector<1x288x128xf32> to vector<288x128xf32>
    %106 = arith.addf %105, %103 : vector<288x128xf32>
    %c0_107 = arith.constant 0 : index
    %c0_108 = arith.constant 0 : index
    %c0_109 = arith.constant 0 : index
    %107 = vector.load %arg8[%c0_107, %c0_108, %c0_109] : memref<1x288x128xf32, #tpu.memory_space<vmem>>, vector<1x288x128xf32>
    %108 = vector.shape_cast %107 : vector<1x288x128xf32> to vector<288x128xf32>
    %109 = vector.shape_cast %106 : vector<288x128xf32> to vector<1x288x128xf32>
    tpu.vector_store %arg8[%c0_107, %c0_108, %c0_109], %109 {strides = array<i32>} : memref<1x288x128xf32, #tpu.memory_space<vmem>>, vector<1x288x128xf32>,
    return
  }
  func.func @transform_0(%arg0: i32) -> (i32, i32, i32) {
    %c0_i32 = arith.constant 0 : i32
    %c0_i32_0 = arith.constant 0 : i32
    %c0_i32_1 = arith.constant 0 : i32
    return %arg0, %c0_i32, %c0_i32_0 : i32, i32, i32
  }
  func.func @transform_1(%arg0: i32) -> (i32, i32) {
    %c0_i32 = arith.constant 0 : i32
    %c0_i32_0 = arith.constant 0 : i32
    %c0_i32_1 = arith.constant 0 : i32
    return %c0_i32, %c0_i32_0 : i32, i32
  }
  func.func @transform_2(%arg0: i32) -> (i32, i32) {
    %c0_i32 = arith.constant 0 : i32
    %c0_i32_0 = arith.constant 0 : i32
    %c0_i32_1 = arith.constant 0 : i32
    return %c0_i32, %c0_i32_0 : i32, i32
  }
  func.func @transform_3(%arg0: i32) -> (i32, i32) {
    %c0_i32 = arith.constant 0 : i32
    %c0_i32_0 = arith.constant 0 : i32
    %c0_i32_1 = arith.constant 0 : i32
    return %c0_i32, %c0_i32_0 : i32, i32
  }
  func.func @transform_4(%arg0: i32) -> (i32, i32) {
    %c0_i32 = arith.constant 0 : i32
    %c0_i32_0 = arith.constant 0 : i32
    %c0_i32_1 = arith.constant 0 : i32
    return %c0_i32, %c0_i32_0 : i32, i32
  }
  func.func @transform_5(%arg0: i32) -> (i32, i32) {
    %c0_i32 = arith.constant 0 : i32
    %c0_i32_0 = arith.constant 0 : i32
    %c0_i32_1 = arith.constant 0 : i32
    return %c0_i32, %c0_i32_0 : i32, i32
  }
  func.func @transform_6(%arg0: i32) -> (i32, i32, i32) {
    %c0_i32 = arith.constant 0 : i32
    %c0_i32_0 = arith.constant 0 : i32
    %c0_i32_1 = arith.constant 0 : i32
    %c0_i32_2 = arith.constant 0 : i32
    return %c0_i32, %c0_i32_0, %c0_i32_1 : i32, i32, i32
  }
  func.func @transform_7(%arg0: i32) -> (i32, i32, i32) {
    %c0_i32 = arith.constant 0 : i32
    %c0_i32_0 = arith.constant 0 : i32
    %c0_i32_1 = arith.constant 0 : i32
    return %arg0, %c0_i32, %c0_i32_0 : i32, i32, i32
  }
}

</mosaic_0001>

<llo_original>
// kernel: tpu_custom_call.1
$region0: #{tpu_custom_call.1}
  #allocation0 [shape = 'u32[]', space=smem, size = 0x4, offset = 0x4, fixed_abs, tag = 'smem constant byte address 0x4 - core index']
  #allocation1 [shape = 'u32[144,128]{1,0:T(1,128)}', space=vmem, size = 0x12000, scoped, tag = 'internal scratch']
  #allocation2 [shape = 'f32[328,128]{1,0:T(8,128)}', space=vmem, size = 0x29000, scoped, tag = 'scratch operand']
  %s0 = inlined_call_operand.vmem [shape: f32[2,324,4], index: 0, kind: input, shape index: {}]
  %s1 = inlined_call_operand.vmem [shape: f32[324,1], index: 1, kind: input, shape index: {}]
  %s2 = inlined_call_operand.vmem [shape: f32[1,4], index: 2, kind: input, shape index: {}]
  %s3 = inlined_call_operand.vmem [shape: f32[1,4], index: 3, kind: input, shape index: {}]
  %s4 = inlined_call_operand.vmem [shape: f32[4,128], index: 4, kind: input, shape index: {}]
  %s5 = inlined_call_operand.vmem [shape: f32[1,128], index: 5, kind: input, shape index: {}]
  %s6 = inlined_call_operand.hbm [shape: f32[9,128,128], index: 6, kind: input, shape index: {}]
  %s7 = inlined_call_operand.hbm [shape: f32[2,288,128], index: 7, kind: output, shape index: {}]
  %s8 = sld [smem:[#allocation0]]
  $region65: #{tpu_custom_call.1} parent=0
    _
  %s10 = ssub.s32 1, %s8
  %s11 = scalar_select 0, %s10, %s8
  $region1: #{tpu_custom_call.1} parent=0
    #allocation3 [shape = 'u8[589824]{0}', space=vmem, size = 0x90000, scoped, tag = 'input window, operand 6, single buffered']
    #allocation4 [shape = 's32[2]{0}', space=sflag, size = 0x8, scoped, tag = 'scoped memory for tpu_custom_call.1']
    #allocation5 [shape = 's32[2]{0}', space=sflag, size = 0x8, scoped, tag = 'scoped memory for tpu_custom_call.1']
    #allocation6 [shape = 'u8[294912]{0}', space=vmem, size = 0x48000, scoped, tag = 'output window, operand 0']
    %12 = vsyncpa [#allocation4], 0
    %13 = vsyncpa [#allocation5], 0
    %s14 = scalar_lea.sflag [#allocation5], 1
    %15 = vsyncpa %s14, 0
    loop: start=0, step=1, limit=4
    $region2: #{tpu_custom_call.1} parent=1 // loop_pre_header
      _
    $region3: #{tpu_custom_call.1} parent=1 // loop_header
      %s17 = sphi 0, %s21
      %p18 = scmp.ge.s32.totalorder %s17, 4
      %s27 = sphi 0, %s29
      %s30 = sphi 0, %s27
      %s31 = sphi 0, %s30
      %s47 = sphi 0, %s31
      %s51 = sphi 0, %s51
      %s53 = sphi 0, %s51
      %s54 = sphi 0, %s53
      %s68 = sphi 0, %s54
      %s72 = sphi 0, %s72
      %s74 = sphi 0, %s72
      %s75 = sphi 0, %s74
      %s89 = sphi 0, %s75
      %s93 = sphi 0, %s93
      %s95 = sphi 0, %s93
      %s96 = sphi 0, %s95
      %s110 = sphi 0, %s96
      %s114 = sphi 0, %s114
      %s116 = sphi 0, %s114
      %s117 = sphi 0, %s116
      %s131 = sphi 0, %s117
      %s135 = sphi 0, %s135
      %s137 = sphi 0, %s135
      %s138 = sphi 0, %s137
      %s152 = sphi 0, %s138
      %s156 = sphi 0, %s156
      %s158 = sphi 0, %s156
      %s159 = sphi 0, %s158
      %s173 = sphi 0, %s159
      %s179 = sphi 0, %s181
      %s182 = sphi 0, %s179
      %s183 = sphi 0, %s182
      %s199 = sphi 0, %s183
    $region4: #{tpu_custom_call.1} parent=1 // loop_header_branch
      %20 = sbr.rel (%p18) target = $region8
    $region5: #{tpu_custom_call.1} parent=1 // loop_body
      %s22 = ssub.s32 %s17, 1
      %s23 = ssub.s32 %s17, 2
      %s24 = sadd.s32 %s17, 1
      %s25 = ssub.s32 %s17, %s24
      %p26 = scmp.eq.s32.totalorder %s25, 0
      %s28 = sadd.s32 %s27, 1
      %s29 = scalar_select %p26, %s27, %s28
      %p32 = pneg %p26
      %p33 = scmp.eq.s32.totalorder %s17, 1
      %p34 = por %p32, %p33
      %p35 = scmp.ne.s32.totalorder %s27, %s30
      %p36 = scmp.eq.s32.totalorder %s17, 0
      %p37 = por %p35, %p36
      %p38 = scmp.ne.s32.totalorder %s27, %s30
      %p39 = scmp.eq.s32.totalorder %s22, 1
      %p40 = por %p38, %p39
      %p41 = scmp.ne.s32.totalorder %s30, %s31
      %p42 = scmp.eq.s32.totalorder %s22, 0
      %p43 = por %p41, %p42
      %p44 = scmp.ne.s32.totalorder %s30, %s31
      %p45 = scmp.eq.s32.totalorder %s23, 1
      %p46 = por %p44, %p45
      %p48 = scmp.ne.s32.totalorder %s31, %s47
      %p49 = scmp.eq.s32.totalorder %s23, 0
      %p50 = por %p48, %p49
      %s52 = sadd.s32 %s51, 1
      %p55 = scmp.eq.s32.totalorder %s17, 1
      %p56 = scmp.ne.s32.totalorder %s51, %s53
      %p57 = scmp.eq.s32.totalorder %s17, 0
      %p58 = por %p56, %p57
      %p59 = scmp.ne.s32.totalorder %s51, %s53
      %p60 = scmp.eq.s32.totalorder %s22, 1
      %p61 = por %p59, %p60
      %p62 = scmp.ne.s32.totalorder %s53, %s54
      %p63 = scmp.eq.s32.totalorder %s22, 0
      %p64 = por %p62, %p63
      %p65 = scmp.ne.s32.totalorder %s53, %s54
      %p66 = scmp.eq.s32.totalorder %s23, 1
      %p67 = por %p65, %p66
      %p69 = scmp.ne.s32.totalorder %s54, %s68
      %p70 = scmp.eq.s32.totalorder %s23, 0
      %p71 = por %p69, %p70
      %s73 = sadd.s32 %s72, 1
      %p76 = scmp.eq.s32.totalorder %s17, 1
      %p77 = scmp.ne.s32.totalorder %s72, %s74
      %p78 = scmp.eq.s32.totalorder %s17, 0
      %p79 = por %p77, %p78
      %p80 = scmp.ne.s32.totalorder %s72, %s74
      %p81 = scmp.eq.s32.totalorder %s22, 1
      %p82 = por %p80, %p81
      %p83 = scmp.ne.s32.totalorder %s74, %s75
      %p84 = scmp.eq.s32.totalorder %s22, 0
      %p85 = por %p83, %p84
      %p86 = scmp.ne.s32.totalorder %s74, %s75
      %p87 = scmp.eq.s32.totalorder %s23, 1
      %p88 = por %p86, %p87
      %p90 = scmp.ne.s32.totalorder %s75, %s89
      %p91 = scmp.eq.s32.totalorder %s23, 0
      %p92 = por %p90, %p91
      %s94 = sadd.s32 %s93, 1
      %p97 = scmp.eq.s32.totalorder %s17, 1
      %p98 = scmp.ne.s32.totalorder %s93, %s95
      %p99 = scmp.eq.s32.totalorder %s17, 0
      %p100 = por %p98, %p99
      %p101 = scmp.ne.s32.totalorder %s93, %s95
      %p102 = scmp.eq.s32.totalorder %s22, 1
      %p103 = por %p101, %p102
      %p104 = scmp.ne.s32.totalorder %s95, %s96
      %p105 = scmp.eq.s32.totalorder %s22, 0
      %p106 = por %p104, %p105
      %p107 = scmp.ne.s32.totalorder %s95, %s96
      %p108 = scmp.eq.s32.totalorder %s23, 1
      %p109 = por %p107, %p108
      %p111 = scmp.ne.s32.totalorder %s96, %s110
      %p112 = scmp.eq.s32.totalorder %s23, 0
      %p113 = por %p111, %p112
      %s115 = sadd.s32 %s114, 1
      %p118 = scmp.eq.s32.totalorder %s17, 1
      %p119 = scmp.ne.s32.totalorder %s114, %s116
      %p120 = scmp.eq.s32.totalorder %s17, 0
      %p121 = por %p119, %p120
      %p122 = scmp.ne.s32.totalorder %s114, %s116
      %p123 = scmp.eq.s32.totalorder %s22, 1
      %p124 = por %p122, %p123
      %p125 = scmp.ne.s32.totalorder %s116, %s117
      %p126 = scmp.eq.s32.totalorder %s22, 0
      %p127 = por %p125, %p126
      %p128 = scmp.ne.s32.totalorder %s116, %s117
      %p129 = scmp.eq.s32.totalorder %s23, 1
      %p130 = por %p128, %p129
      %p132 = scmp.ne.s32.totalorder %s117, %s131
      %p133 = scmp.eq.s32.totalorder %s23, 0
      %p134 = por %p132, %p133
      %s136 = sadd.s32 %s135, 1
      %p139 = scmp.eq.s32.totalorder %s17, 1
      %p140 = scmp.ne.s32.totalorder %s135, %s137
      %p141 = scmp.eq.s32.totalorder %s17, 0
      %p142 = por %p140, %p141
      %p143 = scmp.ne.s32.totalorder %s135, %s137
      %p144 = scmp.eq.s32.totalorder %s22, 1
      %p145 = por %p143, %p144
      %p146 = scmp.ne.s32.totalorder %s137, %s138
      %p147 = scmp.eq.s32.totalorder %s22, 0
      %p148 = por %p146, %p147
      %p149 = scmp.ne.s32.totalorder %s137, %s138
      %p150 = scmp.eq.s32.totalorder %s23, 1
      %p151 = por %p149, %p150
      %p153 = scmp.ne.s32.totalorder %s138, %s152
      %p154 = scmp.eq.s32.totalorder %s23, 0
      %p155 = por %p153, %p154
      %s157 = sadd.s32 %s156, 1
      %p160 = scmp.eq.s32.totalorder %s17, 1
      %p161 = scmp.ne.s32.totalorder %s156, %s158
      %p162 = scmp.eq.s32.totalorder %s17, 0
      %p163 = por %p161, %p162
      %p164 = scmp.ne.s32.totalorder %s156, %s158
      %p165 = scmp.eq.s32.totalorder %s22, 1
      %p166 = por %p164, %p165
      %p167 = scmp.ne.s32.totalorder %s158, %s159
      %p168 = scmp.eq.s32.totalorder %s22, 0
      %p169 = por %p167, %p168
      %p170 = scmp.ne.s32.totalorder %s158, %s159
      %p171 = scmp.eq.s32.totalorder %s23, 1
      %p172 = por %p170, %p171
      %p174 = scmp.ne.s32.totalorder %s159, %s173
      %p175 = scmp.eq.s32.totalorder %s23, 0
      %p176 = por %p174, %p175
      %s177 = ssub.s32 %s17, %s24
      %p178 = scmp.eq.s32.totalorder %s177, 0
      %s180 = sadd.s32 %s179, 1
      %s181 = scalar_select %p178, %s179, %s180
      %p184 = pneg %p178
      %p185 = scmp.eq.s32.totalorder %s17, 1
      %p186 = por %p184, %p185
      %p187 = scmp.ne.s32.totalorder %s179, %s182
      %p188 = scmp.eq.s32.totalorder %s17, 0
      %p189 = por %p187, %p188
      %p190 = scmp.ne.s32.totalorder %s179, %s182
      %p191 = scmp.eq.s32.totalorder %s22, 1
      %p192 = por %p190, %p191
      %p193 = scmp.ne.s32.totalorder %s182, %s183
      %p194 = scmp.eq.s32.totalorder %s22, 0
      %p195 = por %p193, %p194
      %p196 = scmp.ne.s32.totalorder %s182, %s183
      %p197 = scmp.eq.s32.totalorder %s23, 1
      %p198 = por %p196, %p197
      %p200 = scmp.ne.s32.totalorder %s183, %s199
      %p201 = scmp.eq.s32.totalorder %s23, 0
      %p202 = por %p200, %p201
      %p203 = scmp.le.s32.totalorder 1, %s17
      %p204 = scmp.lt.s32.totalorder %s17, 3
      %p205 = pnand %p203, %p204
      %p206 = pneg %p205
      // Predicated region
      $region9: #{tpu_custom_call.1} parent=5 // pred_check
        _
      $region10: #{tpu_custom_call.1} parent=5 // pred_check_branch
        %208 = sbr.rel (%p205) target = $region12
      $region11: #{tpu_custom_call.1} parent=5 // pred_region
        %s209 = ssub.s32 %s17, 1
        // Predicated region
        $region13: #{tpu_custom_call.1} parent=11 // pred_check
          %p210 = pneg %p64
        $region14: #{tpu_custom_call.1} parent=11 // pred_check_branch
          %212 = sbr.rel (%p210) target = $region16
        $region15: #{tpu_custom_call.1} parent=11 // pred_region
          _
        $region16: #{tpu_custom_call.1} parent=11 // pred_fallthru
          _
        // Predicated region
        $region17: #{tpu_custom_call.1} parent=11 // pred_check
          %p213 = pneg %p85
        $region18: #{tpu_custom_call.1} parent=11 // pred_check_branch
          %215 = sbr.rel (%p213) target = $region20
        $region19: #{tpu_custom_call.1} parent=11 // pred_region
          _
        $region20: #{tpu_custom_call.1} parent=11 // pred_fallthru
          _
        // Predicated region
        $region21: #{tpu_custom_call.1} parent=11 // pred_check
          %p216 = pneg %p106
        $region22: #{tpu_custom_call.1} parent=11 // pred_check_branch
          %218 = sbr.rel (%p216) target = $region24
        $region23: #{tpu_custom_call.1} parent=11 // pred_region
          _
        $region24: #{tpu_custom_call.1} parent=11 // pred_fallthru
          _
        // Predicated region
        $region25: #{tpu_custom_call.1} parent=11 // pred_check
          %p219 = pneg %p127
        $region26: #{tpu_custom_call.1} parent=11 // pred_check_branch
          %221 = sbr.rel (%p219) target = $region28
        $region27: #{tpu_custom_call.1} parent=11 // pred_region
          _
        $region28: #{tpu_custom_call.1} parent=11 // pred_fallthru
          _
        // Predicated region
        $region29: #{tpu_custom_call.1} parent=11 // pred_check
          %p222 = pneg %p148
        $region30: #{tpu_custom_call.1} parent=11 // pred_check_branch
          %224 = sbr.rel (%p222) target = $region32
        $region31: #{tpu_custom_call.1} parent=11 // pred_region
          _
        $region32: #{tpu_custom_call.1} parent=11 // pred_fallthru
          _
        // Predicated region
        $region33: #{tpu_custom_call.1} parent=11 // pred_check
          %p225 = pneg %p169
        $region34: #{tpu_custom_call.1} parent=11 // pred_check_branch
          %227 = sbr.rel (%p225) target = $region36
        $region35: #{tpu_custom_call.1} parent=11 // pred_region
          %s229 = ssub.s32 18432, 18432
          %230 = vsyncadd [#allocation4], %s229
          %s231 = sshll.u32 [#allocation3], 4
          %s232 = int_to_ptr.vmem [resolvable:$true] %s231
          %237 = dma.hbm_to_vmem [thread:$0]  %s6, 18432, %s232, [#allocation4], 128, 128, 8
        $region36: #{tpu_custom_call.1} parent=11 // pred_fallthru
          _
      $region12: #{tpu_custom_call.1} parent=5 // pred_fallthru
        _
      %p238 = scmp.lt.s32.totalorder %s17, 2
      // Predicated region
      $region37: #{tpu_custom_call.1} parent=5 // pred_check
        %p239 = pneg %p238
      $region38: #{tpu_custom_call.1} parent=5 // pred_check_branch
        %241 = sbr.rel (%p239) target = $region40
      $region39: #{tpu_custom_call.1} parent=5 // pred_region
        // Predicated region
        $region41: #{tpu_custom_call.1} parent=39 // pred_check
          %p242 = pneg %p37
        $region42: #{tpu_custom_call.1} parent=39 // pred_check_branch
          %244 = sbr.rel (%p242) target = $region44
        $region43: #{tpu_custom_call.1} parent=39 // pred_region
          %p245 = scmp.lt.s32.totalorder %s17, 1
          %s246 = scalar_select %p245, %s17, 1
          %s247 = smul.addr %s246, 41
          %s248 = smul.addr %s247, 8
          %s249 = scalar_lea.vmem %s0, %s248
        $region44: #{tpu_custom_call.1} parent=39 // pred_fallthru
          _
      $region40: #{tpu_custom_call.1} parent=5 // pred_fallthru
        _
      %p250 = scmp.le.s32.totalorder 1, %s17
      %p251 = scmp.lt.s32.totalorder %s17, 3
      %p252 = pnand %p250, %p251
      %p253 = pneg %p252
      // Predicated region
      $region45: #{tpu_custom_call.1} parent=5 // pred_check
        _
      $region46: #{tpu_custom_call.1} parent=5 // pred_check_branch
        %255 = sbr.rel (%p252) target = $region48
      $region47: #{tpu_custom_call.1} parent=5 // pred_region
        %s256 = ssub.s32 %s17, 1
        // Predicated region
        $region49: #{tpu_custom_call.1} parent=47 // pred_check
          %p257 = pneg %p169
        $region50: #{tpu_custom_call.1} parent=47 // pred_check_branch
          %259 = sbr.rel (%p257) target = $region52
        $region51: #{tpu_custom_call.1} parent=47 // pred_region
          %260 = dma.done [#allocation4], 18432
        $region52: #{tpu_custom_call.1} parent=47 // pred_fallthru
          _
        %p261 = scmp.lt.s32.totalorder %s22, 1
        %s262 = scalar_select %p261, %s22, 1
        %s263 = smul.addr %s262, 41
        %s264 = smul.addr %s263, 8
        %s265 = scalar_lea.vmem %s0, %s264
        %p266 = pneg %p43
        %p267 = pneg %p40
        %p268 = pneg %p64
        %p269 = pneg %p61
        %p270 = pneg %p85
        %p271 = pneg %p82
        %p272 = pneg %p106
        %p273 = pneg %p103
        %p274 = pneg %p127
        %p275 = pneg %p124
        %p276 = pneg %p148
        %p277 = pneg %p145
        %p278 = pneg %p169
        %p279 = pneg %p166
        %p280 = pneg %p195
        %p281 = pneg %p192
        %s282 = sand.u32 %s182, 1
        %s283 = scalar_lea.sflag [#allocation5], %s282
        %s284 = sand.u32 %s182, 1
        %s285 = smul.addr %s284, 288
        %s286 = scalar_lea.vmem [#allocation6], %s285
        %p287 = scmp.lt.s32.totalorder %s22, 1
        %s288 = scalar_select %p287, %s22, 1
        %s289 = smul.addr %s288, 41
        %s290 = smul.addr %s289, 8
        %s291 = scalar_lea.vmem %s0, %s290
        %v292 = vld [vmem:[%s291] sm:$0xff]
        %v293 = vld [vmem:[%s291 + $0x8] sm:$0xff]
        %v294 = vld [vmem:[%s291 + $0x10] sm:$0xff]
        %v295 = vld [vmem:[%s291 + $0x18] sm:$0xff]
        %v296 = vld [vmem:[%s291 + $0x20] sm:$0xff]
        %v297 = vld [vmem:[%s291 + $0x28] sm:$0xff]
        %v298 = vld [vmem:[%s291 + $0x30] sm:$0xff]
        %v299 = vld [vmem:[%s291 + $0x38] sm:$0xff]
        %v300 = vld [vmem:[%s291 + $0x40] sm:$0xff]
        %v301 = vld [vmem:[%s291 + $0x48] sm:$0xff]
        %v302 = vld [vmem:[%s291 + $0x50] sm:$0xff]
        %v303 = vld [vmem:[%s291 + $0x58] sm:$0xff]
        %v304 = vld [vmem:[%s291 + $0x60] sm:$0xff]
        %v305 = vld [vmem:[%s291 + $0x68] sm:$0xff]
        %v306 = vld [vmem:[%s291 + $0x70] sm:$0xff]
        %v307 = vld [vmem:[%s291 + $0x78] sm:$0xff]
        %v308 = vld [vmem:[%s291 + $0x80] sm:$0xff]
        %v309 = vld [vmem:[%s291 + $0x88] sm:$0xff]
        %v310 = vld [vmem:[%s291 + $0x90] sm:$0xff]
        %v311 = vld [vmem:[%s291 + $0x98] sm:$0xff]
        %v312 = vld [vmem:[%s291 + $0xa0] sm:$0xff]
        %v313 = vld [vmem:[%s291 + $0xa8] sm:$0xff]
        %v314 = vld [vmem:[%s291 + $0xb0] sm:$0xff]
        %v315 = vld [vmem:[%s291 + $0xb8] sm:$0xff]
        %v316 = vld [vmem:[%s291 + $0xc0] sm:$0xff]
        %v317 = vld [vmem:[%s291 + $0xc8] sm:$0xff]
        %v318 = vld [vmem:[%s291 + $0xd0] sm:$0xff]
        %v319 = vld [vmem:[%s291 + $0xd8] sm:$0xff]
        %v320 = vld [vmem:[%s291 + $0xe0] sm:$0xff]
        %v321 = vld [vmem:[%s291 + $0xe8] sm:$0xff]
        %v322 = vld [vmem:[%s291 + $0xf0] sm:$0xff]
        %v323 = vld [vmem:[%s291 + $0xf8] sm:$0xff]
        %v324 = vld [vmem:[%s291 + $0x100] sm:$0xff]
        %v325 = vld [vmem:[%s291 + $0x108] sm:$0xff]
        %v326 = vld [vmem:[%s291 + $0x110] sm:$0xff]
        %v327 = vld [vmem:[%s291 + $0x118] sm:$0xff]
        %v328 = vld [vmem:[%s291 + $0x120] sm:$0xff]
        %v329 = vld [vmem:[%s291 + $0x128] sm:$0xff]
        %v330 = vld [vmem:[%s291 + $0x130] sm:$0xff]
        %v331 = vld [vmem:[%s291 + $0x138] sm:$0xff]
        %v332 = vld [vmem:[%s291 + $0x140] sm:$0xf]
        %v333 = vld [vmem:[%s2] sm:$0x1]
        %v335 = vlaneseq
        %v336 = vshrl.u32 %v335, 7
        %v337 = vsub.s32 0, %v336
        %v338 = vrot.slane %v333, %v337
        %v340 = vmul.f32 %v292, %v338
        %v341 = vmul.f32 %v293, %v338
        %v342 = vmul.f32 %v294, %v338
        %v343 = vmul.f32 %v295, %v338
        %v344 = vmul.f32 %v296, %v338
        %v345 = vmul.f32 %v297, %v338
        %v346 = vmul.f32 %v298, %v338
        %v347 = vmul.f32 %v299, %v338
        %v348 = vmul.f32 %v300, %v338
        %v349 = vmul.f32 %v301, %v338
        %v350 = vmul.f32 %v302, %v338
        %v351 = vmul.f32 %v303, %v338
        %v352 = vmul.f32 %v304, %v338
        %v353 = vmul.f32 %v305, %v338
        %v354 = vmul.f32 %v306, %v338
        %v355 = vmul.f32 %v307, %v338
        %v356 = vmul.f32 %v308, %v338
        %v357 = vmul.f32 %v309, %v338
        %v358 = vmul.f32 %v310, %v338
        %v359 = vmul.f32 %v311, %v338
        %v360 = vmul.f32 %v312, %v338
        %v361 = vmul.f32 %v313, %v338
        %v362 = vmul.f32 %v314, %v338
        %v363 = vmul.f32 %v315, %v338
        %v364 = vmul.f32 %v316, %v338
        %v365 = vmul.f32 %v317, %v338
        %v366 = vmul.f32 %v318, %v338
        %v367 = vmul.f32 %v319, %v338
        %v368 = vmul.f32 %v320, %v338
        %v369 = vmul.f32 %v321, %v338
        %v370 = vmul.f32 %v322, %v338
        %v371 = vmul.f32 %v323, %v338
        %v372 = vmul.f32 %v324, %v338
        %v373 = vmul.f32 %v325, %v338
        %v374 = vmul.f32 %v326, %v338
        %v375 = vmul.f32 %v327, %v338
        %v376 = vmul.f32 %v328, %v338
        %v377 = vmul.f32 %v329, %v338
        %v378 = vmul.f32 %v330, %v338
        %v379 = vmul.f32 %v331, %v338
        %v380 = vmul.f32 %v332, %v338
        %v381 = vld [vmem:[%s3] sm:$0x1]
        %v383 = vlaneseq
        %v384 = vshrl.u32 %v383, 7
        %v385 = vsub.s32 0, %v384
        %v386 = vrot.slane %v381, %v385
        %v388 = vadd.f32 %v340, %v386
        %v389 = vadd.f32 %v341, %v386
        %v390 = vadd.f32 %v342, %v386
        %v391 = vadd.f32 %v343, %v386
        %v392 = vadd.f32 %v344, %v386
        %v393 = vadd.f32 %v345, %v386
        %v394 = vadd.f32 %v346, %v386
        %v395 = vadd.f32 %v347, %v386
        %v396 = vadd.f32 %v348, %v386
        %v397 = vadd.f32 %v349, %v386
        %v398 = vadd.f32 %v350, %v386
        %v399 = vadd.f32 %v351, %v386
        %v400 = vadd.f32 %v352, %v386
        %v401 = vadd.f32 %v353, %v386
        %v402 = vadd.f32 %v354, %v386
        %v403 = vadd.f32 %v355, %v386
        %v404 = vadd.f32 %v356, %v386
        %v405 = vadd.f32 %v357, %v386
        %v406 = vadd.f32 %v358, %v386
        %v407 = vadd.f32 %v359, %v386
        %v408 = vadd.f32 %v360, %v386
        %v409 = vadd.f32 %v361, %v386
        %v410 = vadd.f32 %v362, %v386
        %v411 = vadd.f32 %v363, %v386
        %v412 = vadd.f32 %v364, %v386
        %v413 = vadd.f32 %v365, %v386
        %v414 = vadd.f32 %v366, %v386
        %v415 = vadd.f32 %v367, %v386
        %v416 = vadd.f32 %v368, %v386
        %v417 = vadd.f32 %v369, %v386
        %v418 = vadd.f32 %v370, %v386
        %v419 = vadd.f32 %v371, %v386
        %v420 = vadd.f32 %v372, %v386
        %v421 = vadd.f32 %v373, %v386
        %v422 = vadd.f32 %v374, %v386
        %v423 = vadd.f32 %v375, %v386
        %v424 = vadd.f32 %v376, %v386
        %v425 = vadd.f32 %v377, %v386
        %v426 = vadd.f32 %v378, %v386
        %v427 = vadd.f32 %v379, %v386
        %v428 = vadd.f32 %v380, %v386
        %v429 = vmax.f32 %v388, 0.0
        %v430 = vmax.f32 %v389, 0.0
        %v431 = vmax.f32 %v390, 0.0
        %v432 = vmax.f32 %v391, 0.0
        %v433 = vmax.f32 %v392, 0.0
        %v434 = vmax.f32 %v393, 0.0
        %v435 = vmax.f32 %v394, 0.0
        %v436 = vmax.f32 %v395, 0.0
        %v437 = vmax.f32 %v396, 0.0
        %v438 = vmax.f32 %v397, 0.0
        %v439 = vmax.f32 %v398, 0.0
        %v440 = vmax.f32 %v399, 0.0
        %v441 = vmax.f32 %v400, 0.0
        %v442 = vmax.f32 %v401, 0.0
        %v443 = vmax.f32 %v402, 0.0
        %v444 = vmax.f32 %v403, 0.0
        %v445 = vmax.f32 %v404, 0.0
        %v446 = vmax.f32 %v405, 0.0
        %v447 = vmax.f32 %v406, 0.0
        %v448 = vmax.f32 %v407, 0.0
        %v449 = vmax.f32 %v408, 0.0
        %v450 = vmax.f32 %v409, 0.0
        %v451 = vmax.f32 %v410, 0.0
        %v452 = vmax.f32 %v411, 0.0
        %v453 = vmax.f32 %v412, 0.0
        %v454 = vmax.f32 %v413, 0.0
        %v455 = vmax.f32 %v414, 0.0
        %v456 = vmax.f32 %v415, 0.0
        %v457 = vmax.f32 %v416, 0.0
        %v458 = vmax.f32 %v417, 0.0
        %v459 = vmax.f32 %v418, 0.0
        %v460 = vmax.f32 %v419, 0.0
        %v461 = vmax.f32 %v420, 0.0
        %v462 = vmax.f32 %v421, 0.0
        %v463 = vmax.f32 %v422, 0.0
        %v464 = vmax.f32 %v423, 0.0
        %v465 = vmax.f32 %v424, 0.0
        %v466 = vmax.f32 %v425, 0.0
        %v467 = vmax.f32 %v426, 0.0
        %v468 = vmax.f32 %v427, 0.0
        %v469 = vmax.f32 %v428, 0.0
        %v470 = vld [vmem:[%s4] sm:$0xf]
        %v471 = vld [vmem:[%s5] sm:$0x1]
        %v473 = vlaneseq
        %v474 = vshrl.u32 %v473, 7
        %v475 = vsub.s32 0, %v474
        %v476 = vrot.slane %v471, %v475
        %vm478 = vcmask 31744
        %v480 = vsel %vm478, %v429, 0
        %v483 = vsel %vm478, %v430, 0
        %v486 = vsel %vm478, %v431, 0
        %v489 = vsel %vm478, %v432, 0
        %v492 = vsel %vm478, %v433, 0
        %v495 = vsel %vm478, %v434, 0
        %v498 = vsel %vm478, %v435, 0
        %v501 = vsel %vm478, %v436, 0
        %v504 = vsel %vm478, %v437, 0
        %v507 = vsel %vm478, %v438, 0
        %v510 = vsel %vm478, %v439, 0
        %v513 = vsel %vm478, %v440, 0
        %v516 = vsel %vm478, %v441, 0
        %v519 = vsel %vm478, %v442, 0
        %v522 = vsel %vm478, %v443, 0
        %v525 = vsel %vm478, %v444, 0
        %v528 = vsel %vm478, %v445, 0
        %v531 = vsel %vm478, %v446, 0
        %v534 = vsel %vm478, %v447, 0
        %v537 = vsel %vm478, %v448, 0
        %v540 = vsel %vm478, %v449, 0
        %v543 = vsel %vm478, %v450, 0
        %v546 = vsel %vm478, %v451, 0
        %v549 = vsel %vm478, %v452, 0
        %v552 = vsel %vm478, %v453, 0
        %v555 = vsel %vm478, %v454, 0
        %v558 = vsel %vm478, %v455, 0
        %v561 = vsel %vm478, %v456, 0
        %v564 = vsel %vm478, %v457, 0
        %v567 = vsel %vm478, %v458, 0
        %v570 = vsel %vm478, %v459, 0
        %v573 = vsel %vm478, %v460, 0
        %v576 = vsel %vm478, %v461, 0
        %v579 = vsel %vm478, %v462, 0
        %v582 = vsel %vm478, %v463, 0
        %v585 = vsel %vm478, %v464, 0
        %v588 = vsel %vm478, %v465, 0
        %v591 = vsel %vm478, %v466, 0
        %v594 = vsel %vm478, %v467, 0
        %v597 = vsel %vm478, %v468, 0
        %v600 = vsel %vm478, %v469, 0
        %vm602 = vcmask 1043456
        %v604 = vsel %vm602, %v470, 0
        %606 = vmatprep.subr.mxu0 0.0
        %607 = vmatpush1.msra.mxu0 %v604
        %608 = vmatprep.subr.mxu0 0.0
        %609 = vmatpush1.msra.mxu0 0.0
        %610 = vmatprep.subr.mxu0 0.0
        %611 = vmatpush1.msra.mxu0 0.0
        %612 = vmatprep.subr.mxu0 0.0
        %613 = vmatpush1.msra.mxu0 0.0
        %614 = vmatprep.subr.mxu0 0.0
        %615 = vmatpush1.msra.mxu0 0.0
        %616 = vmatprep.subr.mxu0 0.0
        %617 = vmatpush1.msra.mxu0 0.0
        %618 = vmatprep.subr.mxu0 0.0
        %619 = vmatpush1.msra.mxu0 0.0
        %620 = vmatprep.subr.mxu0 0.0
        %621 = vmatpush1.msra.mxu0 0.0
        %622 = vmatprep.subr.mxu0 0.0
        %623 = vmatpush1.msra.mxu0 0.0
        %624 = vmatprep.subr.mxu0 0.0
        %625 = vmatpush1.msra.mxu0 0.0
        %626 = vmatprep.subr.mxu0 0.0
        %627 = vmatpush1.msra.mxu0 0.0
        %628 = vmatprep.subr.mxu0 0.0
        %629 = vmatpush1.msra.mxu0 0.0
        %630 = vmatprep.subr.mxu0 0.0
        %631 = vmatpush1.msra.mxu0 0.0
        %632 = vmatprep.subr.mxu0 0.0
        %633 = vmatpush1.msra.mxu0 0.0
        %634 = vmatprep.subr.mxu0 0.0
        %635 = vmatpush1.msra.mxu0 0.0
        %636 = vmatprep.subr.mxu0 0.0
        %637 = vmatpush1.msra.mxu0 0.0
        %638 = vmatprep.subr.mxu0 0.0
        %639 = vmatpush1.msra.mxu0 0.0
        %640 = vmatprep.subr.mxu0 0.0
        %641 = vmatpush1.msra.mxu0 0.0
        %642 = vmatprep.subr.mxu0 0.0
        %643 = vmatpush1.msra.mxu0 0.0
        %644 = vmatprep.subr.mxu0 0.0
        %645 = vmatpush1.msra.mxu0 0.0
        %646 = vmatprep.subr.mxu0 0.0
        %647 = vmatpush1.msra.mxu0 0.0
        %648 = vmatprep.subr.mxu0 0.0
        %649 = vmatpush1.msra.mxu0 0.0
        %650 = vmatprep.subr.mxu0 0.0
        %651 = vmatpush1.msra.mxu0 0.0
        %652 = vmatprep.subr.mxu0 0.0
        %653 = vmatpush1.msra.mxu0 0.0
        %654 = vmatprep.subr.mxu0 0.0
        %655 = vmatpush1.msra.mxu0 0.0
        %656 = vmatprep.subr.mxu0 0.0
        %657 = vmatpush1.msra.mxu0 0.0
        %658 = vmatprep.subr.mxu0 0.0
        %659 = vmatpush1.msra.mxu0 0.0
        %660 = vmatprep.subr.mxu0 0.0
        %661 = vmatpush1.msra.mxu0 0.0
        %662 = vmatprep.subr.mxu0 0.0
        %663 = vmatpush1.msra.mxu0 0.0
        %664 = vmatprep.subr.mxu0 0.0
        %665 = vmatpush1.msra.mxu0 0.0
        %666 = vmatprep.subr.mxu0 0.0
        %667 = vmatpush1.msra.mxu0 0.0
        %668 = vmatprep.subr.mxu0 0.0
        %669 = vmatpush1.msra.mxu0 0.0
        %670 = vmatprep.mubr.f32.mxu0 0.0
        %671 = vmatmul.mubr.f32.gmra.mrb[0].mxu0 %v480
        %v672 = vpop.f32.mrb[0].mxu0
        %v673 = vadd.f32 %v476, %v672
        %v674 = vpop.f32.mrb[0].mxu0
        %675 = vmatprep.mubr.f32.mxu0 0.0
        %676 = vmatmul.mubr.f32.gmra.mrb[0].mxu0 %v483
        %v677 = vpop.f32.mrb[0].mxu0
        %v678 = vadd.f32 %v476, %v677
        %v679 = vpop.f32.mrb[0].mxu0
        %680 = vmatprep.mubr.f32.mxu0 0.0
        %681 = vmatmul.mubr.f32.gmra.mrb[0].mxu0 %v486
        %v682 = vpop.f32.mrb[0].mxu0
        %v683 = vadd.f32 %v476, %v682
        %v684 = vpop.f32.mrb[0].mxu0
        %685 = vmatprep.mubr.f32.mxu0 0.0
        %686 = vmatmul.mubr.f32.gmra.mrb[0].mxu0 %v489
        %v687 = vpop.f32.mrb[0].mxu0
        %v688 = vadd.f32 %v476, %v687
        %v689 = vpop.f32.mrb[0].mxu0
        %690 = vmatprep.mubr.f32.mxu0 0.0
        %691 = vmatmul.mubr.f32.gmra.mrb[0].mxu0 %v492
        %v692 = vpop.f32.mrb[0].mxu0
        %v693 = vadd.f32 %v476, %v692
        %v694 = vpop.f32.mrb[0].mxu0
        %695 = vmatprep.mubr.f32.mxu0 0.0
        %696 = vmatmul.mubr.f32.gmra.mrb[0].mxu0 %v495
        %v697 = vpop.f32.mrb[0].mxu0
        %v698 = vadd.f32 %v476, %v697
        %v699 = vpop.f32.mrb[0].mxu0
        %700 = vmatprep.mubr.f32.mxu0 0.0
        %701 = vmatmul.mubr.f32.gmra.mrb[0].mxu0 %v498
        %v702 = vpop.f32.mrb[0].mxu0
        %v703 = vadd.f32 %v476, %v702
        %v704 = vpop.f32.mrb[0].mxu0
        %705 = vmatprep.mubr.f32.mxu0 0.0
        %706 = vmatmul.mubr.f32.gmra.mrb[0].mxu0 %v501
        %v707 = vpop.f32.mrb[0].mxu0
        %v708 = vadd.f32 %v476, %v707
        %v709 = vpop.f32.mrb[0].mxu0
        %710 = vmatprep.mubr.f32.mxu0 0.0
        %711 = vmatmul.mubr.f32.gmra.mrb[0].mxu0 %v504
        %v712 = vpop.f32.mrb[0].mxu0
        %v713 = vadd.f32 %v476, %v712
        %v714 = vpop.f32.mrb[0].mxu0
        %715 = vmatprep.mubr.f32.mxu0 0.0
        %716 = vmatmul.mubr.f32.gmra.mrb[0].mxu0 %v507
        %v717 = vpop.f32.mrb[0].mxu0
        %v718 = vadd.f32 %v476, %v717
        %v719 = vpop.f32.mrb[0].mxu0
        %720 = vmatprep.mubr.f32.mxu0 0.0
        %721 = vmatmul.mubr.f32.gmra.mrb[0].mxu0 %v510
        %v722 = vpop.f32.mrb[0].mxu0
        %v723 = vadd.f32 %v476, %v722
        %v724 = vpop.f32.mrb[0].mxu0
        %725 = vmatprep.mubr.f32.mxu0 0.0
        %726 = vmatmul.mubr.f32.gmra.mrb[0].mxu0 %v513
        %v727 = vpop.f32.mrb[0].mxu0
        %v728 = vadd.f32 %v476, %v727
        %v729 = vpop.f32.mrb[0].mxu0
        %730 = vmatprep.mubr.f32.mxu0 0.0
        %731 = vmatmul.mubr.f32.gmra.mrb[0].mxu0 %v516
        %v732 = vpop.f32.mrb[0].mxu0
        %v733 = vadd.f32 %v476, %v732
        %v734 = vpop.f32.mrb[0].mxu0
        %735 = vmatprep.mubr.f32.mxu0 0.0
        %736 = vmatmul.mubr.f32.gmra.mrb[0].mxu0 %v519
        %v737 = vpop.f32.mrb[0].mxu0
        %v738 = vadd.f32 %v476, %v737
        %v739 = vpop.f32.mrb[0].mxu0
        %740 = vmatprep.mubr.f32.mxu0 0.0
        %741 = vmatmul.mubr.f32.gmra.mrb[0].mxu0 %v522
        %v742 = vpop.f32.mrb[0].mxu0
        %v743 = vadd.f32 %v476, %v742
        %v744 = vpop.f32.mrb[0].mxu0
        %745 = vmatprep.mubr.f32.mxu0 0.0
        %746 = vmatmul.mubr.f32.gmra.mrb[0].mxu0 %v525
        %v747 = vpop.f32.mrb[0].mxu0
        %v748 = vadd.f32 %v476, %v747
        %v749 = vpop.f32.mrb[0].mxu0
        %750 = vmatprep.mubr.f32.mxu0 0.0
        %751 = vmatmul.mubr.f32.gmra.mrb[0].mxu0 %v528
        %v752 = vpop.f32.mrb[0].mxu0
        %v753 = vadd.f32 %v476, %v752
        %v754 = vpop.f32.mrb[0].mxu0
        %755 = vmatprep.mubr.f32.mxu0 0.0
        %756 = vmatmul.mubr.f32.gmra.mrb[0].mxu0 %v531
        %v757 = vpop.f32.mrb[0].mxu0
        %v758 = vadd.f32 %v476, %v757
        %v759 = vpop.f32.mrb[0].mxu0
        %760 = vmatprep.mubr.f32.mxu0 0.0
        %761 = vmatmul.mubr.f32.gmra.mrb[0].mxu0 %v534
        %v762 = vpop.f32.mrb[0].mxu0
        %v763 = vadd.f32 %v476, %v762
        %v764 = vpop.f32.mrb[0].mxu0
        %765 = vmatprep.mubr.f32.mxu0 0.0
        %766 = vmatmul.mubr.f32.gmra.mrb[0].mxu0 %v537
        %v767 = vpop.f32.mrb[0].mxu0
        %v768 = vadd.f32 %v476, %v767
        %v769 = vpop.f32.mrb[0].mxu0
        %770 = vmatprep.mubr.f32.mxu0 0.0
        %771 = vmatmul.mubr.f32.gmra.mrb[0].mxu0 %v540
        %v772 = vpop.f32.mrb[0].mxu0
        %v773 = vadd.f32 %v476, %v772
        %v774 = vpop.f32.mrb[0].mxu0
        %775 = vmatprep.mubr.f32.mxu0 0.0
        %776 = vmatmul.mubr.f32.gmra.mrb[0].mxu0 %v543
        %v777 = vpop.f32.mrb[0].mxu0
        %v778 = vadd.f32 %v476, %v777
        %v779 = vpop.f32.mrb[0].mxu0
        %780 = vmatprep.mubr.f32.mxu0 0.0
        %781 = vmatmul.mubr.f32.gmra.mrb[0].mxu0 %v546
        %v782 = vpop.f32.mrb[0].mxu0
        %v783 = vadd.f32 %v476, %v782
        %v784 = vpop.f32.mrb[0].mxu0
        %785 = vmatprep.mubr.f32.mxu0 0.0
        %786 = vmatmul.mubr.f32.gmra.mrb[0].mxu0 %v549
        %v787 = vpop.f32.mrb[0].mxu0
        %v788 = vadd.f32 %v476, %v787
        %v789 = vpop.f32.mrb[0].mxu0
        %790 = vmatprep.mubr.f32.mxu0 0.0
        %791 = vmatmul.mubr.f32.gmra.mrb[0].mxu0 %v552
        %v792 = vpop.f32.mrb[0].mxu0
        %v793 = vadd.f32 %v476, %v792
        %v794 = vpop.f32.mrb[0].mxu0
        %795 = vmatprep.mubr.f32.mxu0 0.0
        %796 = vmatmul.mubr.f32.gmra.mrb[0].mxu0 %v555
        %v797 = vpop.f32.mrb[0].mxu0
        %v798 = vadd.f32 %v476, %v797
        %v799 = vpop.f32.mrb[0].mxu0
        %800 = vmatprep.mubr.f32.mxu0 0.0
        %801 = vmatmul.mubr.f32.gmra.mrb[0].mxu0 %v558
        %v802 = vpop.f32.mrb[0].mxu0
        %v803 = vadd.f32 %v476, %v802
        %v804 = vpop.f32.mrb[0].mxu0
        %805 = vmatprep.mubr.f32.mxu0 0.0
        %806 = vmatmul.mubr.f32.gmra.mrb[0].mxu0 %v561
        %v807 = vpop.f32.mrb[0].mxu0
        %v808 = vadd.f32 %v476, %v807
        %v809 = vpop.f32.mrb[0].mxu0
        %810 = vmatprep.mubr.f32.mxu0 0.0
        %811 = vmatmul.mubr.f32.gmra.mrb[0].mxu0 %v564
        %v812 = vpop.f32.mrb[0].mxu0
        %v813 = vadd.f32 %v476, %v812
        %v814 = vpop.f32.mrb[0].mxu0
        %815 = vmatprep.mubr.f32.mxu0 0.0
        %816 = vmatmul.mubr.f32.gmra.mrb[0].mxu0 %v567
        %v817 = vpop.f32.mrb[0].mxu0
        %v818 = vadd.f32 %v476, %v817
        %v819 = vpop.f32.mrb[0].mxu0
        %820 = vmatprep.mubr.f32.mxu0 0.0
        %821 = vmatmul.mubr.f32.gmra.mrb[0].mxu0 %v570
        %v822 = vpop.f32.mrb[0].mxu0
        %v823 = vadd.f32 %v476, %v822
        %v824 = vpop.f32.mrb[0].mxu0
        %825 = vmatprep.mubr.f32.mxu0 0.0
        %826 = vmatmul.mubr.f32.gmra.mrb[0].mxu0 %v573
        %v827 = vpop.f32.mrb[0].mxu0
        %v828 = vadd.f32 %v476, %v827
        %v829 = vpop.f32.mrb[0].mxu0
        %830 = vmatprep.mubr.f32.mxu0 0.0
        %831 = vmatmul.mubr.f32.gmra.mrb[0].mxu0 %v576
        %v832 = vpop.f32.mrb[0].mxu0
        %v833 = vadd.f32 %v476, %v832
        %v834 = vpop.f32.mrb[0].mxu0
        %835 = vmatprep.mubr.f32.mxu0 0.0
        %836 = vmatmul.mubr.f32.gmra.mrb[0].mxu0 %v579
        %v837 = vpop.f32.mrb[0].mxu0
        %v838 = vadd.f32 %v476, %v837
        %v839 = vpop.f32.mrb[0].mxu0
        %840 = vmatprep.mubr.f32.mxu0 0.0
        %841 = vmatmul.mubr.f32.gmra.mrb[0].mxu0 %v582
        %v842 = vpop.f32.mrb[0].mxu0
        %v843 = vadd.f32 %v476, %v842
        %v844 = vpop.f32.mrb[0].mxu0
        %845 = vmatprep.mubr.f32.mxu0 0.0
        %846 = vmatmul.mubr.f32.gmra.mrb[0].mxu0 %v585
        %v847 = vpop.f32.mrb[0].mxu0
        %v848 = vadd.f32 %v476, %v847
        %v849 = vpop.f32.mrb[0].mxu0
        %850 = vmatprep.mubr.f32.mxu0 0.0
        %851 = vmatmul.mubr.f32.gmra.mrb[0].mxu0 %v588
        %v852 = vpop.f32.mrb[0].mxu0
        %v853 = vadd.f32 %v476, %v852
        %v854 = vpop.f32.mrb[0].mxu0
        %855 = vmatprep.mubr.f32.mxu0 0.0
        %856 = vmatmul.mubr.f32.gmra.mrb[0].mxu0 %v591
        %v857 = vpop.f32.mrb[0].mxu0
        %v858 = vadd.f32 %v476, %v857
        %v859 = vpop.f32.mrb[0].mxu0
        %860 = vmatprep.mubr.f32.mxu0 0.0
        %861 = vmatmul.mubr.f32.gmra.mrb[0].mxu0 %v594
        %v862 = vpop.f32.mrb[0].mxu0
        %v863 = vadd.f32 %v476, %v862
        %v864 = vpop.f32.mrb[0].mxu0
        %865 = vmatprep.mubr.f32.mxu0 0.0
        %866 = vmatmul.mubr.f32.gmra.mrb[0].mxu0 %v597
        %v867 = vpop.f32.mrb[0].mxu0
        %v868 = vadd.f32 %v476, %v867
        %v869 = vpop.f32.mrb[0].mxu0
        %870 = vmatprep.mubr.f32.mxu0 0.0
        %871 = vmatmul.mubr.f32.gmra.mrb[0].mxu0 %v600
        %v872 = vpop.f32.mrb[0].mxu0
        %v873 = vadd.f32 %v476, %v872
        %v874 = vpop.f32.mrb[0].mxu0
        %875 = vdwg.mxu0
        %v876 = vmax.f32 %v673, 0.0
        %v877 = vmax.f32 %v678, 0.0
        %v878 = vmax.f32 %v683, 0.0
        %v879 = vmax.f32 %v688, 0.0
        %v880 = vmax.f32 %v693, 0.0
        %v881 = vmax.f32 %v698, 0.0
        %v882 = vmax.f32 %v703, 0.0
        %v883 = vmax.f32 %v708, 0.0
        %v884 = vmax.f32 %v713, 0.0
        %v885 = vmax.f32 %v718, 0.0
        %v886 = vmax.f32 %v723, 0.0
        %v887 = vmax.f32 %v728, 0.0
        %v888 = vmax.f32 %v733, 0.0
        %v889 = vmax.f32 %v738, 0.0
        %v890 = vmax.f32 %v743, 0.0
        %v891 = vmax.f32 %v748, 0.0
        %v892 = vmax.f32 %v753, 0.0
        %v893 = vmax.f32 %v758, 0.0
        %v894 = vmax.f32 %v763, 0.0
        %v895 = vmax.f32 %v768, 0.0
        %v896 = vmax.f32 %v773, 0.0
        %v897 = vmax.f32 %v778, 0.0
        %v898 = vmax.f32 %v783, 0.0
        %v899 = vmax.f32 %v788, 0.0
        %v900 = vmax.f32 %v793, 0.0
        %v901 = vmax.f32 %v798, 0.0
        %v902 = vmax.f32 %v803, 0.0
        %v903 = vmax.f32 %v808, 0.0
        %v904 = vmax.f32 %v813, 0.0
        %v905 = vmax.f32 %v818, 0.0
        %v906 = vmax.f32 %v823, 0.0
        %v907 = vmax.f32 %v828, 0.0
        %v908 = vmax.f32 %v833, 0.0
        %v909 = vmax.f32 %v838, 0.0
        %v910 = vmax.f32 %v843, 0.0
        %v911 = vmax.f32 %v848, 0.0
        %v912 = vmax.f32 %v853, 0.0
        %v913 = vmax.f32 %v858, 0.0
        %v914 = vmax.f32 %v863, 0.0
        %v915 = vmax.f32 %v868, 0.0
        %v916 = vmax.f32 %v873, 0.0
        %v917 = vld [vmem:[%s1] sm:$0xff]
        %v918 = vld [vmem:[%s1 + $0x8] sm:$0xff]
        %v919 = vld [vmem:[%s1 + $0x10] sm:$0xff]
        %v920 = vld [vmem:[%s1 + $0x18] sm:$0xff]
        %v921 = vld [vmem:[%s1 + $0x20] sm:$0xff]
        %v922 = vld [vmem:[%s1 + $0x28] sm:$0xff]
        %v923 = vld [vmem:[%s1 + $0x30] sm:$0xff]
        %v924 = vld [vmem:[%s1 + $0x38] sm:$0xff]
        %v925 = vld [vmem:[%s1 + $0x40] sm:$0xff]
        %v926 = vld [vmem:[%s1 + $0x48] sm:$0xff]
        %v927 = vld [vmem:[%s1 + $0x50] sm:$0xff]
        %v928 = vld [vmem:[%s1 + $0x58] sm:$0xff]
        %v929 = vld [vmem:[%s1 + $0x60] sm:$0xff]
        %v930 = vld [vmem:[%s1 + $0x68] sm:$0xff]
        %v931 = vld [vmem:[%s1 + $0x70] sm:$0xff]
        %v932 = vld [vmem:[%s1 + $0x78] sm:$0xff]
        %v933 = vld [vmem:[%s1 + $0x80] sm:$0xff]
        %v934 = vld [vmem:[%s1 + $0x88] sm:$0xff]
        %v935 = vld [vmem:[%s1 + $0x90] sm:$0xff]
        %v936 = vld [vmem:[%s1 + $0x98] sm:$0xff]
        %v937 = vld [vmem:[%s1 + $0xa0] sm:$0xff]
        %v938 = vld [vmem:[%s1 + $0xa8] sm:$0xff]
        %v939 = vld [vmem:[%s1 + $0xb0] sm:$0xff]
        %v940 = vld [vmem:[%s1 + $0xb8] sm:$0xff]
        %v941 = vld [vmem:[%s1 + $0xc0] sm:$0xff]
        %v942 = vld [vmem:[%s1 + $0xc8] sm:$0xff]
        %v943 = vld [vmem:[%s1 + $0xd0] sm:$0xff]
        %v944 = vld [vmem:[%s1 + $0xd8] sm:$0xff]
        %v945 = vld [vmem:[%s1 + $0xe0] sm:$0xff]
        %v946 = vld [vmem:[%s1 + $0xe8] sm:$0xff]
        %v947 = vld [vmem:[%s1 + $0xf0] sm:$0xff]
        %v948 = vld [vmem:[%s1 + $0xf8] sm:$0xff]
        %v949 = vld [vmem:[%s1 + $0x100] sm:$0xff]
        %v950 = vld [vmem:[%s1 + $0x108] sm:$0xff]
        %v951 = vld [vmem:[%s1 + $0x110] sm:$0xff]
        %v952 = vld [vmem:[%s1 + $0x118] sm:$0xff]
        %v953 = vld [vmem:[%s1 + $0x120] sm:$0xff]
        %v954 = vld [vmem:[%s1 + $0x128] sm:$0xff]
        %v955 = vld [vmem:[%s1 + $0x130] sm:$0xff]
        %v956 = vld [vmem:[%s1 + $0x138] sm:$0xff]
        %v957 = vld [vmem:[%s1 + $0x140] sm:$0xf]
        %959 = vset.pattern.permute.xlu0 0
        %960 = vperm.xlu0 %959, %v917
        %v961 = vpop.permute.xlu0 %960
        %964 = vset.pattern.permute.xlu0 0
        %965 = vperm.xlu0 %964, %v918
        %v966 = vpop.permute.xlu0 %965
        %969 = vset.pattern.permute.xlu0 0
        %970 = vperm.xlu0 %969, %v919
        %v971 = vpop.permute.xlu0 %970
        %974 = vset.pattern.permute.xlu0 0
        %975 = vperm.xlu0 %974, %v920
        %v976 = vpop.permute.xlu0 %975
        %979 = vset.pattern.permute.xlu0 0
        %980 = vperm.xlu0 %979, %v921
        %v981 = vpop.permute.xlu0 %980
        %984 = vset.pattern.permute.xlu0 0
        %985 = vperm.xlu0 %984, %v922
        %v986 = vpop.permute.xlu0 %985
        %989 = vset.pattern.permute.xlu0 0
        %990 = vperm.xlu0 %989, %v923
        %v991 = vpop.permute.xlu0 %990
        %994 = vset.pattern.permute.xlu0 0
        %995 = vperm.xlu0 %994, %v924
        %v996 = vpop.permute.xlu0 %995
        %999 = vset.pattern.permute.xlu0 0
        %1000 = vperm.xlu0 %999, %v925
        %v1001 = vpop.permute.xlu0 %1000
        %1004 = vset.pattern.permute.xlu0 0
        %1005 = vperm.xlu0 %1004, %v926
        %v1006 = vpop.permute.xlu0 %1005
        %1009 = vset.pattern.permute.xlu0 0
        %1010 = vperm.xlu0 %1009, %v927
        %v1011 = vpop.permute.xlu0 %1010
        %1014 = vset.pattern.permute.xlu0 0
        %1015 = vperm.xlu0 %1014, %v928
        %v1016 = vpop.permute.xlu0 %1015
        %1019 = vset.pattern.permute.xlu0 0
        %1020 = vperm.xlu0 %1019, %v929
        %v1021 = vpop.permute.xlu0 %1020
        %1024 = vset.pattern.permute.xlu0 0
        %1025 = vperm.xlu0 %1024, %v930
        %v1026 = vpop.permute.xlu0 %1025
        %1029 = vset.pattern.permute.xlu0 0
        %1030 = vperm.xlu0 %1029, %v931
        %v1031 = vpop.permute.xlu0 %1030
        %1034 = vset.pattern.permute.xlu0 0
        %1035 = vperm.xlu0 %1034, %v932
        %v1036 = vpop.permute.xlu0 %1035
        %1039 = vset.pattern.permute.xlu0 0
        %1040 = vperm.xlu0 %1039, %v933
        %v1041 = vpop.permute.xlu0 %1040
        %1044 = vset.pattern.permute.xlu0 0
        %1045 = vperm.xlu0 %1044, %v934
        %v1046 = vpop.permute.xlu0 %1045
        %1049 = vset.pattern.permute.xlu0 0
        %1050 = vperm.xlu0 %1049, %v935
        %v1051 = vpop.permute.xlu0 %1050
        %1054 = vset.pattern.permute.xlu0 0
        %1055 = vperm.xlu0 %1054, %v936
        %v1056 = vpop.permute.xlu0 %1055
        %1059 = vset.pattern.permute.xlu0 0
        %1060 = vperm.xlu0 %1059, %v937
        %v1061 = vpop.permute.xlu0 %1060
        %1064 = vset.pattern.permute.xlu0 0
        %1065 = vperm.xlu0 %1064, %v938
        %v1066 = vpop.permute.xlu0 %1065
        %1069 = vset.pattern.permute.xlu0 0
        %1070 = vperm.xlu0 %1069, %v939
        %v1071 = vpop.permute.xlu0 %1070
        %1074 = vset.pattern.permute.xlu0 0
        %1075 = vperm.xlu0 %1074, %v940
        %v1076 = vpop.permute.xlu0 %1075
        %1079 = vset.pattern.permute.xlu0 0
        %1080 = vperm.xlu0 %1079, %v941
        %v1081 = vpop.permute.xlu0 %1080
        %1084 = vset.pattern.permute.xlu0 0
        %1085 = vperm.xlu0 %1084, %v942
        %v1086 = vpop.permute.xlu0 %1085
        %1089 = vset.pattern.permute.xlu0 0
        %1090 = vperm.xlu0 %1089, %v943
        %v1091 = vpop.permute.xlu0 %1090
        %1094 = vset.pattern.permute.xlu0 0
        %1095 = vperm.xlu0 %1094, %v944
        %v1096 = vpop.permute.xlu0 %1095
        %1099 = vset.pattern.permute.xlu0 0
        %1100 = vperm.xlu0 %1099, %v945
        %v1101 = vpop.permute.xlu0 %1100
        %1104 = vset.pattern.permute.xlu0 0
        %1105 = vperm.xlu0 %1104, %v946
        %v1106 = vpop.permute.xlu0 %1105
        %1109 = vset.pattern.permute.xlu0 0
        %1110 = vperm.xlu0 %1109, %v947
        %v1111 = vpop.permute.xlu0 %1110
        %1114 = vset.pattern.permute.xlu0 0
        %1115 = vperm.xlu0 %1114, %v948
        %v1116 = vpop.permute.xlu0 %1115
        %1119 = vset.pattern.permute.xlu0 0
        %1120 = vperm.xlu0 %1119, %v949
        %v1121 = vpop.permute.xlu0 %1120
        %1124 = vset.pattern.permute.xlu0 0
        %1125 = vperm.xlu0 %1124, %v950
        %v1126 = vpop.permute.xlu0 %1125
        %1129 = vset.pattern.permute.xlu0 0
        %1130 = vperm.xlu0 %1129, %v951
        %v1131 = vpop.permute.xlu0 %1130
        %1134 = vset.pattern.permute.xlu0 0
        %1135 = vperm.xlu0 %1134, %v952
        %v1136 = vpop.permute.xlu0 %1135
        %1139 = vset.pattern.permute.xlu0 0
        %1140 = vperm.xlu0 %1139, %v953
        %v1141 = vpop.permute.xlu0 %1140
        %1144 = vset.pattern.permute.xlu0 0
        %1145 = vperm.xlu0 %1144, %v954
        %v1146 = vpop.permute.xlu0 %1145
        %1149 = vset.pattern.permute.xlu0 0
        %1150 = vperm.xlu0 %1149, %v955
        %v1151 = vpop.permute.xlu0 %1150
        %1154 = vset.pattern.permute.xlu0 0
        %1155 = vperm.xlu0 %1154, %v956
        %v1156 = vpop.permute.xlu0 %1155
        %1159 = vset.pattern.permute.xlu0 0
        %1160 = vperm.xlu0 %1159, %v957
        %v1161 = vpop.permute.xlu0 %1160
        %v1163 = vmul.f32 %v876, %v961
        %v1164 = vmul.f32 %v877, %v966
        %v1165 = vmul.f32 %v878, %v971
        %v1166 = vmul.f32 %v879, %v976
        %v1167 = vmul.f32 %v880, %v981
        %v1168 = vmul.f32 %v881, %v986
        %v1169 = vmul.f32 %v882, %v991
        %v1170 = vmul.f32 %v883, %v996
        %v1171 = vmul.f32 %v884, %v1001
        %v1172 = vmul.f32 %v885, %v1006
        %v1173 = vmul.f32 %v886, %v1011
        %v1174 = vmul.f32 %v887, %v1016
        %v1175 = vmul.f32 %v888, %v1021
        %v1176 = vmul.f32 %v889, %v1026
        %v1177 = vmul.f32 %v890, %v1031
        %v1178 = vmul.f32 %v891, %v1036
        %v1179 = vmul.f32 %v892, %v1041
        %v1180 = vmul.f32 %v893, %v1046
        %v1181 = vmul.f32 %v894, %v1051
        %v1182 = vmul.f32 %v895, %v1056
        %v1183 = vmul.f32 %v896, %v1061
        %v1184 = vmul.f32 %v897, %v1066
        %v1185 = vmul.f32 %v898, %v1071
        %v1186 = vmul.f32 %v899, %v1076
        %v1187 = vmul.f32 %v900, %v1081
        %v1188 = vmul.f32 %v901, %v1086
        %v1189 = vmul.f32 %v902, %v1091
        %v1190 = vmul.f32 %v903, %v1096
        %v1191 = vmul.f32 %v904, %v1101
        %v1192 = vmul.f32 %v905, %v1106
        %v1193 = vmul.f32 %v906, %v1111
        %v1194 = vmul.f32 %v907, %v1116
        %v1195 = vmul.f32 %v908, %v1121
        %v1196 = vmul.f32 %v909, %v1126
        %v1197 = vmul.f32 %v910, %v1131
        %v1198 = vmul.f32 %v911, %v1136
        %v1199 = vmul.f32 %v912, %v1141
        %v1200 = vmul.f32 %v913, %v1146
        %v1201 = vmul.f32 %v914, %v1151
        %v1202 = vmul.f32 %v915, %v1156
        %v1203 = vmul.f32 %v916, %v1161
        %1204 = vst [vmem:[#allocation2] sm:$0xff] 0.0
        %1205 = vst [vmem:[#allocation2 + $0x8] sm:$0xff] 0.0
        %1206 = vst [vmem:[#allocation2 + $0x10] sm:$0xff] 0.0
        %1207 = vst [vmem:[#allocation2 + $0x18] sm:$0xff] 0.0
        %1208 = vst [vmem:[#allocation2 + $0x20] sm:$0xff] 0.0
        %1209 = vst [vmem:[#allocation2 + $0x28] sm:$0xff] 0.0
        %1210 = vst [vmem:[#allocation2 + $0x30] sm:$0xff] 0.0
        %1211 = vst [vmem:[#allocation2 + $0x38] sm:$0xff] 0.0
        %1212 = vst [vmem:[#allocation2 + $0x40] sm:$0xff] 0.0
        %1213 = vst [vmem:[#allocation2 + $0x48] sm:$0xff] 0.0
        %1214 = vst [vmem:[#allocation2 + $0x50] sm:$0xff] 0.0
        %1215 = vst [vmem:[#allocation2 + $0x58] sm:$0xff] 0.0
        %1216 = vst [vmem:[#allocation2 + $0x60] sm:$0xff] 0.0
        %1217 = vst [vmem:[#allocation2 + $0x68] sm:$0xff] 0.0
        %1218 = vst [vmem:[#allocation2 + $0x70] sm:$0xff] 0.0
        %1219 = vst [vmem:[#allocation2 + $0x78] sm:$0xff] 0.0
        %1220 = vst [vmem:[#allocation2 + $0x80] sm:$0xff] 0.0
        %1221 = vst [vmem:[#allocation2 + $0x88] sm:$0xff] 0.0
        %1222 = vst [vmem:[#allocation2 + $0x90] sm:$0xff] 0.0
        %1223 = vst [vmem:[#allocation2 + $0x98] sm:$0xff] 0.0
        %1224 = vst [vmem:[#allocation2 + $0xa0] sm:$0xff] 0.0
        %1225 = vst [vmem:[#allocation2 + $0xa8] sm:$0xff] 0.0
        %1226 = vst [vmem:[#allocation2 + $0xb0] sm:$0xff] 0.0
        %1227 = vst [vmem:[#allocation2 + $0xb8] sm:$0xff] 0.0
        %1228 = vst [vmem:[#allocation2 + $0xc0] sm:$0xff] 0.0
        %1229 = vst [vmem:[#allocation2 + $0xc8] sm:$0xff] 0.0
        %1230 = vst [vmem:[#allocation2 + $0xd0] sm:$0xff] 0.0
        %1231 = vst [vmem:[#allocation2 + $0xd8] sm:$0xff] 0.0
        %1232 = vst [vmem:[#allocation2 + $0xe0] sm:$0xff] 0.0
        %1233 = vst [vmem:[#allocation2 + $0xe8] sm:$0xff] 0.0
        %1234 = vst [vmem:[#allocation2 + $0xf0] sm:$0xff] 0.0
        %1235 = vst [vmem:[#allocation2 + $0xf8] sm:$0xff] 0.0
        %1236 = vst [vmem:[#allocation2 + $0x100] sm:$0xff] 0.0
        %1237 = vst [vmem:[#allocation2 + $0x108] sm:$0xff] 0.0
        %1238 = vst [vmem:[#allocation2 + $0x110] sm:$0xff] 0.0
        %1239 = vst [vmem:[#allocation2 + $0x118] sm:$0xff] 0.0
        %1240 = vst [vmem:[#allocation2 + $0x120] sm:$0xff] 0.0
        %1241 = vst [vmem:[#allocation2 + $0x128] sm:$0xff] 0.0
        %1242 = vst [vmem:[#allocation2 + $0x130] sm:$0xff] 0.0
        %1243 = vst [vmem:[#allocation2 + $0x138] sm:$0xff] 0.0
        %1244 = vst [vmem:[#allocation2 + $0x140] sm:$0xff] 0.0
        %1245 = vst [vmem:[#allocation2] sm:$0xff] %v1163
        %1246 = vst [vmem:[#allocation2 + $0x8] sm:$0xff] %v1164
        %1247 = vst [vmem:[#allocation2 + $0x10] sm:$0xff] %v1165
        %1248 = vst [vmem:[#allocation2 + $0x18] sm:$0xff] %v1166
        %1249 = vst [vmem:[#allocation2 + $0x20] sm:$0xff] %v1167
        %1250 = vst [vmem:[#allocation2 + $0x28] sm:$0xff] %v1168
        %1251 = vst [vmem:[#allocation2 + $0x30] sm:$0xff] %v1169
        %1252 = vst [vmem:[#allocation2 + $0x38] sm:$0xff] %v1170
        %1253 = vst [vmem:[#allocation2 + $0x40] sm:$0xff] %v1171
        %1254 = vst [vmem:[#allocation2 + $0x48] sm:$0xff] %v1172
        %1255 = vst [vmem:[#allocation2 + $0x50] sm:$0xff] %v1173
        %1256 = vst [vmem:[#allocation2 + $0x58] sm:$0xff] %v1174
        %1257 = vst [vmem:[#allocation2 + $0x60] sm:$0xff] %v1175
        %1258 = vst [vmem:[#allocation2 + $0x68] sm:$0xff] %v1176
        %1259 = vst [vmem:[#allocation2 + $0x70] sm:$0xff] %v1177
        %1260 = vst [vmem:[#allocation2 + $0x78] sm:$0xff] %v1178
        %1261 = vst [vmem:[#allocation2 + $0x80] sm:$0xff] %v1179
        %1262 = vst [vmem:[#allocation2 + $0x88] sm:$0xff] %v1180
        %1263 = vst [vmem:[#allocation2 + $0x90] sm:$0xff] %v1181
        %1264 = vst [vmem:[#allocation2 + $0x98] sm:$0xff] %v1182
        %1265 = vst [vmem:[#allocation2 + $0xa0] sm:$0xff] %v1183
        %1266 = vst [vmem:[#allocation2 + $0xa8] sm:$0xff] %v1184
        %1267 = vst [vmem:[#allocation2 + $0xb0] sm:$0xff] %v1185
        %1268 = vst [vmem:[#allocation2 + $0xb8] sm:$0xff] %v1186
        %1269 = vst [vmem:[#allocation2 + $0xc0] sm:$0xff] %v1187
        %1270 = vst [vmem:[#allocation2 + $0xc8] sm:$0xff] %v1188
        %1271 = vst [vmem:[#allocation2 + $0xd0] sm:$0xff] %v1189
        %1272 = vst [vmem:[#allocation2 + $0xd8] sm:$0xff] %v1190
        %1273 = vst [vmem:[#allocation2 + $0xe0] sm:$0xff] %v1191
        %1274 = vst [vmem:[#allocation2 + $0xe8] sm:$0xff] %v1192
        %1275 = vst [vmem:[#allocation2 + $0xf0] sm:$0xff] %v1193
        %1276 = vst [vmem:[#allocation2 + $0xf8] sm:$0xff] %v1194
        %1277 = vst [vmem:[#allocation2 + $0x100] sm:$0xff] %v1195
        %1278 = vst [vmem:[#allocation2 + $0x108] sm:$0xff] %v1196
        %1279 = vst [vmem:[#allocation2 + $0x110] sm:$0xff] %v1197
        %1280 = vst [vmem:[#allocation2 + $0x118] sm:$0xff] %v1198
        %1281 = vst [vmem:[#allocation2 + $0x120] sm:$0xff] %v1199
        %1282 = vst [vmem:[#allocation2 + $0x128] sm:$0xff] %v1200
        %1283 = vst [vmem:[#allocation2 + $0x130] sm:$0xff] %v1201
        %1284 = vst [vmem:[#allocation2 + $0x138] sm:$0xff] %v1202
        %1285 = vst [vmem:[#allocation2 + $0x140] sm:$0xf] %v1203
        %v1286 = vld [vmem:[#allocation2] sm:$0xff]
        %v1287 = vld [vmem:[#allocation2 + $0x8] sm:$0xff]
        %v1288 = vld [vmem:[#allocation2 + $0x10] sm:$0xff]
        %v1289 = vld [vmem:[#allocation2 + $0x18] sm:$0xff]
        %v1290 = vld [vmem:[#allocation2 + $0x20] sm:$0xff]
        %v1291 = vld [vmem:[#allocation2 + $0x28] sm:$0xff]
        %v1292 = vld [vmem:[#allocation2 + $0x30] sm:$0xff]
        %v1293 = vld [vmem:[#allocation2 + $0x38] sm:$0xff]
        %v1294 = vld [vmem:[#allocation2 + $0x40] sm:$0xff]
        %v1295 = vld [vmem:[#allocation2 + $0x48] sm:$0xff]
        %v1296 = vld [vmem:[#allocation2 + $0x50] sm:$0xff]
        %v1297 = vld [vmem:[#allocation2 + $0x58] sm:$0xff]
        %v1298 = vld [vmem:[#allocation2 + $0x60] sm:$0xff]
        %v1299 = vld [vmem:[#allocation2 + $0x68] sm:$0xff]
        %v1300 = vld [vmem:[#allocation2 + $0x70] sm:$0xff]
        %v1301 = vld [vmem:[#allocation2 + $0x78] sm:$0xff]
        %v1302 = vld [vmem:[#allocation2 + $0x80] sm:$0xff]
        %v1303 = vld [vmem:[#allocation2 + $0x88] sm:$0xff]
        %v1304 = vld [vmem:[#allocation2 + $0x90] sm:$0xff]
        %v1305 = vld [vmem:[#allocation2 + $0x98] sm:$0xff]
        %v1306 = vld [vmem:[#allocation2 + $0xa0] sm:$0xff]
        %v1307 = vld [vmem:[#allocation2 + $0xa8] sm:$0xff]
        %v1308 = vld [vmem:[#allocation2 + $0xb0] sm:$0xff]
        %v1309 = vld [vmem:[#allocation2 + $0xb8] sm:$0xff]
        %v1310 = vld [vmem:[#allocation2 + $0xc0] sm:$0xff]
        %v1311 = vld [vmem:[#allocation2 + $0xc8] sm:$0xff]
        %v1312 = vld [vmem:[#allocation2 + $0xd0] sm:$0xff]
        %v1313 = vld [vmem:[#allocation2 + $0xd8] sm:$0xff]
        %v1314 = vld [vmem:[#allocation2 + $0xe0] sm:$0xff]
        %v1315 = vld [vmem:[#allocation2 + $0xe8] sm:$0xff]
        %v1316 = vld [vmem:[#allocation2 + $0xf0] sm:$0xff]
        %v1317 = vld [vmem:[#allocation2 + $0xf8] sm:$0xff]
        %v1318 = vld [vmem:[#allocation2 + $0x100] sm:$0xff]
        %v1319 = vld [vmem:[#allocation2 + $0x108] sm:$0xff]
        %v1320 = vld [vmem:[#allocation2 + $0x110] sm:$0xff]
        %v1321 = vld [vmem:[#allocation2 + $0x118] sm:$0xff]
        %v1322 = vld [vmem:[#allocation3] sm:$0xff]
        %v1323 = vld [vmem:[#allocation3 + $0x8] sm:$0xff]
        %v1324 = vld [vmem:[#allocation3 + $0x10] sm:$0xff]
        %v1325 = vld [vmem:[#allocation3 + $0x18] sm:$0xff]
        %v1326 = vld [vmem:[#allocation3 + $0x20] sm:$0xff]
        %v1327 = vld [vmem:[#allocation3 + $0x28] sm:$0xff]
        %v1328 = vld [vmem:[#allocation3 + $0x30] sm:$0xff]
        %v1329 = vld [vmem:[#allocation3 + $0x38] sm:$0xff]
        %v1330 = vld [vmem:[#allocation3 + $0x40] sm:$0xff]
        %v1331 = vld [vmem:[#allocation3 + $0x48] sm:$0xff]
        %v1332 = vld [vmem:[#allocation3 + $0x50] sm:$0xff]
        %v1333 = vld [vmem:[#allocation3 + $0x58] sm:$0xff]
        %v1334 = vld [vmem:[#allocation3 + $0x60] sm:$0xff]
        %v1335 = vld [vmem:[#allocation3 + $0x68] sm:$0xff]
        %v1336 = vld [vmem:[#allocation3 + $0x70] sm:$0xff]
        %v1337 = vld [vmem:[#allocation3 + $0x78] sm:$0xff]
        %1338 = vmatprep.subr.mxu0 0.0
        %1339 = vmatpush1.msra.mxu0 %v1322
        %1340 = vmatprep.subr.mxu0 0.0
        %1341 = vmatpush1.msra.mxu0 %v1323
        %1342 = vmatprep.subr.mxu0 0.0
        %1343 = vmatpush1.msra.mxu0 %v1324
        %1344 = vmatprep.subr.mxu0 0.0
        %1345 = vmatpush1.msra.mxu0 %v1325
        %1346 = vmatprep.subr.mxu0 0.0
        %1347 = vmatpush1.msra.mxu0 %v1326
        %1348 = vmatprep.subr.mxu0 0.0
        %1349 = vmatpush1.msra.mxu0 %v1327
        %1350 = vmatprep.subr.mxu0 0.0
        %1351 = vmatpush1.msra.mxu0 %v1328
        %1352 = vmatprep.subr.mxu0 0.0
        %1353 = vmatpush1.msra.mxu0 %v1329
        %1354 = vmatprep.subr.mxu0 0.0
        %1355 = vmatpush1.msra.mxu0 %v1330
        %1356 = vmatprep.subr.mxu0 0.0
        %1357 = vmatpush1.msra.mxu0 %v1331
        %1358 = vmatprep.subr.mxu0 0.0
        %1359 = vmatpush1.msra.mxu0 %v1332
        %1360 = vmatprep.subr.mxu0 0.0
        %1361 = vmatpush1.msra.mxu0 %v1333
        %1362 = vmatprep.subr.mxu0 0.0
        %1363 = vmatpush1.msra.mxu0 %v1334
        %1364 = vmatprep.subr.mxu0 0.0
        %1365 = vmatpush1.msra.mxu0 %v1335
        %1366 = vmatprep.subr.mxu0 0.0
        %1367 = vmatpush1.msra.mxu0 %v1336
        %1368 = vmatprep.subr.mxu0 0.0
        %1369 = vmatpush1.msra.mxu0 %v1337
        %1370 = vmatprep.subr.mxu0 0.0
        %1371 = vmatpush1.msra.mxu0 0.0
        %1372 = vmatprep.subr.mxu0 0.0
        %1373 = vmatpush1.msra.mxu0 0.0
        %1374 = vmatprep.subr.mxu0 0.0
        %1375 = vmatpush1.msra.mxu0 0.0
        %1376 = vmatprep.subr.mxu0 0.0
        %1377 = vmatpush1.msra.mxu0 0.0
        %1378 = vmatprep.subr.mxu0 0.0
        %1379 = vmatpush1.msra.mxu0 0.0
        %1380 = vmatprep.subr.mxu0 0.0
        %1381 = vmatpush1.msra.mxu0 0.0
        %1382 = vmatprep.subr.mxu0 0.0
        %1383 = vmatpush1.msra.mxu0 0.0
        %1384 = vmatprep.subr.mxu0 0.0
        %1385 = vmatpush1.msra.mxu0 0.0
        %1386 = vmatprep.subr.mxu0 0.0
        %1387 = vmatpush1.msra.mxu0 0.0
        %1388 = vmatprep.subr.mxu0 0.0
        %1389 = vmatpush1.msra.mxu0 0.0
        %1390 = vmatprep.subr.mxu0 0.0
        %1391 = vmatpush1.msra.mxu0 0.0
        %1392 = vmatprep.subr.mxu0 0.0
        %1393 = vmatpush1.msra.mxu0 0.0
        %1394 = vmatprep.subr.mxu0 0.0
        %1395 = vmatpush1.msra.mxu0 0.0
        %1396 = vmatprep.subr.mxu0 0.0
        %1397 = vmatpush1.msra.mxu0 0.0
        %1398 = vmatprep.subr.mxu0 0.0
        %1399 = vmatpush1.msra.mxu0 0.0
        %1400 = vmatprep.subr.mxu0 0.0
        %1401 = vmatpush1.msra.mxu0 0.0
        %1402 = vmatprep.mubr.f32.mxu0 0.0
        %1403 = vmatmul.mubr.f32.gmra.mrb[0].mxu0 %v1286
        %v1404 = vpop.f32.mrb[0].mxu0
        %v1405 = vadd.f32 0.0, %v1404
        %v1406 = vpop.f32.mrb[0].mxu0
        %1407 = vmatprep.mubr.f32.mxu0 0.0
        %1408 = vmatmul.mubr.f32.gmra.mrb[0].mxu0 %v1287
        %v1409 = vpop.f32.mrb[0].mxu0
        %v1410 = vadd.f32 0.0, %v1409
        %v1411 = vpop.f32.mrb[0].mxu0
        %1412 = vmatprep.mubr.f32.mxu0 0.0
        %1413 = vmatmul.mubr.f32.gmra.mrb[0].mxu0 %v1288
        %v1414 = vpop.f32.mrb[0].mxu0
        %v1415 = vadd.f32 0.0, %v1414
        %v1416 = vpop.f32.mrb[0].mxu0
        %1417 = vmatprep.mubr.f32.mxu0 0.0
        %1418 = vmatmul.mubr.f32.gmra.mrb[0].mxu0 %v1289
        %v1419 = vpop.f32.mrb[0].mxu0
        %v1420 = vadd.f32 0.0, %v1419
        %v1421 = vpop.f32.mrb[0].mxu0
        %1422 = vmatprep.mubr.f32.mxu0 0.0
        %1423 = vmatmul.mubr.f32.gmra.mrb[0].mxu0 %v1290
        %v1424 = vpop.f32.mrb[0].mxu0
        %v1425 = vadd.f32 0.0, %v1424
        %v1426 = vpop.f32.mrb[0].mxu0
        %1427 = vmatprep.mubr.f32.mxu0 0.0
        %1428 = vmatmul.mubr.f32.gmra.mrb[0].mxu0 %v1291
        %v1429 = vpop.f32.mrb[0].mxu0
        %v1430 = vadd.f32 0.0, %v1429
        %v1431 = vpop.f32.mrb[0].mxu0
        %1432 = vmatprep.mubr.f32.mxu0 0.0
        %1433 = vmatmul.mubr.f32.gmra.mrb[0].mxu0 %v1292
        %v1434 = vpop.f32.mrb[0].mxu0
        %v1435 = vadd.f32 0.0, %v1434
        %v1436 = vpop.f32.mrb[0].mxu0
        %1437 = vmatprep.mubr.f32.mxu0 0.0
        %1438 = vmatmul.mubr.f32.gmra.mrb[0].mxu0 %v1293
        %v1439 = vpop.f32.mrb[0].mxu0
        %v1440 = vadd.f32 0.0, %v1439
        %v1441 = vpop.f32.mrb[0].mxu0
        %1442 = vmatprep.mubr.f32.mxu0 0.0
        %1443 = vmatmul.mubr.f32.gmra.mrb[0].mxu0 %v1294
        %v1444 = vpop.f32.mrb[0].mxu0
        %v1445 = vadd.f32 0.0, %v1444
        %v1446 = vpop.f32.mrb[0].mxu0
        %1447 = vmatprep.mubr.f32.mxu0 0.0
        %1448 = vmatmul.mubr.f32.gmra.mrb[0].mxu0 %v1295
        %v1449 = vpop.f32.mrb[0].mxu0
        %v1450 = vadd.f32 0.0, %v1449
        %v1451 = vpop.f32.mrb[0].mxu0
        %1452 = vmatprep.mubr.f32.mxu0 0.0
        %1453 = vmatmul.mubr.f32.gmra.mrb[0].mxu0 %v1296
        %v1454 = vpop.f32.mrb[0].mxu0
        %v1455 = vadd.f32 0.0, %v1454
        %v1456 = vpop.f32.mrb[0].mxu0
        %1457 = vmatprep.mubr.f32.mxu0 0.0
        %1458 = vmatmul.mubr.f32.gmra.mrb[0].mxu0 %v1297
        %v1459 = vpop.f32.mrb[0].mxu0
        %v1460 = vadd.f32 0.0, %v1459
        %v1461 = vpop.f32.mrb[0].mxu0
        %1462 = vmatprep.mubr.f32.mxu0 0.0
        %1463 = vmatmul.mubr.f32.gmra.mrb[0].mxu0 %v1298
        %v1464 = vpop.f32.mrb[0].mxu0
        %v1465 = vadd.f32 0.0, %v1464
        %v1466 = vpop.f32.mrb[0].mxu0
        %1467 = vmatprep.mubr.f32.mxu0 0.0
        %1468 = vmatmul.mubr.f32.gmra.mrb[0].mxu0 %v1299
        %v1469 = vpop.f32.mrb[0].mxu0
        %v1470 = vadd.f32 0.0, %v1469
        %v1471 = vpop.f32.mrb[0].mxu0
        %1472 = vmatprep.mubr.f32.mxu0 0.0
        %1473 = vmatmul.mubr.f32.gmra.mrb[0].mxu0 %v1300
        %v1474 = vpop.f32.mrb[0].mxu0
        %v1475 = vadd.f32 0.0, %v1474
        %v1476 = vpop.f32.mrb[0].mxu0
        %1477 = vmatprep.mubr.f32.mxu0 0.0
        %1478 = vmatmul.mubr.f32.gmra.mrb[0].mxu0 %v1301
        %v1479 = vpop.f32.mrb[0].mxu0
        %v1480 = vadd.f32 0.0, %v1479
        %v1481 = vpop.f32.mrb[0].mxu0
        %1482 = vmatprep.mubr.f32.mxu0 0.0
        %1483 = vmatmul.mubr.f32.gmra.mrb[0].mxu0 %v1302
        %v1484 = vpop.f32.mrb[0].mxu0
        %v1485 = vadd.f32 0.0, %v1484
        %v1486 = vpop.f32.mrb[0].mxu0
        %1487 = vmatprep.mubr.f32.mxu0 0.0
        %1488 = vmatmul.mubr.f32.gmra.mrb[0].mxu0 %v1303
        %v1489 = vpop.f32.mrb[0].mxu0
        %v1490 = vadd.f32 0.0, %v1489
        %v1491 = vpop.f32.mrb[0].mxu0
        %1492 = vmatprep.mubr.f32.mxu0 0.0
        %1493 = vmatmul.mubr.f32.gmra.mrb[0].mxu0 %v1304
        %v1494 = vpop.f32.mrb[0].mxu0
        %v1495 = vadd.f32 0.0, %v1494
        %v1496 = vpop.f32.mrb[0].mxu0
        %1497 = vmatprep.mubr.f32.mxu0 0.0
        %1498 = vmatmul.mubr.f32.gmra.mrb[0].mxu0 %v1305
        %v1499 = vpop.f32.mrb[0].mxu0
        %v1500 = vadd.f32 0.0, %v1499
        %v1501 = vpop.f32.mrb[0].mxu0
        %1502 = vmatprep.mubr.f32.mxu0 0.0
        %1503 = vmatmul.mubr.f32.gmra.mrb[0].mxu0 %v1306
        %v1504 = vpop.f32.mrb[0].mxu0
        %v1505 = vadd.f32 0.0, %v1504
        %v1506 = vpop.f32.mrb[0].mxu0
        %1507 = vmatprep.mubr.f32.mxu0 0.0
        %1508 = vmatmul.mubr.f32.gmra.mrb[0].mxu0 %v1307
        %v1509 = vpop.f32.mrb[0].mxu0
        %v1510 = vadd.f32 0.0, %v1509
        %v1511 = vpop.f32.mrb[0].mxu0
        %1512 = vmatprep.mubr.f32.mxu0 0.0
        %1513 = vmatmul.mubr.f32.gmra.mrb[0].mxu0 %v1308
        %v1514 = vpop.f32.mrb[0].mxu0
        %v1515 = vadd.f32 0.0, %v1514
        %v1516 = vpop.f32.mrb[0].mxu0
        %1517 = vmatprep.mubr.f32.mxu0 0.0
        %1518 = vmatmul.mubr.f32.gmra.mrb[0].mxu0 %v1309
        %v1519 = vpop.f32.mrb[0].mxu0
        %v1520 = vadd.f32 0.0, %v1519
        %v1521 = vpop.f32.mrb[0].mxu0
        %1522 = vmatprep.mubr.f32.mxu0 0.0
        %1523 = vmatmul.mubr.f32.gmra.mrb[0].mxu0 %v1310
        %v1524 = vpop.f32.mrb[0].mxu0
        %v1525 = vadd.f32 0.0, %v1524
        %v1526 = vpop.f32.mrb[0].mxu0
        %1527 = vmatprep.mubr.f32.mxu0 0.0
        %1528 = vmatmul.mubr.f32.gmra.mrb[0].mxu0 %v1311
        %v1529 = vpop.f32.mrb[0].mxu0
        %v1530 = vadd.f32 0.0, %v1529
        %v1531 = vpop.f32.mrb[0].mxu0
        %1532 = vmatprep.mubr.f32.mxu0 0.0
        %1533 = vmatmul.mubr.f32.gmra.mrb[0].mxu0 %v1312
        %v1534 = vpop.f32.mrb[0].mxu0
        %v1535 = vadd.f32 0.0, %v1534
        %v1536 = vpop.f32.mrb[0].mxu0
        %1537 = vmatprep.mubr.f32.mxu0 0.0
        %1538 = vmatmul.mubr.f32.gmra.mrb[0].mxu0 %v1313
        %v1539 = vpop.f32.mrb[0].mxu0
        %v1540 = vadd.f32 0.0, %v1539
        %v1541 = vpop.f32.mrb[0].mxu0
        %1542 = vmatprep.mubr.f32.mxu0 0.0
        %1543 = vmatmul.mubr.f32.gmra.mrb[0].mxu0 %v1314
        %v1544 = vpop.f32.mrb[0].mxu0
        %v1545 = vadd.f32 0.0, %v1544
        %v1546 = vpop.f32.mrb[0].mxu0
        %1547 = vmatprep.mubr.f32.mxu0 0.0
        %1548 = vmatmul.mubr.f32.gmra.mrb[0].mxu0 %v1315
        %v1549 = vpop.f32.mrb[0].mxu0
        %v1550 = vadd.f32 0.0, %v1549
        %v1551 = vpop.f32.mrb[0].mxu0
        %1552 = vmatprep.mubr.f32.mxu0 0.0
        %1553 = vmatmul.mubr.f32.gmra.mrb[0].mxu0 %v1316
        %v1554 = vpop.f32.mrb[0].mxu0
        %v1555 = vadd.f32 0.0, %v1554
        %v1556 = vpop.f32.mrb[0].mxu0
        %1557 = vmatprep.mubr.f32.mxu0 0.0
        %1558 = vmatmul.mubr.f32.gmra.mrb[0].mxu0 %v1317
        %v1559 = vpop.f32.mrb[0].mxu0
        %v1560 = vadd.f32 0.0, %v1559
        %v1561 = vpop.f32.mrb[0].mxu0
        %1562 = vmatprep.mubr.f32.mxu0 0.0
        %1563 = vmatmul.mubr.f32.gmra.mrb[0].mxu0 %v1318
        %v1564 = vpop.f32.mrb[0].mxu0
        %v1565 = vadd.f32 0.0, %v1564
        %v1566 = vpop.f32.mrb[0].mxu0
        %1567 = vmatprep.mubr.f32.mxu0 0.0
        %1568 = vmatmul.mubr.f32.gmra.mrb[0].mxu0 %v1319
        %v1569 = vpop.f32.mrb[0].mxu0
        %v1570 = vadd.f32 0.0, %v1569
        %v1571 = vpop.f32.mrb[0].mxu0
        %1572 = vmatprep.mubr.f32.mxu0 0.0
        %1573 = vmatmul.mubr.f32.gmra.mrb[0].mxu0 %v1320
        %v1574 = vpop.f32.mrb[0].mxu0
        %v1575 = vadd.f32 0.0, %v1574
        %v1576 = vpop.f32.mrb[0].mxu0
        %1577 = vmatprep.mubr.f32.mxu0 0.0
        %1578 = vmatmul.mubr.f32.gmra.mrb[0].mxu0 %v1321
        %v1579 = vpop.f32.mrb[0].mxu0
        %v1580 = vadd.f32 0.0, %v1579
        %v1581 = vpop.f32.mrb[0].mxu0
        %1582 = vdwg.mxu0
        %1583 = vst [vmem:[%s286] sm:$0xff] %v1405
        %1584 = vst [vmem:[%s286 + $0x8] sm:$0xff] %v1410
        %1585 = vst [vmem:[%s286 + $0x10] sm:$0xff] %v1415
        %1586 = vst [vmem:[%s286 + $0x18] sm:$0xff] %v1420
        %1587 = vst [vmem:[%s286 + $0x20] sm:$0xff] %v1425
        %1588 = vst [vmem:[%s286 + $0x28] sm:$0xff] %v1430
        %1589 = vst [vmem:[%s286 + $0x30] sm:$0xff] %v1435
        %1590 = vst [vmem:[%s286 + $0x38] sm:$0xff] %v1440
        %1591 = vst [vmem:[%s286 + $0x40] sm:$0xff] %v1445
        %1592 = vst [vmem:[%s286 + $0x48] sm:$0xff] %v1450
        %1593 = vst [vmem:[%s286 + $0x50] sm:$0xff] %v1455
        %1594 = vst [vmem:[%s286 + $0x58] sm:$0xff] %v1460
        %1595 = vst [vmem:[%s286 + $0x60] sm:$0xff] %v1465
        %1596 = vst [vmem:[%s286 + $0x68] sm:$0xff] %v1470
        %1597 = vst [vmem:[%s286 + $0x70] sm:$0xff] %v1475
        %1598 = vst [vmem:[%s286 + $0x78] sm:$0xff] %v1480
        %1599 = vst [vmem:[%s286 + $0x80] sm:$0xff] %v1485
        %1600 = vst [vmem:[%s286 + $0x88] sm:$0xff] %v1490
        %1601 = vst [vmem:[%s286 + $0x90] sm:$0xff] %v1495
        %1602 = vst [vmem:[%s286 + $0x98] sm:$0xff] %v1500
        %1603 = vst [vmem:[%s286 + $0xa0] sm:$0xff] %v1505
        %1604 = vst [vmem:[%s286 + $0xa8] sm:$0xff] %v1510
        %1605 = vst [vmem:[%s286 + $0xb0] sm:$0xff] %v1515
        %1606 = vst [vmem:[%s286 + $0xb8] sm:$0xff] %v1520
        %1607 = vst [vmem:[%s286 + $0xc0] sm:$0xff] %v1525
        %1608 = vst [vmem:[%s286 + $0xc8] sm:$0xff] %v1530
        %1609 = vst [vmem:[%s286 + $0xd0] sm:$0xff] %v1535
        %1610 = vst [vmem:[%s286 + $0xd8] sm:$0xff] %v1540
        %1611 = vst [vmem:[%s286 + $0xe0] sm:$0xff] %v1545
        %1612 = vst [vmem:[%s286 + $0xe8] sm:$0xff] %v1550
        %1613 = vst [vmem:[%s286 + $0xf0] sm:$0xff] %v1555
        %1614 = vst [vmem:[%s286 + $0xf8] sm:$0xff] %v1560
        %1615 = vst [vmem:[%s286 + $0x100] sm:$0xff] %v1565
        %1616 = vst [vmem:[%s286 + $0x108] sm:$0xff] %v1570
        %1617 = vst [vmem:[%s286 + $0x110] sm:$0xff] %v1575
        %1618 = vst [vmem:[%s286 + $0x118] sm:$0xff] %v1580
        %v1619 = vld [vmem:[#allocation2 + $0x1] sm:$0xff]
        %v1620 = vld [vmem:[#allocation2 + $0x9] sm:$0xff]
        %v1621 = vld [vmem:[#allocation2 + $0x11] sm:$0xff]
        %v1622 = vld [vmem:[#allocation2 + $0x19] sm:$0xff]
        %v1623 = vld [vmem:[#allocation2 + $0x21] sm:$0xff]
        %v1624 = vld [vmem:[#allocation2 + $0x29] sm:$0xff]
        %v1625 = vld [vmem:[#allocation2 + $0x31] sm:$0xff]
        %v1626 = vld [vmem:[#allocation2 + $0x39] sm:$0xff]
        %v1627 = vld [vmem:[#allocation2 + $0x41] sm:$0xff]
        %v1628 = vld [vmem:[#allocation2 + $0x49] sm:$0xff]
        %v1629 = vld [vmem:[#allocation2 + $0x51] sm:$0xff]
        %v1630 = vld [vmem:[#allocation2 + $0x59] sm:$0xff]
        %v1631 = vld [vmem:[#allocation2 + $0x61] sm:$0xff]
        %v1632 = vld [vmem:[#allocation2 + $0x69] sm:$0xff]
        %v1633 = vld [vmem:[#allocation2 + $0x71] sm:$0xff]
        %v1634 = vld [vmem:[#allocation2 + $0x79] sm:$0xff]
        %v1635 = vld [vmem:[#allocation2 + $0x81] sm:$0xff]
        %v1636 = vld [vmem:[#allocation2 + $0x89] sm:$0xff]
        %v1637 = vld [vmem:[#allocation2 + $0x91] sm:$0xff]
        %v1638 = vld [vmem:[#allocation2 + $0x99] sm:$0xff]
        %v1639 = vld [vmem:[#allocation2 + $0xa1] sm:$0xff]
        %v1640 = vld [vmem:[#allocation2 + $0xa9] sm:$0xff]
        %v1641 = vld [vmem:[#allocation2 + $0xb1] sm:$0xff]
        %v1642 = vld [vmem:[#allocation2 + $0xb9] sm:$0xff]
        %v1643 = vld [vmem:[#allocation2 + $0xc1] sm:$0xff]
        %v1644 = vld [vmem:[#allocation2 + $0xc9] sm:$0xff]
        %v1645 = vld [vmem:[#allocation2 + $0xd1] sm:$0xff]
        %v1646 = vld [vmem:[#allocation2 + $0xd9] sm:$0xff]
        %v1647 = vld [vmem:[#allocation2 + $0xe1] sm:$0xff]
        %v1648 = vld [vmem:[#allocation2 + $0xe9] sm:$0xff]
        %v1649 = vld [vmem:[#allocation2 + $0xf1] sm:$0xff]
        %v1650 = vld [vmem:[#allocation2 + $0xf9] sm:$0xff]
        %v1651 = vld [vmem:[#allocation2 + $0x101] sm:$0xff]
        %v1652 = vld [vmem:[#allocation2 + $0x109] sm:$0xff]
        %v1653 = vld [vmem:[#allocation2 + $0x111] sm:$0xff]
        %v1654 = vld [vmem:[#allocation2 + $0x119] sm:$0xff]
        %s1655 = scalar_lea.vmem [#allocation3], 128
        %v1656 = vld [vmem:[%s1655] sm:$0xff]
        %v1657 = vld [vmem:[%s1655 + $0x8] sm:$0xff]
        %v1658 = vld [vmem:[%s1655 + $0x10] sm:$0xff]
        %v1659 = vld [vmem:[%s1655 + $0x18] sm:$0xff]
        %v1660 = vld [vmem:[%s1655 + $0x20] sm:$0xff]
        %v1661 = vld [vmem:[%s1655 + $0x28] sm:$0xff]
        %v1662 = vld [vmem:[%s1655 + $0x30] sm:$0xff]
        %v1663 = vld [vmem:[%s1655 + $0x38] sm:$0xff]
        %v1664 = vld [vmem:[%s1655 + $0x40] sm:$0xff]
        %v1665 = vld [vmem:[%s1655 + $0x48] sm:$0xff]
        %v1666 = vld [vmem:[%s1655 + $0x50] sm:$0xff]
        %v1667 = vld [vmem:[%s1655 + $0x58] sm:$0xff]
        %v1668 = vld [vmem:[%s1655 + $0x60] sm:$0xff]
        %v1669 = vld [vmem:[%s1655 + $0x68] sm:$0xff]
        %v1670 = vld [vmem:[%s1655 + $0x70] sm:$0xff]
        %v1671 = vld [vmem:[%s1655 + $0x78] sm:$0xff]
        %1672 = vmatprep.subr.mxu0 0.0
        %1673 = vmatpush1.msra.mxu0 %v1656
        %1674 = vmatprep.subr.mxu0 0.0
        %1675 = vmatpush1.msra.mxu0 %v1657
        %1676 = vmatprep.subr.mxu0 0.0
        %1677 = vmatpush1.msra.mxu0 %v1658
        %1678 = vmatprep.subr.mxu0 0.0
        %1679 = vmatpush1.msra.mxu0 %v1659
        %1680 = vmatprep.subr.mxu0 0.0
        %1681 = vmatpush1.msra.mxu0 %v1660
        %1682 = vmatprep.subr.mxu0 0.0
        %1683 = vmatpush1.msra.mxu0 %v1661
        %1684 = vmatprep.subr.mxu0 0.0
        %1685 = vmatpush1.msra.mxu0 %v1662
        %1686 = vmatprep.subr.mxu0 0.0
        %1687 = vmatpush1.msra.mxu0 %v1663
        %1688 = vmatprep.subr.mxu0 0.0
        %1689 = vmatpush1.msra.mxu0 %v1664
        %1690 = vmatprep.subr.mxu0 0.0
        %1691 = vmatpush1.msra.mxu0 %v1665
        %1692 = vmatprep.subr.mxu0 0.0
        %1693 = vmatpush1.msra.mxu0 %v1666
        %1694 = vmatprep.subr.mxu0 0.0
        %1695 = vmatpush1.msra.mxu0 %v1667
        %1696 = vmatprep.subr.mxu0 0.0
        %1697 = vmatpush1.msra.mxu0 %v1668
        %1698 = vmatprep.subr.mxu0 0.0
        %1699 = vmatpush1.msra.mxu0 %v1669
        %1700 = vmatprep.subr.mxu0 0.0
        %1701 = vmatpush1.msra.mxu0 %v1670
        %1702 = vmatprep.subr.mxu0 0.0
        %1703 = vmatpush1.msra.mxu0 %v1671
        %1704 = vmatprep.subr.mxu0 0.0
        %1705 = vmatpush1.msra.mxu0 0.0
        %1706 = vmatprep.subr.mxu0 0.0
        %1707 = vmatpush1.msra.mxu0 0.0
        %1708 = vmatprep.subr.mxu0 0.0
        %1709 = vmatpush1.msra.mxu0 0.0
        %1710 = vmatprep.subr.mxu0 0.0
        %1711 = vmatpush1.msra.mxu0 0.0
        %1712 = vmatprep.subr.mxu0 0.0
        %1713 = vmatpush1.msra.mxu0 0.0
        %1714 = vmatprep.subr.mxu0 0.0
        %1715 = vmatpush1.msra.mxu0 0.0
        %1716 = vmatprep.subr.mxu0 0.0
        %1717 = vmatpush1.msra.mxu0 0.0
        %1718 = vmatprep.subr.mxu0 0.0
        %1719 = vmatpush1.msra.mxu0 0.0
        %1720 = vmatprep.subr.mxu0 0.0
        %1721 = vmatpush1.msra.mxu0 0.0
        %1722 = vmatprep.subr.mxu0 0.0
        %1723 = vmatpush1.msra.mxu0 0.0
        %1724 = vmatprep.subr.mxu0 0.0
        %1725 = vmatpush1.msra.mxu0 0.0
        %1726 = vmatprep.subr.mxu0 0.0
        %1727 = vmatpush1.msra.mxu0 0.0
        %1728 = vmatprep.subr.mxu0 0.0
        %1729 = vmatpush1.msra.mxu0 0.0
        %1730 = vmatprep.subr.mxu0 0.0
        %1731 = vmatpush1.msra.mxu0 0.0
        %1732 = vmatprep.subr.mxu0 0.0
        %1733 = vmatpush1.msra.mxu0 0.0
        %1734 = vmatprep.subr.mxu0 0.0
        %1735 = vmatpush1.msra.mxu0 0.0
        %1736 = vmatprep.mubr.f32.mxu0 0.0
        %1737 = vmatmul.mubr.f32.gmra.mrb[0].mxu0 %v1619
        %v1738 = vpop.f32.mrb[0].mxu0
        %v1739 = vadd.f32 0.0, %v1738
        %v1740 = vpop.f32.mrb[0].mxu0
        %1741 = vmatprep.mubr.f32.mxu0 0.0
        %1742 = vmatmul.mubr.f32.gmra.mrb[0].mxu0 %v1620
        %v1743 = vpop.f32.mrb[0].mxu0
        %v1744 = vadd.f32 0.0, %v1743
        %v1745 = vpop.f32.mrb[0].mxu0
        %1746 = vmatprep.mubr.f32.mxu0 0.0
        %1747 = vmatmul.mubr.f32.gmra.mrb[0].mxu0 %v1621
        %v1748 = vpop.f32.mrb[0].mxu0
        %v1749 = vadd.f32 0.0, %v1748
        %v1750 = vpop.f32.mrb[0].mxu0
        %1751 = vmatprep.mubr.f32.mxu0 0.0
        %1752 = vmatmul.mubr.f32.gmra.mrb[0].mxu0 %v1622
        %v1753 = vpop.f32.mrb[0].mxu0
        %v1754 = vadd.f32 0.0, %v1753
        %v1755 = vpop.f32.mrb[0].mxu0
        %1756 = vmatprep.mubr.f32.mxu0 0.0
        %1757 = vmatmul.mubr.f32.gmra.mrb[0].mxu0 %v1623
        %v1758 = vpop.f32.mrb[0].mxu0
        %v1759 = vadd.f32 0.0, %v1758
        %v1760 = vpop.f32.mrb[0].mxu0
        %1761 = vmatprep.mubr.f32.mxu0 0.0
        %1762 = vmatmul.mubr.f32.gmra.mrb[0].mxu0 %v1624
        %v1763 = vpop.f32.mrb[0].mxu0
        %v1764 = vadd.f32 0.0, %v1763
        %v1765 = vpop.f32.mrb[0].mxu0
        %1766 = vmatprep.mubr.f32.mxu0 0.0
        %1767 = vmatmul.mubr.f32.gmra.mrb[0].mxu0 %v1625
        %v1768 = vpop.f32.mrb[0].mxu0
        %v1769 = vadd.f32 0.0, %v1768
        %v1770 = vpop.f32.mrb[0].mxu0
        %1771 = vmatprep.mubr.f32.mxu0 0.0
        %1772 = vmatmul.mubr.f32.gmra.mrb[0].mxu0 %v1626
        %v1773 = vpop.f32.mrb[0].mxu0
        %v1774 = vadd.f32 0.0, %v1773
        %v1775 = vpop.f32.mrb[0].mxu0
        %1776 = vmatprep.mubr.f32.mxu0 0.0
        %1777 = vmatmul.mubr.f32.gmra.mrb[0].mxu0 %v1627
        %v1778 = vpop.f32.mrb[0].mxu0
        %v1779 = vadd.f32 0.0, %v1778
        %v1780 = vpop.f32.mrb[0].mxu0
        %1781 = vmatprep.mubr.f32.mxu0 0.0
        %1782 = vmatmul.mubr.f32.gmra.mrb[0].mxu0 %v1628
        %v1783 = vpop.f32.mrb[0].mxu0
        %v1784 = vadd.f32 0.0, %v1783
        %v1785 = vpop.f32.mrb[0].mxu0
        %1786 = vmatprep.mubr.f32.mxu0 0.0
        %1787 = vmatmul.mubr.f32.gmra.mrb[0].mxu0 %v1629
        %v1788 = vpop.f32.mrb[0].mxu0
        %v1789 = vadd.f32 0.0, %v1788
        %v1790 = vpop.f32.mrb[0].mxu0
        %1791 = vmatprep.mubr.f32.mxu0 0.0
        %1792 = vmatmul.mubr.f32.gmra.mrb[0].mxu0 %v1630
        %v1793 = vpop.f32.mrb[0].mxu0
        %v1794 = vadd.f32 0.0, %v1793
        %v1795 = vpop.f32.mrb[0].mxu0
        %1796 = vmatprep.mubr.f32.mxu0 0.0
        %1797 = vmatmul.mubr.f32.gmra.mrb[0].mxu0 %v1631
        %v1798 = vpop.f32.mrb[0].mxu0
        %v1799 = vadd.f32 0.0, %v1798
        %v1800 = vpop.f32.mrb[0].mxu0
        %1801 = vmatprep.mubr.f32.mxu0 0.0
        %1802 = vmatmul.mubr.f32.gmra.mrb[0].mxu0 %v1632
        %v1803 = vpop.f32.mrb[0].mxu0
        %v1804 = vadd.f32 0.0, %v1803
        %v1805 = vpop.f32.mrb[0].mxu0
        %1806 = vmatprep.mubr.f32.mxu0 0.0
        %1807 = vmatmul.mubr.f32.gmra.mrb[0].mxu0 %v1633
        %v1808 = vpop.f32.mrb[0].mxu0
        %v1809 = vadd.f32 0.0, %v1808
        %v1810 = vpop.f32.mrb[0].mxu0
        %1811 = vmatprep.mubr.f32.mxu0 0.0
        %1812 = vmatmul.mubr.f32.gmra.mrb[0].mxu0 %v1634
        %v1813 = vpop.f32.mrb[0].mxu0
        %v1814 = vadd.f32 0.0, %v1813
        %v1815 = vpop.f32.mrb[0].mxu0
        %1816 = vmatprep.mubr.f32.mxu0 0.0
        %1817 = vmatmul.mubr.f32.gmra.mrb[0].mxu0 %v1635
        %v1818 = vpop.f32.mrb[0].mxu0
        %v1819 = vadd.f32 0.0, %v1818
        %v1820 = vpop.f32.mrb[0].mxu0
        %1821 = vmatprep.mubr.f32.mxu0 0.0
        %1822 = vmatmul.mubr.f32.gmra.mrb[0].mxu0 %v1636
        %v1823 = vpop.f32.mrb[0].mxu0
        %v1824 = vadd.f32 0.0, %v1823
        %v1825 = vpop.f32.mrb[0].mxu0
        %1826 = vmatprep.mubr.f32.mxu0 0.0
        %1827 = vmatmul.mubr.f32.gmra.mrb[0].mxu0 %v1637
        %v1828 = vpop.f32.mrb[0].mxu0
        %v1829 = vadd.f32 0.0, %v1828
        %v1830 = vpop.f32.mrb[0].mxu0
        %1831 = vmatprep.mubr.f32.mxu0 0.0
        %1832 = vmatmul.mubr.f32.gmra.mrb[0].mxu0 %v1638
        %v1833 = vpop.f32.mrb[0].mxu0
        %v1834 = vadd.f32 0.0, %v1833
        %v1835 = vpop.f32.mrb[0].mxu0
        %1836 = vmatprep.mubr.f32.mxu0 0.0
        %1837 = vmatmul.mubr.f32.gmra.mrb[0].mxu0 %v1639
        %v1838 = vpop.f32.mrb[0].mxu0
        %v1839 = vadd.f32 0.0, %v1838
        %v1840 = vpop.f32.mrb[0].mxu0
        %1841 = vmatprep.mubr.f32.mxu0 0.0
        %1842 = vmatmul.mubr.f32.gmra.mrb[0].mxu0 %v1640
        %v1843 = vpop.f32.mrb[0].mxu0
        %v1844 = vadd.f32 0.0, %v1843
        %v1845 = vpop.f32.mrb[0].mxu0
        %1846 = vmatprep.mubr.f32.mxu0 0.0
        %1847 = vmatmul.mubr.f32.gmra.mrb[0].mxu0 %v1641
        %v1848 = vpop.f32.mrb[0].mxu0
        %v1849 = vadd.f32 0.0, %v1848
        %v1850 = vpop.f32.mrb[0].mxu0
        %1851 = vmatprep.mubr.f32.mxu0 0.0
        %1852 = vmatmul.mubr.f32.gmra.mrb[0].mxu0 %v1642
        %v1853 = vpop.f32.mrb[0].mxu0
        %v1854 = vadd.f32 0.0, %v1853
        %v1855 = vpop.f32.mrb[0].mxu0
        %1856 = vmatprep.mubr.f32.mxu0 0.0
        %1857 = vmatmul.mubr.f32.gmra.mrb[0].mxu0 %v1643
        %v1858 = vpop.f32.mrb[0].mxu0
        %v1859 = vadd.f32 0.0, %v1858
        %v1860 = vpop.f32.mrb[0].mxu0
        %1861 = vmatprep.mubr.f32.mxu0 0.0
        %1862 = vmatmul.mubr.f32.gmra.mrb[0].mxu0 %v1644
        %v1863 = vpop.f32.mrb[0].mxu0
        %v1864 = vadd.f32 0.0, %v1863
        %v1865 = vpop.f32.mrb[0].mxu0
        %1866 = vmatprep.mubr.f32.mxu0 0.0
        %1867 = vmatmul.mubr.f32.gmra.mrb[0].mxu0 %v1645
        %v1868 = vpop.f32.mrb[0].mxu0
        %v1869 = vadd.f32 0.0, %v1868
        %v1870 = vpop.f32.mrb[0].mxu0
        %1871 = vmatprep.mubr.f32.mxu0 0.0
        %1872 = vmatmul.mubr.f32.gmra.mrb[0].mxu0 %v1646
        %v1873 = vpop.f32.mrb[0].mxu0
        %v1874 = vadd.f32 0.0, %v1873
        %v1875 = vpop.f32.mrb[0].mxu0
        %1876 = vmatprep.mubr.f32.mxu0 0.0
        %1877 = vmatmul.mubr.f32.gmra.mrb[0].mxu0 %v1647
        %v1878 = vpop.f32.mrb[0].mxu0
        %v1879 = vadd.f32 0.0, %v1878
        %v1880 = vpop.f32.mrb[0].mxu0
        %1881 = vmatprep.mubr.f32.mxu0 0.0
        %1882 = vmatmul.mubr.f32.gmra.mrb[0].mxu0 %v1648
        %v1883 = vpop.f32.mrb[0].mxu0
        %v1884 = vadd.f32 0.0, %v1883
        %v1885 = vpop.f32.mrb[0].mxu0
        %1886 = vmatprep.mubr.f32.mxu0 0.0
        %1887 = vmatmul.mubr.f32.gmra.mrb[0].mxu0 %v1649
        %v1888 = vpop.f32.mrb[0].mxu0
        %v1889 = vadd.f32 0.0, %v1888
        %v1890 = vpop.f32.mrb[0].mxu0
        %1891 = vmatprep.mubr.f32.mxu0 0.0
        %1892 = vmatmul.mubr.f32.gmra.mrb[0].mxu0 %v1650
        %v1893 = vpop.f32.mrb[0].mxu0
        %v1894 = vadd.f32 0.0, %v1893
        %v1895 = vpop.f32.mrb[0].mxu0
        %1896 = vmatprep.mubr.f32.mxu0 0.0
        %1897 = vmatmul.mubr.f32.gmra.mrb[0].mxu0 %v1651
        %v1898 = vpop.f32.mrb[0].mxu0
        %v1899 = vadd.f32 0.0, %v1898
        %v1900 = vpop.f32.mrb[0].mxu0
        %1901 = vmatprep.mubr.f32.mxu0 0.0
        %1902 = vmatmul.mubr.f32.gmra.mrb[0].mxu0 %v1652
        %v1903 = vpop.f32.mrb[0].mxu0
        %v1904 = vadd.f32 0.0, %v1903
        %v1905 = vpop.f32.mrb[0].mxu0
        %1906 = vmatprep.mubr.f32.mxu0 0.0
        %1907 = vmatmul.mubr.f32.gmra.mrb[0].mxu0 %v1653
        %v1908 = vpop.f32.mrb[0].mxu0
        %v1909 = vadd.f32 0.0, %v1908
        %v1910 = vpop.f32.mrb[0].mxu0
        %1911 = vmatprep.mubr.f32.mxu0 0.0
        %1912 = vmatmul.mubr.f32.gmra.mrb[0].mxu0 %v1654
        %v1913 = vpop.f32.mrb[0].mxu0
        %v1914 = vadd.f32 0.0, %v1913
        %v1915 = vpop.f32.mrb[0].mxu0
        %1916 = vdwg.mxu0
        %v1917 = vld [vmem:[%s286] sm:$0xff]
        %v1918 = vld [vmem:[%s286 + $0x8] sm:$0xff]
        %v1919 = vld [vmem:[%s286 + $0x10] sm:$0xff]
        %v1920 = vld [vmem:[%s286 + $0x18] sm:$0xff]
        %v1921 = vld [vmem:[%s286 + $0x20] sm:$0xff]
        %v1922 = vld [vmem:[%s286 + $0x28] sm:$0xff]
        %v1923 = vld [vmem:[%s286 + $0x30] sm:$0xff]
        %v1924 = vld [vmem:[%s286 + $0x38] sm:$0xff]
        %v1925 = vld [vmem:[%s286 + $0x40] sm:$0xff]
        %v1926 = vld [vmem:[%s286 + $0x48] sm:$0xff]
        %v1927 = vld [vmem:[%s286 + $0x50] sm:$0xff]
        %v1928 = vld [vmem:[%s286 + $0x58] sm:$0xff]
        %v1929 = vld [vmem:[%s286 + $0x60] sm:$0xff]
        %v1930 = vld [vmem:[%s286 + $0x68] sm:$0xff]
        %v1931 = vld [vmem:[%s286 + $0x70] sm:$0xff]
        %v1932 = vld [vmem:[%s286 + $0x78] sm:$0xff]
        %v1933 = vld [vmem:[%s286 + $0x80] sm:$0xff]
        %v1934 = vld [vmem:[%s286 + $0x88] sm:$0xff]
        %v1935 = vld [vmem:[%s286 + $0x90] sm:$0xff]
        %v1936 = vld [vmem:[%s286 + $0x98] sm:$0xff]
        %v1937 = vld [vmem:[%s286 + $0xa0] sm:$0xff]
        %v1938 = vld [vmem:[%s286 + $0xa8] sm:$0xff]
        %v1939 = vld [vmem:[%s286 + $0xb0] sm:$0xff]
        %v1940 = vld [vmem:[%s286 + $0xb8] sm:$0xff]
        %v1941 = vld [vmem:[%s286 + $0xc0] sm:$0xff]
        %v1942 = vld [vmem:[%s286 + $0xc8] sm:$0xff]
        %v1943 = vld [vmem:[%s286 + $0xd0] sm:$0xff]
        %v1944 = vld [vmem:[%s286 + $0xd8] sm:$0xff]
        %v1945 = vld [vmem:[%s286 + $0xe0] sm:$0xff]
        %v1946 = vld [vmem:[%s286 + $0xe8] sm:$0xff]
        %v1947 = vld [vmem:[%s286 + $0xf0] sm:$0xff]
        %v1948 = vld [vmem:[%s286 + $0xf8] sm:$0xff]
        %v1949 = vld [vmem:[%s286 + $0x100] sm:$0xff]
        %v1950 = vld [vmem:[%s286 + $0x108] sm:$0xff]
        %v1951 = vld [vmem:[%s286 + $0x110] sm:$0xff]
        %v1952 = vld [vmem:[%s286 + $0x118] sm:$0xff]
        %v1953 = vadd.f32 %v1917, %v1739
        %v1954 = vadd.f32 %v1918, %v1744
        %v1955 = vadd.f32 %v1919, %v1749
        %v1956 = vadd.f32 %v1920, %v1754
        %v1957 = vadd.f32 %v1921, %v1759
        %v1958 = vadd.f32 %v1922, %v1764
        %v1959 = vadd.f32 %v1923, %v1769
        %v1960 = vadd.f32 %v1924, %v1774
        %v1961 = vadd.f32 %v1925, %v1779
        %v1962 = vadd.f32 %v1926, %v1784
        %v1963 = vadd.f32 %v1927, %v1789
        %v1964 = vadd.f32 %v1928, %v1794
        %v1965 = vadd.f32 %v1929, %v1799
        %v1966 = vadd.f32 %v1930, %v1804
        %v1967 = vadd.f32 %v1931, %v1809
        %v1968 = vadd.f32 %v1932, %v1814
        %v1969 = vadd.f32 %v1933, %v1819
        %v1970 = vadd.f32 %v1934, %v1824
        %v1971 = vadd.f32 %v1935, %v1829
        %v1972 = vadd.f32 %v1936, %v1834
        %v1973 = vadd.f32 %v1937, %v1839
        %v1974 = vadd.f32 %v1938, %v1844
        %v1975 = vadd.f32 %v1939, %v1849
        %v1976 = vadd.f32 %v1940, %v1854
        %v1977 = vadd.f32 %v1941, %v1859
        %v1978 = vadd.f32 %v1942, %v1864
        %v1979 = vadd.f32 %v1943, %v1869
        %v1980 = vadd.f32 %v1944, %v1874
        %v1981 = vadd.f32 %v1945, %v1879
        %v1982 = vadd.f32 %v1946, %v1884
        %v1983 = vadd.f32 %v1947, %v1889
        %v1984 = vadd.f32 %v1948, %v1894
        %v1985 = vadd.f32 %v1949, %v1899
        %v1986 = vadd.f32 %v1950, %v1904
        %v1987 = vadd.f32 %v1951, %v1909
        %v1988 = vadd.f32 %v1952, %v1914
        %1989 = vst [vmem:[%s286] sm:$0xff] %v1953
        %1990 = vst [vmem:[%s286 + $0x8] sm:$0xff] %v1954
        %1991 = vst [vmem:[%s286 + $0x10] sm:$0xff] %v1955
        %1992 = vst [vmem:[%s286 + $0x18] sm:$0xff] %v1956
        %1993 = vst [vmem:[%s286 + $0x20] sm:$0xff] %v1957
        %1994 = vst [vmem:[%s286 + $0x28] sm:$0xff] %v1958
        %1995 = vst [vmem:[%s286 + $0x30] sm:$0xff] %v1959
        %1996 = vst [vmem:[%s286 + $0x38] sm:$0xff] %v1960
        %1997 = vst [vmem:[%s286 + $0x40] sm:$0xff] %v1961
        %1998 = vst [vmem:[%s286 + $0x48] sm:$0xff] %v1962
        %1999 = vst [vmem:[%s286 + $0x50] sm:$0xff] %v1963
        %2000 = vst [vmem:[%s286 + $0x58] sm:$0xff] %v1964
        %2001 = vst [vmem:[%s286 + $0x60] sm:$0xff] %v1965
        %2002 = vst [vmem:[%s286 + $0x68] sm:$0xff] %v1966
        %2003 = vst [vmem:[%s286 + $0x70] sm:$0xff] %v1967
        %2004 = vst [vmem:[%s286 + $0x78] sm:$0xff] %v1968
        %2005 = vst [vmem:[%s286 + $0x80] sm:$0xff] %v1969
        %2006 = vst [vmem:[%s286 + $0x88] sm:$0xff] %v1970
        %2007 = vst [vmem:[%s286 + $0x90] sm:$0xff] %v1971
        %2008 = vst [vmem:[%s286 + $0x98] sm:$0xff] %v1972
        %2009 = vst [vmem:[%s286 + $0xa0] sm:$0xff] %v1973
        %2010 = vst [vmem:[%s286 + $0xa8] sm:$0xff] %v1974
        %2011 = vst [vmem:[%s286 + $0xb0] sm:$0xff] %v1975
        %2012 = vst [vmem:[%s286 + $0xb8] sm:$0xff] %v1976
        %2013 = vst [vmem:[%s286 + $0xc0] sm:$0xff] %v1977
        %2014 = vst [vmem:[%s286 + $0xc8] sm:$0xff] %v1978
        %2015 = vst [vmem:[%s286 + $0xd0] sm:$0xff] %v1979
        %2016 = vst [vmem:[%s286 + $0xd8] sm:$0xff] %v1980
        %2017 = vst [vmem:[%s286 + $0xe0] sm:$0xff] %v1981
        %2018 = vst [vmem:[%s286 + $0xe8] sm:$0xff] %v1982
        %2019 = vst [vmem:[%s286 + $0xf0] sm:$0xff] %v1983
        %2020 = vst [vmem:[%s286 + $0xf8] sm:$0xff] %v1984
        %2021 = vst [vmem:[%s286 + $0x100] sm:$0xff] %v1985
        %2022 = vst [vmem:[%s286 + $0x108] sm:$0xff] %v1986
        %2023 = vst [vmem:[%s286 + $0x110] sm:$0xff] %v1987
        %2024 = vst [vmem:[%s286 + $0x118] sm:$0xff] %v1988
        %v2025 = vld [vmem:[#allocation2 + $0x2] sm:$0xff]
        %v2026 = vld [vmem:[#allocation2 + $0xa] sm:$0xff]
        %v2027 = vld [vmem:[#allocation2 + $0x12] sm:$0xff]
        %v2028 = vld [vmem:[#allocation2 + $0x1a] sm:$0xff]
        %v2029 = vld [vmem:[#allocation2 + $0x22] sm:$0xff]
        %v2030 = vld [vmem:[#allocation2 + $0x2a] sm:$0xff]
        %v2031 = vld [vmem:[#allocation2 + $0x32] sm:$0xff]
        %v2032 = vld [vmem:[#allocation2 + $0x3a] sm:$0xff]
        %v2033 = vld [vmem:[#allocation2 + $0x42] sm:$0xff]
        %v2034 = vld [vmem:[#allocation2 + $0x4a] sm:$0xff]
        %v2035 = vld [vmem:[#allocation2 + $0x52] sm:$0xff]
        %v2036 = vld [vmem:[#allocation2 + $0x5a] sm:$0xff]
        %v2037 = vld [vmem:[#allocation2 + $0x62] sm:$0xff]
        %v2038 = vld [vmem:[#allocation2 + $0x6a] sm:$0xff]
        %v2039 = vld [vmem:[#allocation2 + $0x72] sm:$0xff]
        %v2040 = vld [vmem:[#allocation2 + $0x7a] sm:$0xff]
        %v2041 = vld [vmem:[#allocation2 + $0x82] sm:$0xff]
        %v2042 = vld [vmem:[#allocation2 + $0x8a] sm:$0xff]
        %v2043 = vld [vmem:[#allocation2 + $0x92] sm:$0xff]
        %v2044 = vld [vmem:[#allocation2 + $0x9a] sm:$0xff]
        %v2045 = vld [vmem:[#allocation2 + $0xa2] sm:$0xff]
        %v2046 = vld [vmem:[#allocation2 + $0xaa] sm:$0xff]
        %v2047 = vld [vmem:[#allocation2 + $0xb2] sm:$0xff]
        %v2048 = vld [vmem:[#allocation2 + $0xba] sm:$0xff]
        %v2049 = vld [vmem:[#allocation2 + $0xc2] sm:$0xff]
        %v2050 = vld [vmem:[#allocation2 + $0xca] sm:$0xff]
        %v2051 = vld [vmem:[#allocation2 + $0xd2] sm:$0xff]
        %v2052 = vld [vmem:[#allocation2 + $0xda] sm:$0xff]
        %v2053 = vld [vmem:[#allocation2 + $0xe2] sm:$0xff]
        %v2054 = vld [vmem:[#allocation2 + $0xea] sm:$0xff]
        %v2055 = vld [vmem:[#allocation2 + $0xf2] sm:$0xff]
        %v2056 = vld [vmem:[#allocation2 + $0xfa] sm:$0xff]
        %v2057 = vld [vmem:[#allocation2 + $0x102] sm:$0xff]
        %v2058 = vld [vmem:[#allocation2 + $0x10a] sm:$0xff]
        %v2059 = vld [vmem:[#allocation2 + $0x112] sm:$0xff]
        %v2060 = vld [vmem:[#allocation2 + $0x11a] sm:$0xff]
        %s2061 = scalar_lea.vmem [#allocation3], 256
        %v2062 = vld [vmem:[%s2061] sm:$0xff]
        %v2063 = vld [vmem:[%s2061 + $0x8] sm:$0xff]
        %v2064 = vld [vmem:[%s2061 + $0x10] sm:$0xff]
        %v2065 = vld [vmem:[%s2061 + $0x18] sm:$0xff]
        %v2066 = vld [vmem:[%s2061 + $0x20] sm:$0xff]
        %v2067 = vld [vmem:[%s2061 + $0x28] sm:$0xff]
        %v2068 = vld [vmem:[%s2061 + $0x30] sm:$0xff]
        %v2069 = vld [vmem:[%s2061 + $0x38] sm:$0xff]
        %v2070 = vld [vmem:[%s2061 + $0x40] sm:$0xff]
        %v2071 = vld [vmem:[%s2061 + $0x48] sm:$0xff]
        %v2072 = vld [vmem:[%s2061 + $0x50] sm:$0xff]
        %v2073 = vld [vmem:[%s2061 + $0x58] sm:$0xff]
        %v2074 = vld [vmem:[%s2061 + $0x60] sm:$0xff]
        %v2075 = vld [vmem:[%s2061 + $0x68] sm:$0xff]
        %v2076 = vld [vmem:[%s2061 + $0x70] sm:$0xff]
        %v2077 = vld [vmem:[%s2061 + $0x78] sm:$0xff]
        %2078 = vmatprep.subr.mxu0 0.0
        %2079 = vmatpush1.msra.mxu0 %v2062
        %2080 = vmatprep.subr.mxu0 0.0
        %2081 = vmatpush1.msra.mxu0 %v2063
        %2082 = vmatprep.subr.mxu0 0.0
        %2083 = vmatpush1.msra.mxu0 %v2064
        %2084 = vmatprep.subr.mxu0 0.0
        %2085 = vmatpush1.msra.mxu0 %v2065
        %2086 = vmatprep.subr.mxu0 0.0
        %2087 = vmatpush1.msra.mxu0 %v2066
        %2088 = vmatprep.subr.mxu0 0.0
        %2089 = vmatpush1.msra.mxu0 %v2067
        %2090 = vmatprep.subr.mxu0 0.0
        %2091 = vmatpush1.msra.mxu0 %v2068
        %2092 = vmatprep.subr.mxu0 0.0
        %2093 = vmatpush1.msra.mxu0 %v2069
        %2094 = vmatprep.subr.mxu0 0.0
        %2095 = vmatpush1.msra.mxu0 %v2070
        %2096 = vmatprep.subr.mxu0 0.0
        %2097 = vmatpush1.msra.mxu0 %v2071
        %2098 = vmatprep.subr.mxu0 0.0
        %2099 = vmatpush1.msra.mxu0 %v2072
        %2100 = vmatprep.subr.mxu0 0.0
        %2101 = vmatpush1.msra.mxu0 %v2073
        %2102 = vmatprep.subr.mxu0 0.0
        %2103 = vmatpush1.msra.mxu0 %v2074
        %2104 = vmatprep.subr.mxu0 0.0
        %2105 = vmatpush1.msra.mxu0 %v2075
        %2106 = vmatprep.subr.mxu0 0.0
        %2107 = vmatpush1.msra.mxu0 %v2076
        %2108 = vmatprep.subr.mxu0 0.0
        %2109 = vmatpush1.msra.mxu0 %v2077
        %2110 = vmatprep.subr.mxu0 0.0
        %2111 = vmatpush1.msra.mxu0 0.0
        %2112 = vmatprep.subr.mxu0 0.0
        %2113 = vmatpush1.msra.mxu0 0.0
        %2114 = vmatprep.subr.mxu0 0.0
        %2115 = vmatpush1.msra.mxu0 0.0
        %2116 = vmatprep.subr.mxu0 0.0
        %2117 = vmatpush1.msra.mxu0 0.0
        %2118 = vmatprep.subr.mxu0 0.0
        %2119 = vmatpush1.msra.mxu0 0.0
        %2120 = vmatprep.subr.mxu0 0.0
        %2121 = vmatpush1.msra.mxu0 0.0
        %2122 = vmatprep.subr.mxu0 0.0
        %2123 = vmatpush1.msra.mxu0 0.0
        %2124 = vmatprep.subr.mxu0 0.0
        %2125 = vmatpush1.msra.mxu0 0.0
        %2126 = vmatprep.subr.mxu0 0.0
        %2127 = vmatpush1.msra.mxu0 0.0
        %2128 = vmatprep.subr.mxu0 0.0
        %2129 = vmatpush1.msra.mxu0 0.0
        %2130 = vmatprep.subr.mxu0 0.0
        %2131 = vmatpush1.msra.mxu0 0.0
        %2132 = vmatprep.subr.mxu0 0.0
        %2133 = vmatpush1.msra.mxu0 0.0
        %2134 = vmatprep.subr.mxu0 0.0
        %2135 = vmatpush1.msra.mxu0 0.0
        %2136 = vmatprep.subr.mxu0 0.0
        %2137 = vmatpush1.msra.mxu0 0.0
        %2138 = vmatprep.subr.mxu0 0.0
        %2139 = vmatpush1.msra.mxu0 0.0
        %2140 = vmatprep.subr.mxu0 0.0
        %2141 = vmatpush1.msra.mxu0 0.0
        %2142 = vmatprep.mubr.f32.mxu0 0.0
        %2143 = vmatmul.mubr.f32.gmra.mrb[0].mxu0 %v2025
        %v2144 = vpop.f32.mrb[0].mxu0
        %v2145 = vadd.f32 0.0, %v2144
        %v2146 = vpop.f32.mrb[0].mxu0
        %2147 = vmatprep.mubr.f32.mxu0 0.0
        %2148 = vmatmul.mubr.f32.gmra.mrb[0].mxu0 %v2026
        %v2149 = vpop.f32.mrb[0].mxu0
        %v2150 = vadd.f32 0.0, %v2149
        %v2151 = vpop.f32.mrb[0].mxu0
        %2152 = vmatprep.mubr.f32.mxu0 0.0
        %2153 = vmatmul.mubr.f32.gmra.mrb[0].mxu0 %v2027
        %v2154 = vpop.f32.mrb[0].mxu0
        %v2155 = vadd.f32 0.0, %v2154
        %v2156 = vpop.f32.mrb[0].mxu0
        %2157 = vmatprep.mubr.f32.mxu0 0.0
        %2158 = vmatmul.mubr.f32.gmra.mrb[0].mxu0 %v2028
        %v2159 = vpop.f32.mrb[0].mxu0
        %v2160 = vadd.f32 0.0, %v2159
        %v2161 = vpop.f32.mrb[0].mxu0
        %2162 = vmatprep.mubr.f32.mxu0 0.0
        %2163 = vmatmul.mubr.f32.gmra.mrb[0].mxu0 %v2029
        %v2164 = vpop.f32.mrb[0].mxu0
        %v2165 = vadd.f32 0.0, %v2164
        %v2166 = vpop.f32.mrb[0].mxu0
        %2167 = vmatprep.mubr.f32.mxu0 0.0
        %2168 = vmatmul.mubr.f32.gmra.mrb[0].mxu0 %v2030
        %v2169 = vpop.f32.mrb[0].mxu0
        %v2170 = vadd.f32 0.0, %v2169
        %v2171 = vpop.f32.mrb[0].mxu0
        %2172 = vmatprep.mubr.f32.mxu0 0.0
        %2173 = vmatmul.mubr.f32.gmra.mrb[0].mxu0 %v2031
        %v2174 = vpop.f32.mrb[0].mxu0
        %v2175 = vadd.f32 0.0, %v2174
        %v2176 = vpop.f32.mrb[0].mxu0
        %2177 = vmatprep.mubr.f32.mxu0 0.0
        %2178 = vmatmul.mubr.f32.gmra.mrb[0].mxu0 %v2032
        %v2179 = vpop.f32.mrb[0].mxu0
        %v2180 = vadd.f32 0.0, %v2179
        %v2181 = vpop.f32.mrb[0].mxu0
        %2182 = vmatprep.mubr.f32.mxu0 0.0
        %2183 = vmatmul.mubr.f32.gmra.mrb[0].mxu0 %v2033
        %v2184 = vpop.f32.mrb[0].mxu0
        %v2185 = vadd.f32 0.0, %v2184
        %v2186 = vpop.f32.mrb[0].mxu0
        %2187 = vmatprep.mubr.f32.mxu0 0.0
        %2188 = vmatmul.mubr.f32.gmra.mrb[0].mxu0 %v2034
        %v2189 = vpop.f32.mrb[0].mxu0
        %v2190 = vadd.f32 0.0, %v2189
        %v2191 = vpop.f32.mrb[0].mxu0
        %2192 = vmatprep.mubr.f32.mxu0 0.0
        %2193 = vmatmul.mubr.f32.gmra.mrb[0].mxu0 %v2035
        %v2194 = vpop.f32.mrb[0].mxu0
        %v2195 = vadd.f32 0.0, %v2194
        %v2196 = vpop.f32.mrb[0].mxu0
        %2197 = vmatprep.mubr.f32.mxu0 0.0
        %2198 = vmatmul.mubr.f32.gmra.mrb[0].mxu0 %v2036
        %v2199 = vpop.f32.mrb[0].mxu0
        %v2200 = vadd.f32 0.0, %v2199
        %v2201 = vpop.f32.mrb[0].mxu0
        %2202 = vmatprep.mubr.f32.mxu0 0.0
        %2203 = vmatmul.mubr.f32.gmra.mrb[0].mxu0 %v2037
        %v2204 = vpop.f32.mrb[0].mxu0
        %v2205 = vadd.f32 0.0, %v2204
        %v2206 = vpop.f32.mrb[0].mxu0
        %2207 = vmatprep.mubr.f32.mxu0 0.0
        %2208 = vmatmul.mubr.f32.gmra.mrb[0].mxu0 %v2038
        %v2209 = vpop.f32.mrb[0].mxu0
        %v2210 = vadd.f32 0.0, %v2209
        %v2211 = vpop.f32.mrb[0].mxu0
        %2212 = vmatprep.mubr.f32.mxu0 0.0
        %2213 = vmatmul.mubr.f32.gmra.mrb[0].mxu0 %v2039
        %v2214 = vpop.f32.mrb[0].mxu0
        %v2215 = vadd.f32 0.0, %v2214
        %v2216 = vpop.f32.mrb[0].mxu0
        %2217 = vmatprep.mubr.f32.mxu0 0.0
        %2218 = vmatmul.mubr.f32.gmra.mrb[0].mxu0 %v2040
        %v2219 = vpop.f32.mrb[0].mxu0
        %v2220 = vadd.f32 0.0, %v2219
        %v2221 = vpop.f32.mrb[0].mxu0
        %2222 = vmatprep.mubr.f32.mxu0 0.0
        %2223 = vmatmul.mubr.f32.gmra.mrb[0].mxu0 %v2041
        %v2224 = vpop.f32.mrb[0].mxu0
        %v2225 = vadd.f32 0.0, %v2224
        %v2226 = vpop.f32.mrb[0].mxu0
        %2227 = vmatprep.mubr.f32.mxu0 0.0
        %2228 = vmatmul.mubr.f32.gmra.mrb[0].mxu0 %v2042
        %v2229 = vpop.f32.mrb[0].mxu0
        %v2230 = vadd.f32 0.0, %v2229
        %v2231 = vpop.f32.mrb[0].mxu0
        %2232 = vmatprep.mubr.f32.mxu0 0.0
        %2233 = vmatmul.mubr.f32.gmra.mrb[0].mxu0 %v2043
        %v2234 = vpop.f32.mrb[0].mxu0
        %v2235 = vadd.f32 0.0, %v2234
        %v2236 = vpop.f32.mrb[0].mxu0
        %2237 = vmatprep.mubr.f32.mxu0 0.0
        %2238 = vmatmul.mubr.f32.gmra.mrb[0].mxu0 %v2044
        %v2239 = vpop.f32.mrb[0].mxu0
        %v2240 = vadd.f32 0.0, %v2239
        %v2241 = vpop.f32.mrb[0].mxu0
        %2242 = vmatprep.mubr.f32.mxu0 0.0
        %2243 = vmatmul.mubr.f32.gmra.mrb[0].mxu0 %v2045
        %v2244 = vpop.f32.mrb[0].mxu0
        %v2245 = vadd.f32 0.0, %v2244
        %v2246 = vpop.f32.mrb[0].mxu0
        %2247 = vmatprep.mubr.f32.mxu0 0.0
        %2248 = vmatmul.mubr.f32.gmra.mrb[0].mxu0 %v2046
        %v2249 = vpop.f32.mrb[0].mxu0
        %v2250 = vadd.f32 0.0, %v2249
        %v2251 = vpop.f32.mrb[0].mxu0
        %2252 = vmatprep.mubr.f32.mxu0 0.0
        %2253 = vmatmul.mubr.f32.gmra.mrb[0].mxu0 %v2047
        %v2254 = vpop.f32.mrb[0].mxu0
        %v2255 = vadd.f32 0.0, %v2254
        %v2256 = vpop.f32.mrb[0].mxu0
        %2257 = vmatprep.mubr.f32.mxu0 0.0
        %2258 = vmatmul.mubr.f32.gmra.mrb[0].mxu0 %v2048
        %v2259 = vpop.f32.mrb[0].mxu0
        %v2260 = vadd.f32 0.0, %v2259
        %v2261 = vpop.f32.mrb[0].mxu0
        %2262 = vmatprep.mubr.f32.mxu0 0.0
        %2263 = vmatmul.mubr.f32.gmra.mrb[0].mxu0 %v2049
        %v2264 = vpop.f32.mrb[0].mxu0
        %v2265 = vadd.f32 0.0, %v2264
        %v2266 = vpop.f32.mrb[0].mxu0
        %2267 = vmatprep.mubr.f32.mxu0 0.0
        %2268 = vmatmul.mubr.f32.gmra.mrb[0].mxu0 %v2050
        %v2269 = vpop.f32.mrb[0].mxu0
        %v2270 = vadd.f32 0.0, %v2269
        %v2271 = vpop.f32.mrb[0].mxu0
        %2272 = vmatprep.mubr.f32.mxu0 0.0
        %2273 = vmatmul.mubr.f32.gmra.mrb[0].mxu0 %v2051
        %v2274 = vpop.f32.mrb[0].mxu0
        %v2275 = vadd.f32 0.0, %v2274
        %v2276 = vpop.f32.mrb[0].mxu0
        %2277 = vmatprep.mubr.f32.mxu0 0.0
        %2278 = vmatmul.mubr.f32.gmra.mrb[0].mxu0 %v2052
        %v2279 = vpop.f32.mrb[0].mxu0
        %v2280 = vadd.f32 0.0, %v2279
        %v2281 = vpop.f32.mrb[0].mxu0
        %2282 = vmatprep.mubr.f32.mxu0 0.0
        %2283 = vmatmul.mubr.f32.gmra.mrb[0].mxu0 %v2053
        %v2284 = vpop.f32.mrb[0].mxu0
        %v2285 = vadd.f32 0.0, %v2284
        %v2286 = vpop.f32.mrb[0].mxu0
        %2287 = vmatprep.mubr.f32.mxu0 0.0
        %2288 = vmatmul.mubr.f32.gmra.mrb[0].mxu0 %v2054
        %v2289 = vpop.f32.mrb[0].mxu0
        %v2290 = vadd.f32 0.0, %v2289
        %v2291 = vpop.f32.mrb[0].mxu0
        %2292 = vmatprep.mubr.f32.mxu0 0.0
        %2293 = vmatmul.mubr.f32.gmra.mrb[0].mxu0 %v2055
        %v2294 = vpop.f32.mrb[0].mxu0
        %v2295 = vadd.f32 0.0, %v2294
        %v2296 = vpop.f32.mrb[0].mxu0
        %2297 = vmatprep.mubr.f32.mxu0 0.0
        %2298 = vmatmul.mubr.f32.gmra.mrb[0].mxu0 %v2056
        %v2299 = vpop.f32.mrb[0].mxu0
        %v2300 = vadd.f32 0.0, %v2299
        %v2301 = vpop.f32.mrb[0].mxu0
        %2302 = vmatprep.mubr.f32.mxu0 0.0
        %2303 = vmatmul.mubr.f32.gmra.mrb[0].mxu0 %v2057
        %v2304 = vpop.f32.mrb[0].mxu0
        %v2305 = vadd.f32 0.0, %v2304
        %v2306 = vpop.f32.mrb[0].mxu0
        %2307 = vmatprep.mubr.f32.mxu0 0.0
        %2308 = vmatmul.mubr.f32.gmra.mrb[0].mxu0 %v2058
        %v2309 = vpop.f32.mrb[0].mxu0
        %v2310 = vadd.f32 0.0, %v2309
        %v2311 = vpop.f32.mrb[0].mxu0
        %2312 = vmatprep.mubr.f32.mxu0 0.0
        %2313 = vmatmul.mubr.f32.gmra.mrb[0].mxu0 %v2059
        %v2314 = vpop.f32.mrb[0].mxu0
        %v2315 = vadd.f32 0.0, %v2314
        %v2316 = vpop.f32.mrb[0].mxu0
        %2317 = vmatprep.mubr.f32.mxu0 0.0
        %2318 = vmatmul.mubr.f32.gmra.mrb[0].mxu0 %v2060
        %v2319 = vpop.f32.mrb[0].mxu0
        %v2320 = vadd.f32 0.0, %v2319
        %v2321 = vpop.f32.mrb[0].mxu0
        %2322 = vdwg.mxu0
        %v2323 = vld [vmem:[%s286] sm:$0xff]
        %v2324 = vld [vmem:[%s286 + $0x8] sm:$0xff]
        %v2325 = vld [vmem:[%s286 + $0x10] sm:$0xff]
        %v2326 = vld [vmem:[%s286 + $0x18] sm:$0xff]
        %v2327 = vld [vmem:[%s286 + $0x20] sm:$0xff]
        %v2328 = vld [vmem:[%s286 + $0x28] sm:$0xff]
        %v2329 = vld [vmem:[%s286 + $0x30] sm:$0xff]
        %v2330 = vld [vmem:[%s286 + $0x38] sm:$0xff]
        %v2331 = vld [vmem:[%s286 + $0x40] sm:$0xff]
        %v2332 = vld [vmem:[%s286 + $0x48] sm:$0xff]
        %v2333 = vld [vmem:[%s286 + $0x50] sm:$0xff]
        %v2334 = vld [vmem:[%s286 + $0x58] sm:$0xff]
        %v2335 = vld [vmem:[%s286 + $0x60] sm:$0xff]
        %v2336 = vld [vmem:[%s286 + $0x68] sm:$0xff]
        %v2337 = vld [vmem:[%s286 + $0x70] sm:$0xff]
        %v2338 = vld [vmem:[%s286 + $0x78] sm:$0xff]
        %v2339 = vld [vmem:[%s286 + $0x80] sm:$0xff]
        %v2340 = vld [vmem:[%s286 + $0x88] sm:$0xff]
        %v2341 = vld [vmem:[%s286 + $0x90] sm:$0xff]
        %v2342 = vld [vmem:[%s286 + $0x98] sm:$0xff]
        %v2343 = vld [vmem:[%s286 + $0xa0] sm:$0xff]
        %v2344 = vld [vmem:[%s286 + $0xa8] sm:$0xff]
        %v2345 = vld [vmem:[%s286 + $0xb0] sm:$0xff]
        %v2346 = vld [vmem:[%s286 + $0xb8] sm:$0xff]
        %v2347 = vld [vmem:[%s286 + $0xc0] sm:$0xff]
        %v2348 = vld [vmem:[%s286 + $0xc8] sm:$0xff]
        %v2349 = vld [vmem:[%s286 + $0xd0] sm:$0xff]
        %v2350 = vld [vmem:[%s286 + $0xd8] sm:$0xff]
        %v2351 = vld [vmem:[%s286 + $0xe0] sm:$0xff]
        %v2352 = vld [vmem:[%s286 + $0xe8] sm:$0xff]
        %v2353 = vld [vmem:[%s286 + $0xf0] sm:$0xff]
        %v2354 = vld [vmem:[%s286 + $0xf8] sm:$0xff]
        %v2355 = vld [vmem:[%s286 + $0x100] sm:$0xff]
        %v2356 = vld [vmem:[%s286 + $0x108] sm:$0xff]
        %v2357 = vld [vmem:[%s286 + $0x110] sm:$0xff]
        %v2358 = vld [vmem:[%s286 + $0x118] sm:$0xff]
        %v2359 = vadd.f32 %v2323, %v2145
        %v2360 = vadd.f32 %v2324, %v2150
        %v2361 = vadd.f32 %v2325, %v2155
        %v2362 = vadd.f32 %v2326, %v2160
        %v2363 = vadd.f32 %v2327, %v2165
        %v2364 = vadd.f32 %v2328, %v2170
        %v2365 = vadd.f32 %v2329, %v2175
        %v2366 = vadd.f32 %v2330, %v2180
        %v2367 = vadd.f32 %v2331, %v2185
        %v2368 = vadd.f32 %v2332, %v2190
        %v2369 = vadd.f32 %v2333, %v2195
        %v2370 = vadd.f32 %v2334, %v2200
        %v2371 = vadd.f32 %v2335, %v2205
        %v2372 = vadd.f32 %v2336, %v2210
        %v2373 = vadd.f32 %v2337, %v2215
        %v2374 = vadd.f32 %v2338, %v2220
        %v2375 = vadd.f32 %v2339, %v2225
        %v2376 = vadd.f32 %v2340, %v2230
        %v2377 = vadd.f32 %v2341, %v2235
        %v2378 = vadd.f32 %v2342, %v2240
        %v2379 = vadd.f32 %v2343, %v2245
        %v2380 = vadd.f32 %v2344, %v2250
        %v2381 = vadd.f32 %v2345, %v2255
        %v2382 = vadd.f32 %v2346, %v2260
        %v2383 = vadd.f32 %v2347, %v2265
        %v2384 = vadd.f32 %v2348, %v2270
        %v2385 = vadd.f32 %v2349, %v2275
        %v2386 = vadd.f32 %v2350, %v2280
        %v2387 = vadd.f32 %v2351, %v2285
        %v2388 = vadd.f32 %v2352, %v2290
        %v2389 = vadd.f32 %v2353, %v2295
        %v2390 = vadd.f32 %v2354, %v2300
        %v2391 = vadd.f32 %v2355, %v2305
        %v2392 = vadd.f32 %v2356, %v2310
        %v2393 = vadd.f32 %v2357, %v2315
        %v2394 = vadd.f32 %v2358, %v2320
        %2395 = vst [vmem:[%s286] sm:$0xff] %v2359
        %2396 = vst [vmem:[%s286 + $0x8] sm:$0xff] %v2360
        %2397 = vst [vmem:[%s286 + $0x10] sm:$0xff] %v2361
        %2398 = vst [vmem:[%s286 + $0x18] sm:$0xff] %v2362
        %2399 = vst [vmem:[%s286 + $0x20] sm:$0xff] %v2363
        %2400 = vst [vmem:[%s286 + $0x28] sm:$0xff] %v2364
        %2401 = vst [vmem:[%s286 + $0x30] sm:$0xff] %v2365
        %2402 = vst [vmem:[%s286 + $0x38] sm:$0xff] %v2366
        %2403 = vst [vmem:[%s286 + $0x40] sm:$0xff] %v2367
        %2404 = vst [vmem:[%s286 + $0x48] sm:$0xff] %v2368
        %2405 = vst [vmem:[%s286 + $0x50] sm:$0xff] %v2369
        %2406 = vst [vmem:[%s286 + $0x58] sm:$0xff] %v2370
        %2407 = vst [vmem:[%s286 + $0x60] sm:$0xff] %v2371
        %2408 = vst [vmem:[%s286 + $0x68] sm:$0xff] %v2372
        %2409 = vst [vmem:[%s286 + $0x70] sm:$0xff] %v2373
        %2410 = vst [vmem:[%s286 + $0x78] sm:$0xff] %v2374
        %2411 = vst [vmem:[%s286 + $0x80] sm:$0xff] %v2375
        %2412 = vst [vmem:[%s286 + $0x88] sm:$0xff] %v2376
        %2413 = vst [vmem:[%s286 + $0x90] sm:$0xff] %v2377
        %2414 = vst [vmem:[%s286 + $0x98] sm:$0xff] %v2378
        %2415 = vst [vmem:[%s286 + $0xa0] sm:$0xff] %v2379
        %2416 = vst [vmem:[%s286 + $0xa8] sm:$0xff] %v2380
        %2417 = vst [vmem:[%s286 + $0xb0] sm:$0xff] %v2381
        %2418 = vst [vmem:[%s286 + $0xb8] sm:$0xff] %v2382
        %2419 = vst [vmem:[%s286 + $0xc0] sm:$0xff] %v2383
        %2420 = vst [vmem:[%s286 + $0xc8] sm:$0xff] %v2384
        %2421 = vst [vmem:[%s286 + $0xd0] sm:$0xff] %v2385
        %2422 = vst [vmem:[%s286 + $0xd8] sm:$0xff] %v2386
        %2423 = vst [vmem:[%s286 + $0xe0] sm:$0xff] %v2387
        %2424 = vst [vmem:[%s286 + $0xe8] sm:$0xff] %v2388
        %2425 = vst [vmem:[%s286 + $0xf0] sm:$0xff] %v2389
        %2426 = vst [vmem:[%s286 + $0xf8] sm:$0xff] %v2390
        %2427 = vst [vmem:[%s286 + $0x100] sm:$0xff] %v2391
        %2428 = vst [vmem:[%s286 + $0x108] sm:$0xff] %v2392
        %2429 = vst [vmem:[%s286 + $0x110] sm:$0xff] %v2393
        %2430 = vst [vmem:[%s286 + $0x118] sm:$0xff] %v2394
        %v2431 = vld [vmem:[#allocation2 + $0x12] sm:$0xff]
        %v2432 = vld [vmem:[#allocation2 + $0x1a] sm:$0xff]
        %v2433 = vld [vmem:[#allocation2 + $0x22] sm:$0xff]
        %v2434 = vld [vmem:[#allocation2 + $0x2a] sm:$0xff]
        %v2435 = vld [vmem:[#allocation2 + $0x32] sm:$0xff]
        %v2436 = vld [vmem:[#allocation2 + $0x3a] sm:$0xff]
        %v2437 = vld [vmem:[#allocation2 + $0x42] sm:$0xff]
        %v2438 = vld [vmem:[#allocation2 + $0x4a] sm:$0xff]
        %v2439 = vld [vmem:[#allocation2 + $0x52] sm:$0xff]
        %v2440 = vld [vmem:[#allocation2 + $0x5a] sm:$0xff]
        %v2441 = vld [vmem:[#allocation2 + $0x62] sm:$0xff]
        %v2442 = vld [vmem:[#allocation2 + $0x6a] sm:$0xff]
        %v2443 = vld [vmem:[#allocation2 + $0x72] sm:$0xff]
        %v2444 = vld [vmem:[#allocation2 + $0x7a] sm:$0xff]
        %v2445 = vld [vmem:[#allocation2 + $0x82] sm:$0xff]
        %v2446 = vld [vmem:[#allocation2 + $0x8a] sm:$0xff]
        %v2447 = vld [vmem:[#allocation2 + $0x92] sm:$0xff]
        %v2448 = vld [vmem:[#allocation2 + $0x9a] sm:$0xff]
        %v2449 = vld [vmem:[#allocation2 + $0xa2] sm:$0xff]
        %v2450 = vld [vmem:[#allocation2 + $0xaa] sm:$0xff]
        %v2451 = vld [vmem:[#allocation2 + $0xb2] sm:$0xff]
        %v2452 = vld [vmem:[#allocation2 + $0xba] sm:$0xff]
        %v2453 = vld [vmem:[#allocation2 + $0xc2] sm:$0xff]
        %v2454 = vld [vmem:[#allocation2 + $0xca] sm:$0xff]
        %v2455 = vld [vmem:[#allocation2 + $0xd2] sm:$0xff]
        %v2456 = vld [vmem:[#allocation2 + $0xda] sm:$0xff]
        %v2457 = vld [vmem:[#allocation2 + $0xe2] sm:$0xff]
        %v2458 = vld [vmem:[#allocation2 + $0xea] sm:$0xff]
        %v2459 = vld [vmem:[#allocation2 + $0xf2] sm:$0xff]
        %v2460 = vld [vmem:[#allocation2 + $0xfa] sm:$0xff]
        %v2461 = vld [vmem:[#allocation2 + $0x102] sm:$0xff]
        %v2462 = vld [vmem:[#allocation2 + $0x10a] sm:$0xff]
        %v2463 = vld [vmem:[#allocation2 + $0x112] sm:$0xff]
        %v2464 = vld [vmem:[#allocation2 + $0x11a] sm:$0xff]
        %v2465 = vld [vmem:[#allocation2 + $0x122] sm:$0xff]
        %v2466 = vld [vmem:[#allocation2 + $0x12a] sm:$0xff]
        %s2467 = scalar_lea.vmem [#allocation3], 384
        %v2468 = vld [vmem:[%s2467] sm:$0xff]
        %v2469 = vld [vmem:[%s2467 + $0x8] sm:$0xff]
        %v2470 = vld [vmem:[%s2467 + $0x10] sm:$0xff]
        %v2471 = vld [vmem:[%s2467 + $0x18] sm:$0xff]
        %v2472 = vld [vmem:[%s2467 + $0x20] sm:$0xff]
        %v2473 = vld [vmem:[%s2467 + $0x28] sm:$0xff]
        %v2474 = vld [vmem:[%s2467 + $0x30] sm:$0xff]
        %v2475 = vld [vmem:[%s2467 + $0x38] sm:$0xff]
        %v2476 = vld [vmem:[%s2467 + $0x40] sm:$0xff]
        %v2477 = vld [vmem:[%s2467 + $0x48] sm:$0xff]
        %v2478 = vld [vmem:[%s2467 + $0x50] sm:$0xff]
        %v2479 = vld [vmem:[%s2467 + $0x58] sm:$0xff]
        %v2480 = vld [vmem:[%s2467 + $0x60] sm:$0xff]
        %v2481 = vld [vmem:[%s2467 + $0x68] sm:$0xff]
        %v2482 = vld [vmem:[%s2467 + $0x70] sm:$0xff]
        %v2483 = vld [vmem:[%s2467 + $0x78] sm:$0xff]
        %2484 = vmatprep.subr.mxu0 0.0
        %2485 = vmatpush1.msra.mxu0 %v2468
        %2486 = vmatprep.subr.mxu0 0.0
        %2487 = vmatpush1.msra.mxu0 %v2469
        %2488 = vmatprep.subr.mxu0 0.0
        %2489 = vmatpush1.msra.mxu0 %v2470
        %2490 = vmatprep.subr.mxu0 0.0
        %2491 = vmatpush1.msra.mxu0 %v2471
        %2492 = vmatprep.subr.mxu0 0.0
        %2493 = vmatpush1.msra.mxu0 %v2472
        %2494 = vmatprep.subr.mxu0 0.0
        %2495 = vmatpush1.msra.mxu0 %v2473
        %2496 = vmatprep.subr.mxu0 0.0
        %2497 = vmatpush1.msra.mxu0 %v2474
        %2498 = vmatprep.subr.mxu0 0.0
        %2499 = vmatpush1.msra.mxu0 %v2475
        %2500 = vmatprep.subr.mxu0 0.0
        %2501 = vmatpush1.msra.mxu0 %v2476
        %2502 = vmatprep.subr.mxu0 0.0
        %2503 = vmatpush1.msra.mxu0 %v2477
        %2504 = vmatprep.subr.mxu0 0.0
        %2505 = vmatpush1.msra.mxu0 %v2478
        %2506 = vmatprep.subr.mxu0 0.0
        %2507 = vmatpush1.msra.mxu0 %v2479
        %2508 = vmatprep.subr.mxu0 0.0
        %2509 = vmatpush1.msra.mxu0 %v2480
        %2510 = vmatprep.subr.mxu0 0.0
        %2511 = vmatpush1.msra.mxu0 %v2481
        %2512 = vmatprep.subr.mxu0 0.0
        %2513 = vmatpush1.msra.mxu0 %v2482
        %2514 = vmatprep.subr.mxu0 0.0
        %2515 = vmatpush1.msra.mxu0 %v2483
        %2516 = vmatprep.subr.mxu0 0.0
        %2517 = vmatpush1.msra.mxu0 0.0
        %2518 = vmatprep.subr.mxu0 0.0
        %2519 = vmatpush1.msra.mxu0 0.0
        %2520 = vmatprep.subr.mxu0 0.0
        %2521 = vmatpush1.msra.mxu0 0.0
        %2522 = vmatprep.subr.mxu0 0.0
        %2523 = vmatpush1.msra.mxu0 0.0
        %2524 = vmatprep.subr.mxu0 0.0
        %2525 = vmatpush1.msra.mxu0 0.0
        %2526 = vmatprep.subr.mxu0 0.0
        %2527 = vmatpush1.msra.mxu0 0.0
        %2528 = vmatprep.subr.mxu0 0.0
        %2529 = vmatpush1.msra.mxu0 0.0
        %2530 = vmatprep.subr.mxu0 0.0
        %2531 = vmatpush1.msra.mxu0 0.0
        %2532 = vmatprep.subr.mxu0 0.0
        %2533 = vmatpush1.msra.mxu0 0.0
        %2534 = vmatprep.subr.mxu0 0.0
        %2535 = vmatpush1.msra.mxu0 0.0
        %2536 = vmatprep.subr.mxu0 0.0
        %2537 = vmatpush1.msra.mxu0 0.0
        %2538 = vmatprep.subr.mxu0 0.0
        %2539 = vmatpush1.msra.mxu0 0.0
        %2540 = vmatprep.subr.mxu0 0.0
        %2541 = vmatpush1.msra.mxu0 0.0
        %2542 = vmatprep.subr.mxu0 0.0
        %2543 = vmatpush1.msra.mxu0 0.0
        %2544 = vmatprep.subr.mxu0 0.0
        %2545 = vmatpush1.msra.mxu0 0.0
        %2546 = vmatprep.subr.mxu0 0.0
        %2547 = vmatpush1.msra.mxu0 0.0
        %2548 = vmatprep.mubr.f32.mxu0 0.0
        %2549 = vmatmul.mubr.f32.gmra.mrb[0].mxu0 %v2431
        %v2550 = vpop.f32.mrb[0].mxu0
        %v2551 = vadd.f32 0.0, %v2550
        %v2552 = vpop.f32.mrb[0].mxu0
        %2553 = vmatprep.mubr.f32.mxu0 0.0
        %2554 = vmatmul.mubr.f32.gmra.mrb[0].mxu0 %v2432
        %v2555 = vpop.f32.mrb[0].mxu0
        %v2556 = vadd.f32 0.0, %v2555
        %v2557 = vpop.f32.mrb[0].mxu0
        %2558 = vmatprep.mubr.f32.mxu0 0.0
        %2559 = vmatmul.mubr.f32.gmra.mrb[0].mxu0 %v2433
        %v2560 = vpop.f32.mrb[0].mxu0
        %v2561 = vadd.f32 0.0, %v2560
        %v2562 = vpop.f32.mrb[0].mxu0
        %2563 = vmatprep.mubr.f32.mxu0 0.0
        %2564 = vmatmul.mubr.f32.gmra.mrb[0].mxu0 %v2434
        %v2565 = vpop.f32.mrb[0].mxu0
        %v2566 = vadd.f32 0.0, %v2565
        %v2567 = vpop.f32.mrb[0].mxu0
        %2568 = vmatprep.mubr.f32.mxu0 0.0
        %2569 = vmatmul.mubr.f32.gmra.mrb[0].mxu0 %v2435
        %v2570 = vpop.f32.mrb[0].mxu0
        %v2571 = vadd.f32 0.0, %v2570
        %v2572 = vpop.f32.mrb[0].mxu0
        %2573 = vmatprep.mubr.f32.mxu0 0.0
        %2574 = vmatmul.mubr.f32.gmra.mrb[0].mxu0 %v2436
        %v2575 = vpop.f32.mrb[0].mxu0
        %v2576 = vadd.f32 0.0, %v2575
        %v2577 = vpop.f32.mrb[0].mxu0
        %2578 = vmatprep.mubr.f32.mxu0 0.0
        %2579 = vmatmul.mubr.f32.gmra.mrb[0].mxu0 %v2437
        %v2580 = vpop.f32.mrb[0].mxu0
        %v2581 = vadd.f32 0.0, %v2580
        %v2582 = vpop.f32.mrb[0].mxu0
        %2583 = vmatprep.mubr.f32.mxu0 0.0
        %2584 = vmatmul.mubr.f32.gmra.mrb[0].mxu0 %v2438
        %v2585 = vpop.f32.mrb[0].mxu0
        %v2586 = vadd.f32 0.0, %v2585
        %v2587 = vpop.f32.mrb[0].mxu0
        %2588 = vmatprep.mubr.f32.mxu0 0.0
        %2589 = vmatmul.mubr.f32.gmra.mrb[0].mxu0 %v2439
        %v2590 = vpop.f32.mrb[0].mxu0
        %v2591 = vadd.f32 0.0, %v2590
        %v2592 = vpop.f32.mrb[0].mxu0
        %2593 = vmatprep.mubr.f32.mxu0 0.0
        %2594 = vmatmul.mubr.f32.gmra.mrb[0].mxu0 %v2440
        %v2595 = vpop.f32.mrb[0].mxu0
        %v2596 = vadd.f32 0.0, %v2595
        %v2597 = vpop.f32.mrb[0].mxu0
        %2598 = vmatprep.mubr.f32.mxu0 0.0
        %2599 = vmatmul.mubr.f32.gmra.mrb[0].mxu0 %v2441
        %v2600 = vpop.f32.mrb[0].mxu0
        %v2601 = vadd.f32 0.0, %v2600
        %v2602 = vpop.f32.mrb[0].mxu0
        %2603 = vmatprep.mubr.f32.mxu0 0.0
        %2604 = vmatmul.mubr.f32.gmra.mrb[0].mxu0 %v2442
        %v2605 = vpop.f32.mrb[0].mxu0
        %v2606 = vadd.f32 0.0, %v2605
        %v2607 = vpop.f32.mrb[0].mxu0
        %2608 = vmatprep.mubr.f32.mxu0 0.0
        %2609 = vmatmul.mubr.f32.gmra.mrb[0].mxu0 %v2443
        %v2610 = vpop.f32.mrb[0].mxu0
        %v2611 = vadd.f32 0.0, %v2610
        %v2612 = vpop.f32.mrb[0].mxu0
        %2613 = vmatprep.mubr.f32.mxu0 0.0
        %2614 = vmatmul.mubr.f32.gmra.mrb[0].mxu0 %v2444
        %v2615 = vpop.f32.mrb[0].mxu0
        %v2616 = vadd.f32 0.0, %v2615
        %v2617 = vpop.f32.mrb[0].mxu0
        %2618 = vmatprep.mubr.f32.mxu0 0.0
        %2619 = vmatmul.mubr.f32.gmra.mrb[0].mxu0 %v2445
        %v2620 = vpop.f32.mrb[0].mxu0
        %v2621 = vadd.f32 0.0, %v2620
        %v2622 = vpop.f32.mrb[0].mxu0
        %2623 = vmatprep.mubr.f32.mxu0 0.0
        %2624 = vmatmul.mubr.f32.gmra.mrb[0].mxu0 %v2446
        %v2625 = vpop.f32.mrb[0].mxu0
        %v2626 = vadd.f32 0.0, %v2625
        %v2627 = vpop.f32.mrb[0].mxu0
        %2628 = vmatprep.mubr.f32.mxu0 0.0
        %2629 = vmatmul.mubr.f32.gmra.mrb[0].mxu0 %v2447
        %v2630 = vpop.f32.mrb[0].mxu0
        %v2631 = vadd.f32 0.0, %v2630
        %v2632 = vpop.f32.mrb[0].mxu0
        %2633 = vmatprep.mubr.f32.mxu0 0.0
        %2634 = vmatmul.mubr.f32.gmra.mrb[0].mxu0 %v2448
        %v2635 = vpop.f32.mrb[0].mxu0
        %v2636 = vadd.f32 0.0, %v2635
        %v2637 = vpop.f32.mrb[0].mxu0
        %2638 = vmatprep.mubr.f32.mxu0 0.0
        %2639 = vmatmul.mubr.f32.gmra.mrb[0].mxu0 %v2449
        %v2640 = vpop.f32.mrb[0].mxu0
        %v2641 = vadd.f32 0.0, %v2640
        %v2642 = vpop.f32.mrb[0].mxu0
        %2643 = vmatprep.mubr.f32.mxu0 0.0
        %2644 = vmatmul.mubr.f32.gmra.mrb[0].mxu0 %v2450
        %v2645 = vpop.f32.mrb[0].mxu0
        %v2646 = vadd.f32 0.0, %v2645
        %v2647 = vpop.f32.mrb[0].mxu0
        %2648 = vmatprep.mubr.f32.mxu0 0.0
        %2649 = vmatmul.mubr.f32.gmra.mrb[0].mxu0 %v2451
        %v2650 = vpop.f32.mrb[0].mxu0
        %v2651 = vadd.f32 0.0, %v2650
        %v2652 = vpop.f32.mrb[0].mxu0
        %2653 = vmatprep.mubr.f32.mxu0 0.0
        %2654 = vmatmul.mubr.f32.gmra.mrb[0].mxu0 %v2452
        %v2655 = vpop.f32.mrb[0].mxu0
        %v2656 = vadd.f32 0.0, %v2655
        %v2657 = vpop.f32.mrb[0].mxu0
        %2658 = vmatprep.mubr.f32.mxu0 0.0
        %2659 = vmatmul.mubr.f32.gmra.mrb[0].mxu0 %v2453
        %v2660 = vpop.f32.mrb[0].mxu0
        %v2661 = vadd.f32 0.0, %v2660
        %v2662 = vpop.f32.mrb[0].mxu0
        %2663 = vmatprep.mubr.f32.mxu0 0.0
        %2664 = vmatmul.mubr.f32.gmra.mrb[0].mxu0 %v2454
        %v2665 = vpop.f32.mrb[0].mxu0
        %v2666 = vadd.f32 0.0, %v2665
        %v2667 = vpop.f32.mrb[0].mxu0
        %2668 = vmatprep.mubr.f32.mxu0 0.0
        %2669 = vmatmul.mubr.f32.gmra.mrb[0].mxu0 %v2455
        %v2670 = vpop.f32.mrb[0].mxu0
        %v2671 = vadd.f32 0.0, %v2670
        %v2672 = vpop.f32.mrb[0].mxu0
        %2673 = vmatprep.mubr.f32.mxu0 0.0
        %2674 = vmatmul.mubr.f32.gmra.mrb[0].mxu0 %v2456
        %v2675 = vpop.f32.mrb[0].mxu0
        %v2676 = vadd.f32 0.0, %v2675
        %v2677 = vpop.f32.mrb[0].mxu0
        %2678 = vmatprep.mubr.f32.mxu0 0.0
        %2679 = vmatmul.mubr.f32.gmra.mrb[0].mxu0 %v2457
        %v2680 = vpop.f32.mrb[0].mxu0
        %v2681 = vadd.f32 0.0, %v2680
        %v2682 = vpop.f32.mrb[0].mxu0
        %2683 = vmatprep.mubr.f32.mxu0 0.0
        %2684 = vmatmul.mubr.f32.gmra.mrb[0].mxu0 %v2458
        %v2685 = vpop.f32.mrb[0].mxu0
        %v2686 = vadd.f32 0.0, %v2685
        %v2687 = vpop.f32.mrb[0].mxu0
        %2688 = vmatprep.mubr.f32.mxu0 0.0
        %2689 = vmatmul.mubr.f32.gmra.mrb[0].mxu0 %v2459
        %v2690 = vpop.f32.mrb[0].mxu0
        %v2691 = vadd.f32 0.0, %v2690
        %v2692 = vpop.f32.mrb[0].mxu0
        %2693 = vmatprep.mubr.f32.mxu0 0.0
        %2694 = vmatmul.mubr.f32.gmra.mrb[0].mxu0 %v2460
        %v2695 = vpop.f32.mrb[0].mxu0
        %v2696 = vadd.f32 0.0, %v2695
        %v2697 = vpop.f32.mrb[0].mxu0
        %2698 = vmatprep.mubr.f32.mxu0 0.0
        %2699 = vmatmul.mubr.f32.gmra.mrb[0].mxu0 %v2461
        %v2700 = vpop.f32.mrb[0].mxu0
        %v2701 = vadd.f32 0.0, %v2700
        %v2702 = vpop.f32.mrb[0].mxu0
        %2703 = vmatprep.mubr.f32.mxu0 0.0
        %2704 = vmatmul.mubr.f32.gmra.mrb[0].mxu0 %v2462
        %v2705 = vpop.f32.mrb[0].mxu0
        %v2706 = vadd.f32 0.0, %v2705
        %v2707 = vpop.f32.mrb[0].mxu0
        %2708 = vmatprep.mubr.f32.mxu0 0.0
        %2709 = vmatmul.mubr.f32.gmra.mrb[0].mxu0 %v2463
        %v2710 = vpop.f32.mrb[0].mxu0
        %v2711 = vadd.f32 0.0, %v2710
        %v2712 = vpop.f32.mrb[0].mxu0
        %2713 = vmatprep.mubr.f32.mxu0 0.0
        %2714 = vmatmul.mubr.f32.gmra.mrb[0].mxu0 %v2464
        %v2715 = vpop.f32.mrb[0].mxu0
        %v2716 = vadd.f32 0.0, %v2715
        %v2717 = vpop.f32.mrb[0].mxu0
        %2718 = vmatprep.mubr.f32.mxu0 0.0
        %2719 = vmatmul.mubr.f32.gmra.mrb[0].mxu0 %v2465
        %v2720 = vpop.f32.mrb[0].mxu0
        %v2721 = vadd.f32 0.0, %v2720
        %v2722 = vpop.f32.mrb[0].mxu0
        %2723 = vmatprep.mubr.f32.mxu0 0.0
        %2724 = vmatmul.mubr.f32.gmra.mrb[0].mxu0 %v2466
        %v2725 = vpop.f32.mrb[0].mxu0
        %v2726 = vadd.f32 0.0, %v2725
        %v2727 = vpop.f32.mrb[0].mxu0
        %2728 = vdwg.mxu0
        %v2729 = vld [vmem:[%s286] sm:$0xff]
        %v2730 = vld [vmem:[%s286 + $0x8] sm:$0xff]
        %v2731 = vld [vmem:[%s286 + $0x10] sm:$0xff]
        %v2732 = vld [vmem:[%s286 + $0x18] sm:$0xff]
        %v2733 = vld [vmem:[%s286 + $0x20] sm:$0xff]
        %v2734 = vld [vmem:[%s286 + $0x28] sm:$0xff]
        %v2735 = vld [vmem:[%s286 + $0x30] sm:$0xff]
        %v2736 = vld [vmem:[%s286 + $0x38] sm:$0xff]
        %v2737 = vld [vmem:[%s286 + $0x40] sm:$0xff]
        %v2738 = vld [vmem:[%s286 + $0x48] sm:$0xff]
        %v2739 = vld [vmem:[%s286 + $0x50] sm:$0xff]
        %v2740 = vld [vmem:[%s286 + $0x58] sm:$0xff]
        %v2741 = vld [vmem:[%s286 + $0x60] sm:$0xff]
        %v2742 = vld [vmem:[%s286 + $0x68] sm:$0xff]
        %v2743 = vld [vmem:[%s286 + $0x70] sm:$0xff]
        %v2744 = vld [vmem:[%s286 + $0x78] sm:$0xff]
        %v2745 = vld [vmem:[%s286 + $0x80] sm:$0xff]
        %v2746 = vld [vmem:[%s286 + $0x88] sm:$0xff]
        %v2747 = vld [vmem:[%s286 + $0x90] sm:$0xff]
        %v2748 = vld [vmem:[%s286 + $0x98] sm:$0xff]
        %v2749 = vld [vmem:[%s286 + $0xa0] sm:$0xff]
        %v2750 = vld [vmem:[%s286 + $0xa8] sm:$0xff]
        %v2751 = vld [vmem:[%s286 + $0xb0] sm:$0xff]
        %v2752 = vld [vmem:[%s286 + $0xb8] sm:$0xff]
        %v2753 = vld [vmem:[%s286 + $0xc0] sm:$0xff]
        %v2754 = vld [vmem:[%s286 + $0xc8] sm:$0xff]
        %v2755 = vld [vmem:[%s286 + $0xd0] sm:$0xff]
        %v2756 = vld [vmem:[%s286 + $0xd8] sm:$0xff]
        %v2757 = vld [vmem:[%s286 + $0xe0] sm:$0xff]
        %v2758 = vld [vmem:[%s286 + $0xe8] sm:$0xff]
        %v2759 = vld [vmem:[%s286 + $0xf0] sm:$0xff]
        %v2760 = vld [vmem:[%s286 + $0xf8] sm:$0xff]
        %v2761 = vld [vmem:[%s286 + $0x100] sm:$0xff]
        %v2762 = vld [vmem:[%s286 + $0x108] sm:$0xff]
        %v2763 = vld [vmem:[%s286 + $0x110] sm:$0xff]
        %v2764 = vld [vmem:[%s286 + $0x118] sm:$0xff]
        %v2765 = vadd.f32 %v2729, %v2551
        %v2766 = vadd.f32 %v2730, %v2556
        %v2767 = vadd.f32 %v2731, %v2561
        %v2768 = vadd.f32 %v2732, %v2566
        %v2769 = vadd.f32 %v2733, %v2571
        %v2770 = vadd.f32 %v2734, %v2576
        %v2771 = vadd.f32 %v2735, %v2581
        %v2772 = vadd.f32 %v2736, %v2586
        %v2773 = vadd.f32 %v2737, %v2591
        %v2774 = vadd.f32 %v2738, %v2596
        %v2775 = vadd.f32 %v2739, %v2601
        %v2776 = vadd.f32 %v2740, %v2606
        %v2777 = vadd.f32 %v2741, %v2611
        %v2778 = vadd.f32 %v2742, %v2616
        %v2779 = vadd.f32 %v2743, %v2621
        %v2780 = vadd.f32 %v2744, %v2626
        %v2781 = vadd.f32 %v2745, %v2631
        %v2782 = vadd.f32 %v2746, %v2636
        %v2783 = vadd.f32 %v2747, %v2641
        %v2784 = vadd.f32 %v2748, %v2646
        %v2785 = vadd.f32 %v2749, %v2651
        %v2786 = vadd.f32 %v2750, %v2656
        %v2787 = vadd.f32 %v2751, %v2661
        %v2788 = vadd.f32 %v2752, %v2666
        %v2789 = vadd.f32 %v2753, %v2671
        %v2790 = vadd.f32 %v2754, %v2676
        %v2791 = vadd.f32 %v2755, %v2681
        %v2792 = vadd.f32 %v2756, %v2686
        %v2793 = vadd.f32 %v2757, %v2691
        %v2794 = vadd.f32 %v2758, %v2696
        %v2795 = vadd.f32 %v2759, %v2701
        %v2796 = vadd.f32 %v2760, %v2706
        %v2797 = vadd.f32 %v2761, %v2711
        %v2798 = vadd.f32 %v2762, %v2716
        %v2799 = vadd.f32 %v2763, %v2721
        %v2800 = vadd.f32 %v2764, %v2726
        %2801 = vst [vmem:[%s286] sm:$0xff] %v2765
        %2802 = vst [vmem:[%s286 + $0x8] sm:$0xff] %v2766
        %2803 = vst [vmem:[%s286 + $0x10] sm:$0xff] %v2767
        %2804 = vst [vmem:[%s286 + $0x18] sm:$0xff] %v2768
        %2805 = vst [vmem:[%s286 + $0x20] sm:$0xff] %v2769
        %2806 = vst [vmem:[%s286 + $0x28] sm:$0xff] %v2770
        %2807 = vst [vmem:[%s286 + $0x30] sm:$0xff] %v2771
        %2808 = vst [vmem:[%s286 + $0x38] sm:$0xff] %v2772
        %2809 = vst [vmem:[%s286 + $0x40] sm:$0xff] %v2773
        %2810 = vst [vmem:[%s286 + $0x48] sm:$0xff] %v2774
        %2811 = vst [vmem:[%s286 + $0x50] sm:$0xff] %v2775
        %2812 = vst [vmem:[%s286 + $0x58] sm:$0xff] %v2776
        %2813 = vst [vmem:[%s286 + $0x60] sm:$0xff] %v2777
        %2814 = vst [vmem:[%s286 + $0x68] sm:$0xff] %v2778
        %2815 = vst [vmem:[%s286 + $0x70] sm:$0xff] %v2779
        %2816 = vst [vmem:[%s286 + $0x78] sm:$0xff] %v2780
        %2817 = vst [vmem:[%s286 + $0x80] sm:$0xff] %v2781
        %2818 = vst [vmem:[%s286 + $0x88] sm:$0xff] %v2782
        %2819 = vst [vmem:[%s286 + $0x90] sm:$0xff] %v2783
        %2820 = vst [vmem:[%s286 + $0x98] sm:$0xff] %v2784
        %2821 = vst [vmem:[%s286 + $0xa0] sm:$0xff] %v2785
        %2822 = vst [vmem:[%s286 + $0xa8] sm:$0xff] %v2786
        %2823 = vst [vmem:[%s286 + $0xb0] sm:$0xff] %v2787
        %2824 = vst [vmem:[%s286 + $0xb8] sm:$0xff] %v2788
        %2825 = vst [vmem:[%s286 + $0xc0] sm:$0xff] %v2789
        %2826 = vst [vmem:[%s286 + $0xc8] sm:$0xff] %v2790
        %2827 = vst [vmem:[%s286 + $0xd0] sm:$0xff] %v2791
        %2828 = vst [vmem:[%s286 + $0xd8] sm:$0xff] %v2792
        %2829 = vst [vmem:[%s286 + $0xe0] sm:$0xff] %v2793
        %2830 = vst [vmem:[%s286 + $0xe8] sm:$0xff] %v2794
        %2831 = vst [vmem:[%s286 + $0xf0] sm:$0xff] %v2795
        %2832 = vst [vmem:[%s286 + $0xf8] sm:$0xff] %v2796
        %2833 = vst [vmem:[%s286 + $0x100] sm:$0xff] %v2797
        %2834 = vst [vmem:[%s286 + $0x108] sm:$0xff] %v2798
        %2835 = vst [vmem:[%s286 + $0x110] sm:$0xff] %v2799
        %2836 = vst [vmem:[%s286 + $0x118] sm:$0xff] %v2800
        %v2837 = vld [vmem:[#allocation2 + $0x13] sm:$0xff]
        %v2838 = vld [vmem:[#allocation2 + $0x1b] sm:$0xff]
        %v2839 = vld [vmem:[#allocation2 + $0x23] sm:$0xff]
        %v2840 = vld [vmem:[#allocation2 + $0x2b] sm:$0xff]
        %v2841 = vld [vmem:[#allocation2 + $0x33] sm:$0xff]
        %v2842 = vld [vmem:[#allocation2 + $0x3b] sm:$0xff]
        %v2843 = vld [vmem:[#allocation2 + $0x43] sm:$0xff]
        %v2844 = vld [vmem:[#allocation2 + $0x4b] sm:$0xff]
        %v2845 = vld [vmem:[#allocation2 + $0x53] sm:$0xff]
        %v2846 = vld [vmem:[#allocation2 + $0x5b] sm:$0xff]
        %v2847 = vld [vmem:[#allocation2 + $0x63] sm:$0xff]
        %v2848 = vld [vmem:[#allocation2 + $0x6b] sm:$0xff]
        %v2849 = vld [vmem:[#allocation2 + $0x73] sm:$0xff]
        %v2850 = vld [vmem:[#allocation2 + $0x7b] sm:$0xff]
        %v2851 = vld [vmem:[#allocation2 + $0x83] sm:$0xff]
        %v2852 = vld [vmem:[#allocation2 + $0x8b] sm:$0xff]
        %v2853 = vld [vmem:[#allocation2 + $0x93] sm:$0xff]
        %v2854 = vld [vmem:[#allocation2 + $0x9b] sm:$0xff]
        %v2855 = vld [vmem:[#allocation2 + $0xa3] sm:$0xff]
        %v2856 = vld [vmem:[#allocation2 + $0xab] sm:$0xff]
        %v2857 = vld [vmem:[#allocation2 + $0xb3] sm:$0xff]
        %v2858 = vld [vmem:[#allocation2 + $0xbb] sm:$0xff]
        %v2859 = vld [vmem:[#allocation2 + $0xc3] sm:$0xff]
        %v2860 = vld [vmem:[#allocation2 + $0xcb] sm:$0xff]
        %v2861 = vld [vmem:[#allocation2 + $0xd3] sm:$0xff]
        %v2862 = vld [vmem:[#allocation2 + $0xdb] sm:$0xff]
        %v2863 = vld [vmem:[#allocation2 + $0xe3] sm:$0xff]
        %v2864 = vld [vmem:[#allocation2 + $0xeb] sm:$0xff]
        %v2865 = vld [vmem:[#allocation2 + $0xf3] sm:$0xff]
        %v2866 = vld [vmem:[#allocation2 + $0xfb] sm:$0xff]
        %v2867 = vld [vmem:[#allocation2 + $0x103] sm:$0xff]
        %v2868 = vld [vmem:[#allocation2 + $0x10b] sm:$0xff]
        %v2869 = vld [vmem:[#allocation2 + $0x113] sm:$0xff]
        %v2870 = vld [vmem:[#allocation2 + $0x11b] sm:$0xff]
        %v2871 = vld [vmem:[#allocation2 + $0x123] sm:$0xff]
        %v2872 = vld [vmem:[#allocation2 + $0x12b] sm:$0xff]
        %s2873 = scalar_lea.vmem [#allocation3], 512
        %v2874 = vld [vmem:[%s2873] sm:$0xff]
        %v2875 = vld [vmem:[%s2873 + $0x8] sm:$0xff]
        %v2876 = vld [vmem:[%s2873 + $0x10] sm:$0xff]
        %v2877 = vld [vmem:[%s2873 + $0x18] sm:$0xff]
        %v2878 = vld [vmem:[%s2873 + $0x20] sm:$0xff]
        %v2879 = vld [vmem:[%s2873 + $0x28] sm:$0xff]
        %v2880 = vld [vmem:[%s2873 + $0x30] sm:$0xff]
        %v2881 = vld [vmem:[%s2873 + $0x38] sm:$0xff]
        %v2882 = vld [vmem:[%s2873 + $0x40] sm:$0xff]
        %v2883 = vld [vmem:[%s2873 + $0x48] sm:$0xff]
        %v2884 = vld [vmem:[%s2873 + $0x50] sm:$0xff]
        %v2885 = vld [vmem:[%s2873 + $0x58] sm:$0xff]
        %v2886 = vld [vmem:[%s2873 + $0x60] sm:$0xff]
        %v2887 = vld [vmem:[%s2873 + $0x68] sm:$0xff]
        %v2888 = vld [vmem:[%s2873 + $0x70] sm:$0xff]
        %v2889 = vld [vmem:[%s2873 + $0x78] sm:$0xff]
        %2890 = vmatprep.subr.mxu0 0.0
        %2891 = vmatpush1.msra.mxu0 %v2874
        %2892 = vmatprep.subr.mxu0 0.0
        %2893 = vmatpush1.msra.mxu0 %v2875
        %2894 = vmatprep.subr.mxu0 0.0
        %2895 = vmatpush1.msra.mxu0 %v2876
        %2896 = vmatprep.subr.mxu0 0.0
        %2897 = vmatpush1.msra.mxu0 %v2877
        %2898 = vmatprep.subr.mxu0 0.0
        %2899 = vmatpush1.msra.mxu0 %v2878
        %2900 = vmatprep.subr.mxu0 0.0
        %2901 = vmatpush1.msra.mxu0 %v2879
        %2902 = vmatprep.subr.mxu0 0.0
        %2903 = vmatpush1.msra.mxu0 %v2880
        %2904 = vmatprep.subr.mxu0 0.0
        %2905 = vmatpush1.msra.mxu0 %v2881
        %2906 = vmatprep.subr.mxu0 0.0
        %2907 = vmatpush1.msra.mxu0 %v2882
        %2908 = vmatprep.subr.mxu0 0.0
        %2909 = vmatpush1.msra.mxu0 %v2883
        %2910 = vmatprep.subr.mxu0 0.0
        %2911 = vmatpush1.msra.mxu0 %v2884
        %2912 = vmatprep.subr.mxu0 0.0
        %2913 = vmatpush1.msra.mxu0 %v2885
        %2914 = vmatprep.subr.mxu0 0.0
        %2915 = vmatpush1.msra.mxu0 %v2886
        %2916 = vmatprep.subr.mxu0 0.0
        %2917 = vmatpush1.msra.mxu0 %v2887
        %2918 = vmatprep.subr.mxu0 0.0
        %2919 = vmatpush1.msra.mxu0 %v2888
        %2920 = vmatprep.subr.mxu0 0.0
        %2921 = vmatpush1.msra.mxu0 %v2889
        %2922 = vmatprep.subr.mxu0 0.0
        %2923 = vmatpush1.msra.mxu0 0.0
        %2924 = vmatprep.subr.mxu0 0.0
        %2925 = vmatpush1.msra.mxu0 0.0
        %2926 = vmatprep.subr.mxu0 0.0
        %2927 = vmatpush1.msra.mxu0 0.0
        %2928 = vmatprep.subr.mxu0 0.0
        %2929 = vmatpush1.msra.mxu0 0.0
        %2930 = vmatprep.subr.mxu0 0.0
        %2931 = vmatpush1.msra.mxu0 0.0
        %2932 = vmatprep.subr.mxu0 0.0
        %2933 = vmatpush1.msra.mxu0 0.0
        %2934 = vmatprep.subr.mxu0 0.0
        %2935 = vmatpush1.msra.mxu0 0.0
        %2936 = vmatprep.subr.mxu0 0.0
        %2937 = vmatpush1.msra.mxu0 0.0
        %2938 = vmatprep.subr.mxu0 0.0
        %2939 = vmatpush1.msra.mxu0 0.0
        %2940 = vmatprep.subr.mxu0 0.0
        %2941 = vmatpush1.msra.mxu0 0.0
        %2942 = vmatprep.subr.mxu0 0.0
        %2943 = vmatpush1.msra.mxu0 0.0
        %2944 = vmatprep.subr.mxu0 0.0
        %2945 = vmatpush1.msra.mxu0 0.0
        %2946 = vmatprep.subr.mxu0 0.0
        %2947 = vmatpush1.msra.mxu0 0.0
        %2948 = vmatprep.subr.mxu0 0.0
        %2949 = vmatpush1.msra.mxu0 0.0
        %2950 = vmatprep.subr.mxu0 0.0
        %2951 = vmatpush1.msra.mxu0 0.0
        %2952 = vmatprep.subr.mxu0 0.0
        %2953 = vmatpush1.msra.mxu0 0.0
        %2954 = vmatprep.mubr.f32.mxu0 0.0
        %2955 = vmatmul.mubr.f32.gmra.mrb[0].mxu0 %v2837
        %v2956 = vpop.f32.mrb[0].mxu0
        %v2957 = vadd.f32 0.0, %v2956
        %v2958 = vpop.f32.mrb[0].mxu0
        %2959 = vmatprep.mubr.f32.mxu0 0.0
        %2960 = vmatmul.mubr.f32.gmra.mrb[0].mxu0 %v2838
        %v2961 = vpop.f32.mrb[0].mxu0
        %v2962 = vadd.f32 0.0, %v2961
        %v2963 = vpop.f32.mrb[0].mxu0
        %2964 = vmatprep.mubr.f32.mxu0 0.0
        %2965 = vmatmul.mubr.f32.gmra.mrb[0].mxu0 %v2839
        %v2966 = vpop.f32.mrb[0].mxu0
        %v2967 = vadd.f32 0.0, %v2966
        %v2968 = vpop.f32.mrb[0].mxu0
        %2969 = vmatprep.mubr.f32.mxu0 0.0
        %2970 = vmatmul.mubr.f32.gmra.mrb[0].mxu0 %v2840
        %v2971 = vpop.f32.mrb[0].mxu0
        %v2972 = vadd.f32 0.0, %v2971
        %v2973 = vpop.f32.mrb[0].mxu0
        %2974 = vmatprep.mubr.f32.mxu0 0.0
        %2975 = vmatmul.mubr.f32.gmra.mrb[0].mxu0 %v2841
        %v2976 = vpop.f32.mrb[0].mxu0
        %v2977 = vadd.f32 0.0, %v2976
        %v2978 = vpop.f32.mrb[0].mxu0
        %2979 = vmatprep.mubr.f32.mxu0 0.0
        %2980 = vmatmul.mubr.f32.gmra.mrb[0].mxu0 %v2842
        %v2981 = vpop.f32.mrb[0].mxu0
        %v2982 = vadd.f32 0.0, %v2981
        %v2983 = vpop.f32.mrb[0].mxu0
        %2984 = vmatprep.mubr.f32.mxu0 0.0
        %2985 = vmatmul.mubr.f32.gmra.mrb[0].mxu0 %v2843
        %v2986 = vpop.f32.mrb[0].mxu0
        %v2987 = vadd.f32 0.0, %v2986
        %v2988 = vpop.f32.mrb[0].mxu0
        %2989 = vmatprep.mubr.f32.mxu0 0.0
        %2990 = vmatmul.mubr.f32.gmra.mrb[0].mxu0 %v2844
        %v2991 = vpop.f32.mrb[0].mxu0
        %v2992 = vadd.f32 0.0, %v2991
        %v2993 = vpop.f32.mrb[0].mxu0
        %2994 = vmatprep.mubr.f32.mxu0 0.0
        %2995 = vmatmul.mubr.f32.gmra.mrb[0].mxu0 %v2845
        %v2996 = vpop.f32.mrb[0].mxu0
        %v2997 = vadd.f32 0.0, %v2996
        %v2998 = vpop.f32.mrb[0].mxu0
        %2999 = vmatprep.mubr.f32.mxu0 0.0
        %3000 = vmatmul.mubr.f32.gmra.mrb[0].mxu0 %v2846
        %v3001 = vpop.f32.mrb[0].mxu0
        %v3002 = vadd.f32 0.0, %v3001
        %v3003 = vpop.f32.mrb[0].mxu0
        %3004 = vmatprep.mubr.f32.mxu0 0.0
        %3005 = vmatmul.mubr.f32.gmra.mrb[0].mxu0 %v2847
        %v3006 = vpop.f32.mrb[0].mxu0
        %v3007 = vadd.f32 0.0, %v3006
        %v3008 = vpop.f32.mrb[0].mxu0
        %3009 = vmatprep.mubr.f32.mxu0 0.0
        %3010 = vmatmul.mubr.f32.gmra.mrb[0].mxu0 %v2848
        %v3011 = vpop.f32.mrb[0].mxu0
        %v3012 = vadd.f32 0.0, %v3011
        %v3013 = vpop.f32.mrb[0].mxu0
        %3014 = vmatprep.mubr.f32.mxu0 0.0
        %3015 = vmatmul.mubr.f32.gmra.mrb[0].mxu0 %v2849
        %v3016 = vpop.f32.mrb[0].mxu0
        %v3017 = vadd.f32 0.0, %v3016
        %v3018 = vpop.f32.mrb[0].mxu0
        %3019 = vmatprep.mubr.f32.mxu0 0.0
        %3020 = vmatmul.mubr.f32.gmra.mrb[0].mxu0 %v2850
        %v3021 = vpop.f32.mrb[0].mxu0
        %v3022 = vadd.f32 0.0, %v3021
        %v3023 = vpop.f32.mrb[0].mxu0
        %3024 = vmatprep.mubr.f32.mxu0 0.0
        %3025 = vmatmul.mubr.f32.gmra.mrb[0].mxu0 %v2851
        %v3026 = vpop.f32.mrb[0].mxu0
        %v3027 = vadd.f32 0.0, %v3026
        %v3028 = vpop.f32.mrb[0].mxu0
        %3029 = vmatprep.mubr.f32.mxu0 0.0
        %3030 = vmatmul.mubr.f32.gmra.mrb[0].mxu0 %v2852
        %v3031 = vpop.f32.mrb[0].mxu0
        %v3032 = vadd.f32 0.0, %v3031
        %v3033 = vpop.f32.mrb[0].mxu0
        %3034 = vmatprep.mubr.f32.mxu0 0.0
        %3035 = vmatmul.mubr.f32.gmra.mrb[0].mxu0 %v2853
        %v3036 = vpop.f32.mrb[0].mxu0
        %v3037 = vadd.f32 0.0, %v3036
        %v3038 = vpop.f32.mrb[0].mxu0
        %3039 = vmatprep.mubr.f32.mxu0 0.0
        %3040 = vmatmul.mubr.f32.gmra.mrb[0].mxu0 %v2854
        %v3041 = vpop.f32.mrb[0].mxu0
        %v3042 = vadd.f32 0.0, %v3041
        %v3043 = vpop.f32.mrb[0].mxu0
        %3044 = vmatprep.mubr.f32.mxu0 0.0
        %3045 = vmatmul.mubr.f32.gmra.mrb[0].mxu0 %v2855
        %v3046 = vpop.f32.mrb[0].mxu0
        %v3047 = vadd.f32 0.0, %v3046
        %v3048 = vpop.f32.mrb[0].mxu0
        %3049 = vmatprep.mubr.f32.mxu0 0.0
        %3050 = vmatmul.mubr.f32.gmra.mrb[0].mxu0 %v2856
        %v3051 = vpop.f32.mrb[0].mxu0
        %v3052 = vadd.f32 0.0, %v3051
        %v3053 = vpop.f32.mrb[0].mxu0
        %3054 = vmatprep.mubr.f32.mxu0 0.0
        %3055 = vmatmul.mubr.f32.gmra.mrb[0].mxu0 %v2857
        %v3056 = vpop.f32.mrb[0].mxu0
        %v3057 = vadd.f32 0.0, %v3056
        %v3058 = vpop.f32.mrb[0].mxu0
        %3059 = vmatprep.mubr.f32.mxu0 0.0
        %3060 = vmatmul.mubr.f32.gmra.mrb[0].mxu0 %v2858
        %v3061 = vpop.f32.mrb[0].mxu0
        %v3062 = vadd.f32 0.0, %v3061
        %v3063 = vpop.f32.mrb[0].mxu0
        %3064 = vmatprep.mubr.f32.mxu0 0.0
        %3065 = vmatmul.mubr.f32.gmra.mrb[0].mxu0 %v2859
        %v3066 = vpop.f32.mrb[0].mxu0
        %v3067 = vadd.f32 0.0, %v3066
        %v3068 = vpop.f32.mrb[0].mxu0
        %3069 = vmatprep.mubr.f32.mxu0 0.0
        %3070 = vmatmul.mubr.f32.gmra.mrb[0].mxu0 %v2860
        %v3071 = vpop.f32.mrb[0].mxu0
        %v3072 = vadd.f32 0.0, %v3071
        %v3073 = vpop.f32.mrb[0].mxu0
        %3074 = vmatprep.mubr.f32.mxu0 0.0
        %3075 = vmatmul.mubr.f32.gmra.mrb[0].mxu0 %v2861
        %v3076 = vpop.f32.mrb[0].mxu0
        %v3077 = vadd.f32 0.0, %v3076
        %v3078 = vpop.f32.mrb[0].mxu0
        %3079 = vmatprep.mubr.f32.mxu0 0.0
        %3080 = vmatmul.mubr.f32.gmra.mrb[0].mxu0 %v2862
        %v3081 = vpop.f32.mrb[0].mxu0
        %v3082 = vadd.f32 0.0, %v3081
        %v3083 = vpop.f32.mrb[0].mxu0
        %3084 = vmatprep.mubr.f32.mxu0 0.0
        %3085 = vmatmul.mubr.f32.gmra.mrb[0].mxu0 %v2863
        %v3086 = vpop.f32.mrb[0].mxu0
        %v3087 = vadd.f32 0.0, %v3086
        %v3088 = vpop.f32.mrb[0].mxu0
        %3089 = vmatprep.mubr.f32.mxu0 0.0
        %3090 = vmatmul.mubr.f32.gmra.mrb[0].mxu0 %v2864
        %v3091 = vpop.f32.mrb[0].mxu0
        %v3092 = vadd.f32 0.0, %v3091
        %v3093 = vpop.f32.mrb[0].mxu0
        %3094 = vmatprep.mubr.f32.mxu0 0.0
        %3095 = vmatmul.mubr.f32.gmra.mrb[0].mxu0 %v2865
        %v3096 = vpop.f32.mrb[0].mxu0
        %v3097 = vadd.f32 0.0, %v3096
        %v3098 = vpop.f32.mrb[0].mxu0
        %3099 = vmatprep.mubr.f32.mxu0 0.0
        %3100 = vmatmul.mubr.f32.gmra.mrb[0].mxu0 %v2866
        %v3101 = vpop.f32.mrb[0].mxu0
        %v3102 = vadd.f32 0.0, %v3101
        %v3103 = vpop.f32.mrb[0].mxu0
        %3104 = vmatprep.mubr.f32.mxu0 0.0
        %3105 = vmatmul.mubr.f32.gmra.mrb[0].mxu0 %v2867
        %v3106 = vpop.f32.mrb[0].mxu0
        %v3107 = vadd.f32 0.0, %v3106
        %v3108 = vpop.f32.mrb[0].mxu0
        %3109 = vmatprep.mubr.f32.mxu0 0.0
        %3110 = vmatmul.mubr.f32.gmra.mrb[0].mxu0 %v2868
        %v3111 = vpop.f32.mrb[0].mxu0
        %v3112 = vadd.f32 0.0, %v3111
        %v3113 = vpop.f32.mrb[0].mxu0
        %3114 = vmatprep.mubr.f32.mxu0 0.0
        %3115 = vmatmul.mubr.f32.gmra.mrb[0].mxu0 %v2869
        %v3116 = vpop.f32.mrb[0].mxu0
        %v3117 = vadd.f32 0.0, %v3116
        %v3118 = vpop.f32.mrb[0].mxu0
        %3119 = vmatprep.mubr.f32.mxu0 0.0
        %3120 = vmatmul.mubr.f32.gmra.mrb[0].mxu0 %v2870
        %v3121 = vpop.f32.mrb[0].mxu0
        %v3122 = vadd.f32 0.0, %v3121
        %v3123 = vpop.f32.mrb[0].mxu0
        %3124 = vmatprep.mubr.f32.mxu0 0.0
        %3125 = vmatmul.mubr.f32.gmra.mrb[0].mxu0 %v2871
        %v3126 = vpop.f32.mrb[0].mxu0
        %v3127 = vadd.f32 0.0, %v3126
        %v3128 = vpop.f32.mrb[0].mxu0
        %3129 = vmatprep.mubr.f32.mxu0 0.0
        %3130 = vmatmul.mubr.f32.gmra.mrb[0].mxu0 %v2872
        %v3131 = vpop.f32.mrb[0].mxu0
        %v3132 = vadd.f32 0.0, %v3131
        %v3133 = vpop.f32.mrb[0].mxu0
        %3134 = vdwg.mxu0
        %v3135 = vld [vmem:[%s286] sm:$0xff]
        %v3136 = vld [vmem:[%s286 + $0x8] sm:$0xff]
        %v3137 = vld [vmem:[%s286 + $0x10] sm:$0xff]
        %v3138 = vld [vmem:[%s286 + $0x18] sm:$0xff]
        %v3139 = vld [vmem:[%s286 + $0x20] sm:$0xff]
        %v3140 = vld [vmem:[%s286 + $0x28] sm:$0xff]
        %v3141 = vld [vmem:[%s286 + $0x30] sm:$0xff]
        %v3142 = vld [vmem:[%s286 + $0x38] sm:$0xff]
        %v3143 = vld [vmem:[%s286 + $0x40] sm:$0xff]
        %v3144 = vld [vmem:[%s286 + $0x48] sm:$0xff]
        %v3145 = vld [vmem:[%s286 + $0x50] sm:$0xff]
        %v3146 = vld [vmem:[%s286 + $0x58] sm:$0xff]
        %v3147 = vld [vmem:[%s286 + $0x60] sm:$0xff]
        %v3148 = vld [vmem:[%s286 + $0x68] sm:$0xff]
        %v3149 = vld [vmem:[%s286 + $0x70] sm:$0xff]
        %v3150 = vld [vmem:[%s286 + $0x78] sm:$0xff]
        %v3151 = vld [vmem:[%s286 + $0x80] sm:$0xff]
        %v3152 = vld [vmem:[%s286 + $0x88] sm:$0xff]
        %v3153 = vld [vmem:[%s286 + $0x90] sm:$0xff]
        %v3154 = vld [vmem:[%s286 + $0x98] sm:$0xff]
        %v3155 = vld [vmem:[%s286 + $0xa0] sm:$0xff]
        %v3156 = vld [vmem:[%s286 + $0xa8] sm:$0xff]
        %v3157 = vld [vmem:[%s286 + $0xb0] sm:$0xff]
        %v3158 = vld [vmem:[%s286 + $0xb8] sm:$0xff]
        %v3159 = vld [vmem:[%s286 + $0xc0] sm:$0xff]
        %v3160 = vld [vmem:[%s286 + $0xc8] sm:$0xff]
        %v3161 = vld [vmem:[%s286 + $0xd0] sm:$0xff]
        %v3162 = vld [vmem:[%s286 + $0xd8] sm:$0xff]
        %v3163 = vld [vmem:[%s286 + $0xe0] sm:$0xff]
        %v3164 = vld [vmem:[%s286 + $0xe8] sm:$0xff]
        %v3165 = vld [vmem:[%s286 + $0xf0] sm:$0xff]
        %v3166 = vld [vmem:[%s286 + $0xf8] sm:$0xff]
        %v3167 = vld [vmem:[%s286 + $0x100] sm:$0xff]
        %v3168 = vld [vmem:[%s286 + $0x108] sm:$0xff]
        %v3169 = vld [vmem:[%s286 + $0x110] sm:$0xff]
        %v3170 = vld [vmem:[%s286 + $0x118] sm:$0xff]
        %v3171 = vadd.f32 %v3135, %v2957
        %v3172 = vadd.f32 %v3136, %v2962
        %v3173 = vadd.f32 %v3137, %v2967
        %v3174 = vadd.f32 %v3138, %v2972
        %v3175 = vadd.f32 %v3139, %v2977
        %v3176 = vadd.f32 %v3140, %v2982
        %v3177 = vadd.f32 %v3141, %v2987
        %v3178 = vadd.f32 %v3142, %v2992
        %v3179 = vadd.f32 %v3143, %v2997
        %v3180 = vadd.f32 %v3144, %v3002
        %v3181 = vadd.f32 %v3145, %v3007
        %v3182 = vadd.f32 %v3146, %v3012
        %v3183 = vadd.f32 %v3147, %v3017
        %v3184 = vadd.f32 %v3148, %v3022
        %v3185 = vadd.f32 %v3149, %v3027
        %v3186 = vadd.f32 %v3150, %v3032
        %v3187 = vadd.f32 %v3151, %v3037
        %v3188 = vadd.f32 %v3152, %v3042
        %v3189 = vadd.f32 %v3153, %v3047
        %v3190 = vadd.f32 %v3154, %v3052
        %v3191 = vadd.f32 %v3155, %v3057
        %v3192 = vadd.f32 %v3156, %v3062
        %v3193 = vadd.f32 %v3157, %v3067
        %v3194 = vadd.f32 %v3158, %v3072
        %v3195 = vadd.f32 %v3159, %v3077
        %v3196 = vadd.f32 %v3160, %v3082
        %v3197 = vadd.f32 %v3161, %v3087
        %v3198 = vadd.f32 %v3162, %v3092
        %v3199 = vadd.f32 %v3163, %v3097
        %v3200 = vadd.f32 %v3164, %v3102
        %v3201 = vadd.f32 %v3165, %v3107
        %v3202 = vadd.f32 %v3166, %v3112
        %v3203 = vadd.f32 %v3167, %v3117
        %v3204 = vadd.f32 %v3168, %v3122
        %v3205 = vadd.f32 %v3169, %v3127
        %v3206 = vadd.f32 %v3170, %v3132
        %3207 = vst [vmem:[%s286] sm:$0xff] %v3171
        %3208 = vst [vmem:[%s286 + $0x8] sm:$0xff] %v3172
        %3209 = vst [vmem:[%s286 + $0x10] sm:$0xff] %v3173
        %3210 = vst [vmem:[%s286 + $0x18] sm:$0xff] %v3174
        %3211 = vst [vmem:[%s286 + $0x20] sm:$0xff] %v3175
        %3212 = vst [vmem:[%s286 + $0x28] sm:$0xff] %v3176
        %3213 = vst [vmem:[%s286 + $0x30] sm:$0xff] %v3177
        %3214 = vst [vmem:[%s286 + $0x38] sm:$0xff] %v3178
        %3215 = vst [vmem:[%s286 + $0x40] sm:$0xff] %v3179
        %3216 = vst [vmem:[%s286 + $0x48] sm:$0xff] %v3180
        %3217 = vst [vmem:[%s286 + $0x50] sm:$0xff] %v3181
        %3218 = vst [vmem:[%s286 + $0x58] sm:$0xff] %v3182
        %3219 = vst [vmem:[%s286 + $0x60] sm:$0xff] %v3183
        %3220 = vst [vmem:[%s286 + $0x68] sm:$0xff] %v3184
        %3221 = vst [vmem:[%s286 + $0x70] sm:$0xff] %v3185
        %3222 = vst [vmem:[%s286 + $0x78] sm:$0xff] %v3186
        %3223 = vst [vmem:[%s286 + $0x80] sm:$0xff] %v3187
        %3224 = vst [vmem:[%s286 + $0x88] sm:$0xff] %v3188
        %3225 = vst [vmem:[%s286 + $0x90] sm:$0xff] %v3189
        %3226 = vst [vmem:[%s286 + $0x98] sm:$0xff] %v3190
        %3227 = vst [vmem:[%s286 + $0xa0] sm:$0xff] %v3191
        %3228 = vst [vmem:[%s286 + $0xa8] sm:$0xff] %v3192
        %3229 = vst [vmem:[%s286 + $0xb0] sm:$0xff] %v3193
        %3230 = vst [vmem:[%s286 + $0xb8] sm:$0xff] %v3194
        %3231 = vst [vmem:[%s286 + $0xc0] sm:$0xff] %v3195
        %3232 = vst [vmem:[%s286 + $0xc8] sm:$0xff] %v3196
        %3233 = vst [vmem:[%s286 + $0xd0] sm:$0xff] %v3197
        %3234 = vst [vmem:[%s286 + $0xd8] sm:$0xff] %v3198
        %3235 = vst [vmem:[%s286 + $0xe0] sm:$0xff] %v3199
        %3236 = vst [vmem:[%s286 + $0xe8] sm:$0xff] %v3200
        %3237 = vst [vmem:[%s286 + $0xf0] sm:$0xff] %v3201
        %3238 = vst [vmem:[%s286 + $0xf8] sm:$0xff] %v3202
        %3239 = vst [vmem:[%s286 + $0x100] sm:$0xff] %v3203
        %3240 = vst [vmem:[%s286 + $0x108] sm:$0xff] %v3204
        %3241 = vst [vmem:[%s286 + $0x110] sm:$0xff] %v3205
        %3242 = vst [vmem:[%s286 + $0x118] sm:$0xff] %v3206
        %v3243 = vld [vmem:[#allocation2 + $0x14] sm:$0xff]
        %v3244 = vld [vmem:[#allocation2 + $0x1c] sm:$0xff]
        %v3245 = vld [vmem:[#allocation2 + $0x24] sm:$0xff]
        %v3246 = vld [vmem:[#allocation2 + $0x2c] sm:$0xff]
        %v3247 = vld [vmem:[#allocation2 + $0x34] sm:$0xff]
        %v3248 = vld [vmem:[#allocation2 + $0x3c] sm:$0xff]
        %v3249 = vld [vmem:[#allocation2 + $0x44] sm:$0xff]
        %v3250 = vld [vmem:[#allocation2 + $0x4c] sm:$0xff]
        %v3251 = vld [vmem:[#allocation2 + $0x54] sm:$0xff]
        %v3252 = vld [vmem:[#allocation2 + $0x5c] sm:$0xff]
        %v3253 = vld [vmem:[#allocation2 + $0x64] sm:$0xff]
        %v3254 = vld [vmem:[#allocation2 + $0x6c] sm:$0xff]
        %v3255 = vld [vmem:[#allocation2 + $0x74] sm:$0xff]
        %v3256 = vld [vmem:[#allocation2 + $0x7c] sm:$0xff]
        %v3257 = vld [vmem:[#allocation2 + $0x84] sm:$0xff]
        %v3258 = vld [vmem:[#allocation2 + $0x8c] sm:$0xff]
        %v3259 = vld [vmem:[#allocation2 + $0x94] sm:$0xff]
        %v3260 = vld [vmem:[#allocation2 + $0x9c] sm:$0xff]
        %v3261 = vld [vmem:[#allocation2 + $0xa4] sm:$0xff]
        %v3262 = vld [vmem:[#allocation2 + $0xac] sm:$0xff]
        %v3263 = vld [vmem:[#allocation2 + $0xb4] sm:$0xff]
        %v3264 = vld [vmem:[#allocation2 + $0xbc] sm:$0xff]
        %v3265 = vld [vmem:[#allocation2 + $0xc4] sm:$0xff]
        %v3266 = vld [vmem:[#allocation2 + $0xcc] sm:$0xff]
        %v3267 = vld [vmem:[#allocation2 + $0xd4] sm:$0xff]
        %v3268 = vld [vmem:[#allocation2 + $0xdc] sm:$0xff]
        %v3269 = vld [vmem:[#allocation2 + $0xe4] sm:$0xff]
        %v3270 = vld [vmem:[#allocation2 + $0xec] sm:$0xff]
        %v3271 = vld [vmem:[#allocation2 + $0xf4] sm:$0xff]
        %v3272 = vld [vmem:[#allocation2 + $0xfc] sm:$0xff]
        %v3273 = vld [vmem:[#allocation2 + $0x104] sm:$0xff]
        %v3274 = vld [vmem:[#allocation2 + $0x10c] sm:$0xff]
        %v3275 = vld [vmem:[#allocation2 + $0x114] sm:$0xff]
        %v3276 = vld [vmem:[#allocation2 + $0x11c] sm:$0xff]
        %v3277 = vld [vmem:[#allocation2 + $0x124] sm:$0xff]
        %v3278 = vld [vmem:[#allocation2 + $0x12c] sm:$0xff]
        %s3279 = scalar_lea.vmem [#allocation3], 640
        %v3280 = vld [vmem:[%s3279] sm:$0xff]
        %v3281 = vld [vmem:[%s3279 + $0x8] sm:$0xff]
        %v3282 = vld [vmem:[%s3279 + $0x10] sm:$0xff]
        %v3283 = vld [vmem:[%s3279 + $0x18] sm:$0xff]
        %v3284 = vld [vmem:[%s3279 + $0x20] sm:$0xff]
        %v3285 = vld [vmem:[%s3279 + $0x28] sm:$0xff]
        %v3286 = vld [vmem:[%s3279 + $0x30] sm:$0xff]
        %v3287 = vld [vmem:[%s3279 + $0x38] sm:$0xff]
        %v3288 = vld [vmem:[%s3279 + $0x40] sm:$0xff]
        %v3289 = vld [vmem:[%s3279 + $0x48] sm:$0xff]
        %v3290 = vld [vmem:[%s3279 + $0x50] sm:$0xff]
        %v3291 = vld [vmem:[%s3279 + $0x58] sm:$0xff]
        %v3292 = vld [vmem:[%s3279 + $0x60] sm:$0xff]
        %v3293 = vld [vmem:[%s3279 + $0x68] sm:$0xff]
        %v3294 = vld [vmem:[%s3279 + $0x70] sm:$0xff]
        %v3295 = vld [vmem:[%s3279 + $0x78] sm:$0xff]
        %3296 = vmatprep.subr.mxu0 0.0
        %3297 = vmatpush1.msra.mxu0 %v3280
        %3298 = vmatprep.subr.mxu0 0.0
        %3299 = vmatpush1.msra.mxu0 %v3281
        %3300 = vmatprep.subr.mxu0 0.0
        %3301 = vmatpush1.msra.mxu0 %v3282
        %3302 = vmatprep.subr.mxu0 0.0
        %3303 = vmatpush1.msra.mxu0 %v3283
        %3304 = vmatprep.subr.mxu0 0.0
        %3305 = vmatpush1.msra.mxu0 %v3284
        %3306 = vmatprep.subr.mxu0 0.0
        %3307 = vmatpush1.msra.mxu0 %v3285
        %3308 = vmatprep.subr.mxu0 0.0
        %3309 = vmatpush1.msra.mxu0 %v3286
        %3310 = vmatprep.subr.mxu0 0.0
        %3311 = vmatpush1.msra.mxu0 %v3287
        %3312 = vmatprep.subr.mxu0 0.0
        %3313 = vmatpush1.msra.mxu0 %v3288
        %3314 = vmatprep.subr.mxu0 0.0
        %3315 = vmatpush1.msra.mxu0 %v3289
        %3316 = vmatprep.subr.mxu0 0.0
        %3317 = vmatpush1.msra.mxu0 %v3290
        %3318 = vmatprep.subr.mxu0 0.0
        %3319 = vmatpush1.msra.mxu0 %v3291
        %3320 = vmatprep.subr.mxu0 0.0
        %3321 = vmatpush1.msra.mxu0 %v3292
        %3322 = vmatprep.subr.mxu0 0.0
        %3323 = vmatpush1.msra.mxu0 %v3293
        %3324 = vmatprep.subr.mxu0 0.0
        %3325 = vmatpush1.msra.mxu0 %v3294
        %3326 = vmatprep.subr.mxu0 0.0
        %3327 = vmatpush1.msra.mxu0 %v3295
        %3328 = vmatprep.subr.mxu0 0.0
        %3329 = vmatpush1.msra.mxu0 0.0
        %3330 = vmatprep.subr.mxu0 0.0
        %3331 = vmatpush1.msra.mxu0 0.0
        %3332 = vmatprep.subr.mxu0 0.0
        %3333 = vmatpush1.msra.mxu0 0.0
        %3334 = vmatprep.subr.mxu0 0.0
        %3335 = vmatpush1.msra.mxu0 0.0
        %3336 = vmatprep.subr.mxu0 0.0
        %3337 = vmatpush1.msra.mxu0 0.0
        %3338 = vmatprep.subr.mxu0 0.0
        %3339 = vmatpush1.msra.mxu0 0.0
        %3340 = vmatprep.subr.mxu0 0.0
        %3341 = vmatpush1.msra.mxu0 0.0
        %3342 = vmatprep.subr.mxu0 0.0
        %3343 = vmatpush1.msra.mxu0 0.0
        %3344 = vmatprep.subr.mxu0 0.0
        %3345 = vmatpush1.msra.mxu0 0.0
        %3346 = vmatprep.subr.mxu0 0.0
        %3347 = vmatpush1.msra.mxu0 0.0
        %3348 = vmatprep.subr.mxu0 0.0
        %3349 = vmatpush1.msra.mxu0 0.0
        %3350 = vmatprep.subr.mxu0 0.0
        %3351 = vmatpush1.msra.mxu0 0.0
        %3352 = vmatprep.subr.mxu0 0.0
        %3353 = vmatpush1.msra.mxu0 0.0
        %3354 = vmatprep.subr.mxu0 0.0
        %3355 = vmatpush1.msra.mxu0 0.0
        %3356 = vmatprep.subr.mxu0 0.0
        %3357 = vmatpush1.msra.mxu0 0.0
        %3358 = vmatprep.subr.mxu0 0.0
        %3359 = vmatpush1.msra.mxu0 0.0
        %3360 = vmatprep.mubr.f32.mxu0 0.0
        %3361 = vmatmul.mubr.f32.gmra.mrb[0].mxu0 %v3243
        %v3362 = vpop.f32.mrb[0].mxu0
        %v3363 = vadd.f32 0.0, %v3362
        %v3364 = vpop.f32.mrb[0].mxu0
        %3365 = vmatprep.mubr.f32.mxu0 0.0
        %3366 = vmatmul.mubr.f32.gmra.mrb[0].mxu0 %v3244
        %v3367 = vpop.f32.mrb[0].mxu0
        %v3368 = vadd.f32 0.0, %v3367
        %v3369 = vpop.f32.mrb[0].mxu0
        %3370 = vmatprep.mubr.f32.mxu0 0.0
        %3371 = vmatmul.mubr.f32.gmra.mrb[0].mxu0 %v3245
        %v3372 = vpop.f32.mrb[0].mxu0
        %v3373 = vadd.f32 0.0, %v3372
        %v3374 = vpop.f32.mrb[0].mxu0
        %3375 = vmatprep.mubr.f32.mxu0 0.0
        %3376 = vmatmul.mubr.f32.gmra.mrb[0].mxu0 %v3246
        %v3377 = vpop.f32.mrb[0].mxu0
        %v3378 = vadd.f32 0.0, %v3377
        %v3379 = vpop.f32.mrb[0].mxu0
        %3380 = vmatprep.mubr.f32.mxu0 0.0
        %3381 = vmatmul.mubr.f32.gmra.mrb[0].mxu0 %v3247
        %v3382 = vpop.f32.mrb[0].mxu0
        %v3383 = vadd.f32 0.0, %v3382
        %v3384 = vpop.f32.mrb[0].mxu0
        %3385 = vmatprep.mubr.f32.mxu0 0.0
        %3386 = vmatmul.mubr.f32.gmra.mrb[0].mxu0 %v3248
        %v3387 = vpop.f32.mrb[0].mxu0
        %v3388 = vadd.f32 0.0, %v3387
        %v3389 = vpop.f32.mrb[0].mxu0
        %3390 = vmatprep.mubr.f32.mxu0 0.0
        %3391 = vmatmul.mubr.f32.gmra.mrb[0].mxu0 %v3249
        %v3392 = vpop.f32.mrb[0].mxu0
        %v3393 = vadd.f32 0.0, %v3392
        %v3394 = vpop.f32.mrb[0].mxu0
        %3395 = vmatprep.mubr.f32.mxu0 0.0
        %3396 = vmatmul.mubr.f32.gmra.mrb[0].mxu0 %v3250
        %v3397 = vpop.f32.mrb[0].mxu0
        %v3398 = vadd.f32 0.0, %v3397
        %v3399 = vpop.f32.mrb[0].mxu0
        %3400 = vmatprep.mubr.f32.mxu0 0.0
        %3401 = vmatmul.mubr.f32.gmra.mrb[0].mxu0 %v3251
        %v3402 = vpop.f32.mrb[0].mxu0
        %v3403 = vadd.f32 0.0, %v3402
        %v3404 = vpop.f32.mrb[0].mxu0
        %3405 = vmatprep.mubr.f32.mxu0 0.0
        %3406 = vmatmul.mubr.f32.gmra.mrb[0].mxu0 %v3252
        %v3407 = vpop.f32.mrb[0].mxu0
        %v3408 = vadd.f32 0.0, %v3407
        %v3409 = vpop.f32.mrb[0].mxu0
        %3410 = vmatprep.mubr.f32.mxu0 0.0
        %3411 = vmatmul.mubr.f32.gmra.mrb[0].mxu0 %v3253
        %v3412 = vpop.f32.mrb[0].mxu0
        %v3413 = vadd.f32 0.0, %v3412
        %v3414 = vpop.f32.mrb[0].mxu0
        %3415 = vmatprep.mubr.f32.mxu0 0.0
        %3416 = vmatmul.mubr.f32.gmra.mrb[0].mxu0 %v3254
        %v3417 = vpop.f32.mrb[0].mxu0
        %v3418 = vadd.f32 0.0, %v3417
        %v3419 = vpop.f32.mrb[0].mxu0
        %3420 = vmatprep.mubr.f32.mxu0 0.0
        %3421 = vmatmul.mubr.f32.gmra.mrb[0].mxu0 %v3255
        %v3422 = vpop.f32.mrb[0].mxu0
        %v3423 = vadd.f32 0.0, %v3422
        %v3424 = vpop.f32.mrb[0].mxu0
        %3425 = vmatprep.mubr.f32.mxu0 0.0
        %3426 = vmatmul.mubr.f32.gmra.mrb[0].mxu0 %v3256
        %v3427 = vpop.f32.mrb[0].mxu0
        %v3428 = vadd.f32 0.0, %v3427
        %v3429 = vpop.f32.mrb[0].mxu0
        %3430 = vmatprep.mubr.f32.mxu0 0.0
        %3431 = vmatmul.mubr.f32.gmra.mrb[0].mxu0 %v3257
        %v3432 = vpop.f32.mrb[0].mxu0
        %v3433 = vadd.f32 0.0, %v3432
        %v3434 = vpop.f32.mrb[0].mxu0
        %3435 = vmatprep.mubr.f32.mxu0 0.0
        %3436 = vmatmul.mubr.f32.gmra.mrb[0].mxu0 %v3258
        %v3437 = vpop.f32.mrb[0].mxu0
        %v3438 = vadd.f32 0.0, %v3437
        %v3439 = vpop.f32.mrb[0].mxu0
        %3440 = vmatprep.mubr.f32.mxu0 0.0
        %3441 = vmatmul.mubr.f32.gmra.mrb[0].mxu0 %v3259
        %v3442 = vpop.f32.mrb[0].mxu0
        %v3443 = vadd.f32 0.0, %v3442
        %v3444 = vpop.f32.mrb[0].mxu0
        %3445 = vmatprep.mubr.f32.mxu0 0.0
        %3446 = vmatmul.mubr.f32.gmra.mrb[0].mxu0 %v3260
        %v3447 = vpop.f32.mrb[0].mxu0
        %v3448 = vadd.f32 0.0, %v3447
        %v3449 = vpop.f32.mrb[0].mxu0
        %3450 = vmatprep.mubr.f32.mxu0 0.0
        %3451 = vmatmul.mubr.f32.gmra.mrb[0].mxu0 %v3261
        %v3452 = vpop.f32.mrb[0].mxu0
        %v3453 = vadd.f32 0.0, %v3452
        %v3454 = vpop.f32.mrb[0].mxu0
        %3455 = vmatprep.mubr.f32.mxu0 0.0
        %3456 = vmatmul.mubr.f32.gmra.mrb[0].mxu0 %v3262
        %v3457 = vpop.f32.mrb[0].mxu0
        %v3458 = vadd.f32 0.0, %v3457
        %v3459 = vpop.f32.mrb[0].mxu0
        %3460 = vmatprep.mubr.f32.mxu0 0.0
        %3461 = vmatmul.mubr.f32.gmra.mrb[0].mxu0 %v3263
        %v3462 = vpop.f32.mrb[0].mxu0
        %v3463 = vadd.f32 0.0, %v3462
        %v3464 = vpop.f32.mrb[0].mxu0
        %3465 = vmatprep.mubr.f32.mxu0 0.0
        %3466 = vmatmul.mubr.f32.gmra.mrb[0].mxu0 %v3264
        %v3467 = vpop.f32.mrb[0].mxu0
        %v3468 = vadd.f32 0.0, %v3467
        %v3469 = vpop.f32.mrb[0].mxu0
        %3470 = vmatprep.mubr.f32.mxu0 0.0
        %3471 = vmatmul.mubr.f32.gmra.mrb[0].mxu0 %v3265
        %v3472 = vpop.f32.mrb[0].mxu0
        %v3473 = vadd.f32 0.0, %v3472
        %v3474 = vpop.f32.mrb[0].mxu0
        %3475 = vmatprep.mubr.f32.mxu0 0.0
        %3476 = vmatmul.mubr.f32.gmra.mrb[0].mxu0 %v3266
        %v3477 = vpop.f32.mrb[0].mxu0
        %v3478 = vadd.f32 0.0, %v3477
        %v3479 = vpop.f32.mrb[0].mxu0
        %3480 = vmatprep.mubr.f32.mxu0 0.0
        %3481 = vmatmul.mubr.f32.gmra.mrb[0].mxu0 %v3267
        %v3482 = vpop.f32.mrb[0].mxu0
        %v3483 = vadd.f32 0.0, %v3482
        %v3484 = vpop.f32.mrb[0].mxu0
        %3485 = vmatprep.mubr.f32.mxu0 0.0
        %3486 = vmatmul.mubr.f32.gmra.mrb[0].mxu0 %v3268
        %v3487 = vpop.f32.mrb[0].mxu0
        %v3488 = vadd.f32 0.0, %v3487
        %v3489 = vpop.f32.mrb[0].mxu0
        %3490 = vmatprep.mubr.f32.mxu0 0.0
        %3491 = vmatmul.mubr.f32.gmra.mrb[0].mxu0 %v3269
        %v3492 = vpop.f32.mrb[0].mxu0
        %v3493 = vadd.f32 0.0, %v3492
        %v3494 = vpop.f32.mrb[0].mxu0
        %3495 = vmatprep.mubr.f32.mxu0 0.0
        %3496 = vmatmul.mubr.f32.gmra.mrb[0].mxu0 %v3270
        %v3497 = vpop.f32.mrb[0].mxu0
        %v3498 = vadd.f32 0.0, %v3497
        %v3499 = vpop.f32.mrb[0].mxu0
        %3500 = vmatprep.mubr.f32.mxu0 0.0
        %3501 = vmatmul.mubr.f32.gmra.mrb[0].mxu0 %v3271
        %v3502 = vpop.f32.mrb[0].mxu0
        %v3503 = vadd.f32 0.0, %v3502
        %v3504 = vpop.f32.mrb[0].mxu0
        %3505 = vmatprep.mubr.f32.mxu0 0.0
        %3506 = vmatmul.mubr.f32.gmra.mrb[0].mxu0 %v3272
        %v3507 = vpop.f32.mrb[0].mxu0
        %v3508 = vadd.f32 0.0, %v3507
        %v3509 = vpop.f32.mrb[0].mxu0
        %3510 = vmatprep.mubr.f32.mxu0 0.0
        %3511 = vmatmul.mubr.f32.gmra.mrb[0].mxu0 %v3273
        %v3512 = vpop.f32.mrb[0].mxu0
        %v3513 = vadd.f32 0.0, %v3512
        %v3514 = vpop.f32.mrb[0].mxu0
        %3515 = vmatprep.mubr.f32.mxu0 0.0
        %3516 = vmatmul.mubr.f32.gmra.mrb[0].mxu0 %v3274
        %v3517 = vpop.f32.mrb[0].mxu0
        %v3518 = vadd.f32 0.0, %v3517
        %v3519 = vpop.f32.mrb[0].mxu0
        %3520 = vmatprep.mubr.f32.mxu0 0.0
        %3521 = vmatmul.mubr.f32.gmra.mrb[0].mxu0 %v3275
        %v3522 = vpop.f32.mrb[0].mxu0
        %v3523 = vadd.f32 0.0, %v3522
        %v3524 = vpop.f32.mrb[0].mxu0
        %3525 = vmatprep.mubr.f32.mxu0 0.0
        %3526 = vmatmul.mubr.f32.gmra.mrb[0].mxu0 %v3276
        %v3527 = vpop.f32.mrb[0].mxu0
        %v3528 = vadd.f32 0.0, %v3527
        %v3529 = vpop.f32.mrb[0].mxu0
        %3530 = vmatprep.mubr.f32.mxu0 0.0
        %3531 = vmatmul.mubr.f32.gmra.mrb[0].mxu0 %v3277
        %v3532 = vpop.f32.mrb[0].mxu0
        %v3533 = vadd.f32 0.0, %v3532
        %v3534 = vpop.f32.mrb[0].mxu0
        %3535 = vmatprep.mubr.f32.mxu0 0.0
        %3536 = vmatmul.mubr.f32.gmra.mrb[0].mxu0 %v3278
        %v3537 = vpop.f32.mrb[0].mxu0
        %v3538 = vadd.f32 0.0, %v3537
        %v3539 = vpop.f32.mrb[0].mxu0
        %3540 = vdwg.mxu0
        %v3541 = vld [vmem:[%s286] sm:$0xff]
        %v3542 = vld [vmem:[%s286 + $0x8] sm:$0xff]
        %v3543 = vld [vmem:[%s286 + $0x10] sm:$0xff]
        %v3544 = vld [vmem:[%s286 + $0x18] sm:$0xff]
        %v3545 = vld [vmem:[%s286 + $0x20] sm:$0xff]
        %v3546 = vld [vmem:[%s286 + $0x28] sm:$0xff]
        %v3547 = vld [vmem:[%s286 + $0x30] sm:$0xff]
        %v3548 = vld [vmem:[%s286 + $0x38] sm:$0xff]
        %v3549 = vld [vmem:[%s286 + $0x40] sm:$0xff]
        %v3550 = vld [vmem:[%s286 + $0x48] sm:$0xff]
        %v3551 = vld [vmem:[%s286 + $0x50] sm:$0xff]
        %v3552 = vld [vmem:[%s286 + $0x58] sm:$0xff]
        %v3553 = vld [vmem:[%s286 + $0x60] sm:$0xff]
        %v3554 = vld [vmem:[%s286 + $0x68] sm:$0xff]
        %v3555 = vld [vmem:[%s286 + $0x70] sm:$0xff]
        %v3556 = vld [vmem:[%s286 + $0x78] sm:$0xff]
        %v3557 = vld [vmem:[%s286 + $0x80] sm:$0xff]
        %v3558 = vld [vmem:[%s286 + $0x88] sm:$0xff]
        %v3559 = vld [vmem:[%s286 + $0x90] sm:$0xff]
        %v3560 = vld [vmem:[%s286 + $0x98] sm:$0xff]
        %v3561 = vld [vmem:[%s286 + $0xa0] sm:$0xff]
        %v3562 = vld [vmem:[%s286 + $0xa8] sm:$0xff]
        %v3563 = vld [vmem:[%s286 + $0xb0] sm:$0xff]
        %v3564 = vld [vmem:[%s286 + $0xb8] sm:$0xff]
        %v3565 = vld [vmem:[%s286 + $0xc0] sm:$0xff]
        %v3566 = vld [vmem:[%s286 + $0xc8] sm:$0xff]
        %v3567 = vld [vmem:[%s286 + $0xd0] sm:$0xff]
        %v3568 = vld [vmem:[%s286 + $0xd8] sm:$0xff]
        %v3569 = vld [vmem:[%s286 + $0xe0] sm:$0xff]
        %v3570 = vld [vmem:[%s286 + $0xe8] sm:$0xff]
        %v3571 = vld [vmem:[%s286 + $0xf0] sm:$0xff]
        %v3572 = vld [vmem:[%s286 + $0xf8] sm:$0xff]
        %v3573 = vld [vmem:[%s286 + $0x100] sm:$0xff]
        %v3574 = vld [vmem:[%s286 + $0x108] sm:$0xff]
        %v3575 = vld [vmem:[%s286 + $0x110] sm:$0xff]
        %v3576 = vld [vmem:[%s286 + $0x118] sm:$0xff]
        %v3577 = vadd.f32 %v3541, %v3363
        %v3578 = vadd.f32 %v3542, %v3368
        %v3579 = vadd.f32 %v3543, %v3373
        %v3580 = vadd.f32 %v3544, %v3378
        %v3581 = vadd.f32 %v3545, %v3383
        %v3582 = vadd.f32 %v3546, %v3388
        %v3583 = vadd.f32 %v3547, %v3393
        %v3584 = vadd.f32 %v3548, %v3398
        %v3585 = vadd.f32 %v3549, %v3403
        %v3586 = vadd.f32 %v3550, %v3408
        %v3587 = vadd.f32 %v3551, %v3413
        %v3588 = vadd.f32 %v3552, %v3418
        %v3589 = vadd.f32 %v3553, %v3423
        %v3590 = vadd.f32 %v3554, %v3428
        %v3591 = vadd.f32 %v3555, %v3433
        %v3592 = vadd.f32 %v3556, %v3438
        %v3593 = vadd.f32 %v3557, %v3443
        %v3594 = vadd.f32 %v3558, %v3448
        %v3595 = vadd.f32 %v3559, %v3453
        %v3596 = vadd.f32 %v3560, %v3458
        %v3597 = vadd.f32 %v3561, %v3463
        %v3598 = vadd.f32 %v3562, %v3468
        %v3599 = vadd.f32 %v3563, %v3473
        %v3600 = vadd.f32 %v3564, %v3478
        %v3601 = vadd.f32 %v3565, %v3483
        %v3602 = vadd.f32 %v3566, %v3488
        %v3603 = vadd.f32 %v3567, %v3493
        %v3604 = vadd.f32 %v3568, %v3498
        %v3605 = vadd.f32 %v3569, %v3503
        %v3606 = vadd.f32 %v3570, %v3508
        %v3607 = vadd.f32 %v3571, %v3513
        %v3608 = vadd.f32 %v3572, %v3518
        %v3609 = vadd.f32 %v3573, %v3523
        %v3610 = vadd.f32 %v3574, %v3528
        %v3611 = vadd.f32 %v3575, %v3533
        %v3612 = vadd.f32 %v3576, %v3538
        %3613 = vst [vmem:[%s286] sm:$0xff] %v3577
        %3614 = vst [vmem:[%s286 + $0x8] sm:$0xff] %v3578
        %3615 = vst [vmem:[%s286 + $0x10] sm:$0xff] %v3579
        %3616 = vst [vmem:[%s286 + $0x18] sm:$0xff] %v3580
        %3617 = vst [vmem:[%s286 + $0x20] sm:$0xff] %v3581
        %3618 = vst [vmem:[%s286 + $0x28] sm:$0xff] %v3582
        %3619 = vst [vmem:[%s286 + $0x30] sm:$0xff] %v3583
        %3620 = vst [vmem:[%s286 + $0x38] sm:$0xff] %v3584
        %3621 = vst [vmem:[%s286 + $0x40] sm:$0xff] %v3585
        %3622 = vst [vmem:[%s286 + $0x48] sm:$0xff] %v3586
        %3623 = vst [vmem:[%s286 + $0x50] sm:$0xff] %v3587
        %3624 = vst [vmem:[%s286 + $0x58] sm:$0xff] %v3588
        %3625 = vst [vmem:[%s286 + $0x60] sm:$0xff] %v3589
        %3626 = vst [vmem:[%s286 + $0x68] sm:$0xff] %v3590
        %3627 = vst [vmem:[%s286 + $0x70] sm:$0xff] %v3591
        %3628 = vst [vmem:[%s286 + $0x78] sm:$0xff] %v3592
        %3629 = vst [vmem:[%s286 + $0x80] sm:$0xff] %v3593
        %3630 = vst [vmem:[%s286 + $0x88] sm:$0xff] %v3594
        %3631 = vst [vmem:[%s286 + $0x90] sm:$0xff] %v3595
        %3632 = vst [vmem:[%s286 + $0x98] sm:$0xff] %v3596
        %3633 = vst [vmem:[%s286 + $0xa0] sm:$0xff] %v3597
        %3634 = vst [vmem:[%s286 + $0xa8] sm:$0xff] %v3598
        %3635 = vst [vmem:[%s286 + $0xb0] sm:$0xff] %v3599
        %3636 = vst [vmem:[%s286 + $0xb8] sm:$0xff] %v3600
        %3637 = vst [vmem:[%s286 + $0xc0] sm:$0xff] %v3601
        %3638 = vst [vmem:[%s286 + $0xc8] sm:$0xff] %v3602
        %3639 = vst [vmem:[%s286 + $0xd0] sm:$0xff] %v3603
        %3640 = vst [vmem:[%s286 + $0xd8] sm:$0xff] %v3604
        %3641 = vst [vmem:[%s286 + $0xe0] sm:$0xff] %v3605
        %3642 = vst [vmem:[%s286 + $0xe8] sm:$0xff] %v3606
        %3643 = vst [vmem:[%s286 + $0xf0] sm:$0xff] %v3607
        %3644 = vst [vmem:[%s286 + $0xf8] sm:$0xff] %v3608
        %3645 = vst [vmem:[%s286 + $0x100] sm:$0xff] %v3609
        %3646 = vst [vmem:[%s286 + $0x108] sm:$0xff] %v3610
        %3647 = vst [vmem:[%s286 + $0x110] sm:$0xff] %v3611
        %3648 = vst [vmem:[%s286 + $0x118] sm:$0xff] %v3612
        %v3649 = vld [vmem:[#allocation2 + $0x24] sm:$0xff]
        %v3650 = vld [vmem:[#allocation2 + $0x2c] sm:$0xff]
        %v3651 = vld [vmem:[#allocation2 + $0x34] sm:$0xff]
        %v3652 = vld [vmem:[#allocation2 + $0x3c] sm:$0xff]
        %v3653 = vld [vmem:[#allocation2 + $0x44] sm:$0xff]
        %v3654 = vld [vmem:[#allocation2 + $0x4c] sm:$0xff]
        %v3655 = vld [vmem:[#allocation2 + $0x54] sm:$0xff]
        %v3656 = vld [vmem:[#allocation2 + $0x5c] sm:$0xff]
        %v3657 = vld [vmem:[#allocation2 + $0x64] sm:$0xff]
        %v3658 = vld [vmem:[#allocation2 + $0x6c] sm:$0xff]
        %v3659 = vld [vmem:[#allocation2 + $0x74] sm:$0xff]
        %v3660 = vld [vmem:[#allocation2 + $0x7c] sm:$0xff]
        %v3661 = vld [vmem:[#allocation2 + $0x84] sm:$0xff]
        %v3662 = vld [vmem:[#allocation2 + $0x8c] sm:$0xff]
        %v3663 = vld [vmem:[#allocation2 + $0x94] sm:$0xff]
        %v3664 = vld [vmem:[#allocation2 + $0x9c] sm:$0xff]
        %v3665 = vld [vmem:[#allocation2 + $0xa4] sm:$0xff]
        %v3666 = vld [vmem:[#allocation2 + $0xac] sm:$0xff]
        %v3667 = vld [vmem:[#allocation2 + $0xb4] sm:$0xff]
        %v3668 = vld [vmem:[#allocation2 + $0xbc] sm:$0xff]
        %v3669 = vld [vmem:[#allocation2 + $0xc4] sm:$0xff]
        %v3670 = vld [vmem:[#allocation2 + $0xcc] sm:$0xff]
        %v3671 = vld [vmem:[#allocation2 + $0xd4] sm:$0xff]
        %v3672 = vld [vmem:[#allocation2 + $0xdc] sm:$0xff]
        %v3673 = vld [vmem:[#allocation2 + $0xe4] sm:$0xff]
        %v3674 = vld [vmem:[#allocation2 + $0xec] sm:$0xff]
        %v3675 = vld [vmem:[#allocation2 + $0xf4] sm:$0xff]
        %v3676 = vld [vmem:[#allocation2 + $0xfc] sm:$0xff]
        %v3677 = vld [vmem:[#allocation2 + $0x104] sm:$0xff]
        %v3678 = vld [vmem:[#allocation2 + $0x10c] sm:$0xff]
        %v3679 = vld [vmem:[#allocation2 + $0x114] sm:$0xff]
        %v3680 = vld [vmem:[#allocation2 + $0x11c] sm:$0xff]
        %v3681 = vld [vmem:[#allocation2 + $0x124] sm:$0xff]
        %v3682 = vld [vmem:[#allocation2 + $0x12c] sm:$0xff]
        %v3683 = vld [vmem:[#allocation2 + $0x134] sm:$0xff]
        %v3684 = vld [vmem:[#allocation2 + $0x13c] sm:$0xff]
        %s3685 = scalar_lea.vmem [#allocation3], 768
        %v3686 = vld [vmem:[%s3685] sm:$0xff]
        %v3687 = vld [vmem:[%s3685 + $0x8] sm:$0xff]
        %v3688 = vld [vmem:[%s3685 + $0x10] sm:$0xff]
        %v3689 = vld [vmem:[%s3685 + $0x18] sm:$0xff]
        %v3690 = vld [vmem:[%s3685 + $0x20] sm:$0xff]
        %v3691 = vld [vmem:[%s3685 + $0x28] sm:$0xff]
        %v3692 = vld [vmem:[%s3685 + $0x30] sm:$0xff]
        %v3693 = vld [vmem:[%s3685 + $0x38] sm:$0xff]
        %v3694 = vld [vmem:[%s3685 + $0x40] sm:$0xff]
        %v3695 = vld [vmem:[%s3685 + $0x48] sm:$0xff]
        %v3696 = vld [vmem:[%s3685 + $0x50] sm:$0xff]
        %v3697 = vld [vmem:[%s3685 + $0x58] sm:$0xff]
        %v3698 = vld [vmem:[%s3685 + $0x60] sm:$0xff]
        %v3699 = vld [vmem:[%s3685 + $0x68] sm:$0xff]
        %v3700 = vld [vmem:[%s3685 + $0x70] sm:$0xff]
        %v3701 = vld [vmem:[%s3685 + $0x78] sm:$0xff]
        %3702 = vmatprep.subr.mxu0 0.0
        %3703 = vmatpush1.msra.mxu0 %v3686
        %3704 = vmatprep.subr.mxu0 0.0
        %3705 = vmatpush1.msra.mxu0 %v3687
        %3706 = vmatprep.subr.mxu0 0.0
        %3707 = vmatpush1.msra.mxu0 %v3688
        %3708 = vmatprep.subr.mxu0 0.0
        %3709 = vmatpush1.msra.mxu0 %v3689
        %3710 = vmatprep.subr.mxu0 0.0
        %3711 = vmatpush1.msra.mxu0 %v3690
        %3712 = vmatprep.subr.mxu0 0.0
        %3713 = vmatpush1.msra.mxu0 %v3691
        %3714 = vmatprep.subr.mxu0 0.0
        %3715 = vmatpush1.msra.mxu0 %v3692
        %3716 = vmatprep.subr.mxu0 0.0
        %3717 = vmatpush1.msra.mxu0 %v3693
        %3718 = vmatprep.subr.mxu0 0.0
        %3719 = vmatpush1.msra.mxu0 %v3694
        %3720 = vmatprep.subr.mxu0 0.0
        %3721 = vmatpush1.msra.mxu0 %v3695
        %3722 = vmatprep.subr.mxu0 0.0
        %3723 = vmatpush1.msra.mxu0 %v3696
        %3724 = vmatprep.subr.mxu0 0.0
        %3725 = vmatpush1.msra.mxu0 %v3697
        %3726 = vmatprep.subr.mxu0 0.0
        %3727 = vmatpush1.msra.mxu0 %v3698
        %3728 = vmatprep.subr.mxu0 0.0
        %3729 = vmatpush1.msra.mxu0 %v3699
        %3730 = vmatprep.subr.mxu0 0.0
        %3731 = vmatpush1.msra.mxu0 %v3700
        %3732 = vmatprep.subr.mxu0 0.0
        %3733 = vmatpush1.msra.mxu0 %v3701
        %3734 = vmatprep.subr.mxu0 0.0
        %3735 = vmatpush1.msra.mxu0 0.0
        %3736 = vmatprep.subr.mxu0 0.0
        %3737 = vmatpush1.msra.mxu0 0.0
        %3738 = vmatprep.subr.mxu0 0.0
        %3739 = vmatpush1.msra.mxu0 0.0
        %3740 = vmatprep.subr.mxu0 0.0
        %3741 = vmatpush1.msra.mxu0 0.0
        %3742 = vmatprep.subr.mxu0 0.0
        %3743 = vmatpush1.msra.mxu0 0.0
        %3744 = vmatprep.subr.mxu0 0.0
        %3745 = vmatpush1.msra.mxu0 0.0
        %3746 = vmatprep.subr.mxu0 0.0
        %3747 = vmatpush1.msra.mxu0 0.0
        %3748 = vmatprep.subr.mxu0 0.0
        %3749 = vmatpush1.msra.mxu0 0.0
        %3750 = vmatprep.subr.mxu0 0.0
        %3751 = vmatpush1.msra.mxu0 0.0
        %3752 = vmatprep.subr.mxu0 0.0
        %3753 = vmatpush1.msra.mxu0 0.0
        %3754 = vmatprep.subr.mxu0 0.0
        %3755 = vmatpush1.msra.mxu0 0.0
        %3756 = vmatprep.subr.mxu0 0.0
        %3757 = vmatpush1.msra.mxu0 0.0
        %3758 = vmatprep.subr.mxu0 0.0
        %3759 = vmatpush1.msra.mxu0 0.0
        %3760 = vmatprep.subr.mxu0 0.0
        %3761 = vmatpush1.msra.mxu0 0.0
        %3762 = vmatprep.subr.mxu0 0.0
        %3763 = vmatpush1.msra.mxu0 0.0
        %3764 = vmatprep.subr.mxu0 0.0
        %3765 = vmatpush1.msra.mxu0 0.0
        %3766 = vmatprep.mubr.f32.mxu0 0.0
        %3767 = vmatmul.mubr.f32.gmra.mrb[0].mxu0 %v3649
        %v3768 = vpop.f32.mrb[0].mxu0
        %v3769 = vadd.f32 0.0, %v3768
        %v3770 = vpop.f32.mrb[0].mxu0
        %3771 = vmatprep.mubr.f32.mxu0 0.0
        %3772 = vmatmul.mubr.f32.gmra.mrb[0].mxu0 %v3650
        %v3773 = vpop.f32.mrb[0].mxu0
        %v3774 = vadd.f32 0.0, %v3773
        %v3775 = vpop.f32.mrb[0].mxu0
        %3776 = vmatprep.mubr.f32.mxu0 0.0
        %3777 = vmatmul.mubr.f32.gmra.mrb[0].mxu0 %v3651
        %v3778 = vpop.f32.mrb[0].mxu0
        %v3779 = vadd.f32 0.0, %v3778
        %v3780 = vpop.f32.mrb[0].mxu0
        %3781 = vmatprep.mubr.f32.mxu0 0.0
        %3782 = vmatmul.mubr.f32.gmra.mrb[0].mxu0 %v3652
        %v3783 = vpop.f32.mrb[0].mxu0
        %v3784 = vadd.f32 0.0, %v3783
        %v3785 = vpop.f32.mrb[0].mxu0
        %3786 = vmatprep.mubr.f32.mxu0 0.0
        %3787 = vmatmul.mubr.f32.gmra.mrb[0].mxu0 %v3653
        %v3788 = vpop.f32.mrb[0].mxu0
        %v3789 = vadd.f32 0.0, %v3788
        %v3790 = vpop.f32.mrb[0].mxu0
        %3791 = vmatprep.mubr.f32.mxu0 0.0
        %3792 = vmatmul.mubr.f32.gmra.mrb[0].mxu0 %v3654
        %v3793 = vpop.f32.mrb[0].mxu0
        %v3794 = vadd.f32 0.0, %v3793
        %v3795 = vpop.f32.mrb[0].mxu0
        %3796 = vmatprep.mubr.f32.mxu0 0.0
        %3797 = vmatmul.mubr.f32.gmra.mrb[0].mxu0 %v3655
        %v3798 = vpop.f32.mrb[0].mxu0
        %v3799 = vadd.f32 0.0, %v3798
        %v3800 = vpop.f32.mrb[0].mxu0
        %3801 = vmatprep.mubr.f32.mxu0 0.0
        %3802 = vmatmul.mubr.f32.gmra.mrb[0].mxu0 %v3656
        %v3803 = vpop.f32.mrb[0].mxu0
        %v3804 = vadd.f32 0.0, %v3803
        %v3805 = vpop.f32.mrb[0].mxu0
        %3806 = vmatprep.mubr.f32.mxu0 0.0
        %3807 = vmatmul.mubr.f32.gmra.mrb[0].mxu0 %v3657
        %v3808 = vpop.f32.mrb[0].mxu0
        %v3809 = vadd.f32 0.0, %v3808
        %v3810 = vpop.f32.mrb[0].mxu0
        %3811 = vmatprep.mubr.f32.mxu0 0.0
        %3812 = vmatmul.mubr.f32.gmra.mrb[0].mxu0 %v3658
        %v3813 = vpop.f32.mrb[0].mxu0
        %v3814 = vadd.f32 0.0, %v3813
        %v3815 = vpop.f32.mrb[0].mxu0
        %3816 = vmatprep.mubr.f32.mxu0 0.0
        %3817 = vmatmul.mubr.f32.gmra.mrb[0].mxu0 %v3659
        %v3818 = vpop.f32.mrb[0].mxu0
        %v3819 = vadd.f32 0.0, %v3818
        %v3820 = vpop.f32.mrb[0].mxu0
        %3821 = vmatprep.mubr.f32.mxu0 0.0
        %3822 = vmatmul.mubr.f32.gmra.mrb[0].mxu0 %v3660
        %v3823 = vpop.f32.mrb[0].mxu0
        %v3824 = vadd.f32 0.0, %v3823
        %v3825 = vpop.f32.mrb[0].mxu0
        %3826 = vmatprep.mubr.f32.mxu0 0.0
        %3827 = vmatmul.mubr.f32.gmra.mrb[0].mxu0 %v3661
        %v3828 = vpop.f32.mrb[0].mxu0
        %v3829 = vadd.f32 0.0, %v3828
        %v3830 = vpop.f32.mrb[0].mxu0
        %3831 = vmatprep.mubr.f32.mxu0 0.0
        %3832 = vmatmul.mubr.f32.gmra.mrb[0].mxu0 %v3662
        %v3833 = vpop.f32.mrb[0].mxu0
        %v3834 = vadd.f32 0.0, %v3833
        %v3835 = vpop.f32.mrb[0].mxu0
        %3836 = vmatprep.mubr.f32.mxu0 0.0
        %3837 = vmatmul.mubr.f32.gmra.mrb[0].mxu0 %v3663
        %v3838 = vpop.f32.mrb[0].mxu0
        %v3839 = vadd.f32 0.0, %v3838
        %v3840 = vpop.f32.mrb[0].mxu0
        %3841 = vmatprep.mubr.f32.mxu0 0.0
        %3842 = vmatmul.mubr.f32.gmra.mrb[0].mxu0 %v3664
        %v3843 = vpop.f32.mrb[0].mxu0
        %v3844 = vadd.f32 0.0, %v3843
        %v3845 = vpop.f32.mrb[0].mxu0
        %3846 = vmatprep.mubr.f32.mxu0 0.0
        %3847 = vmatmul.mubr.f32.gmra.mrb[0].mxu0 %v3665
        %v3848 = vpop.f32.mrb[0].mxu0
        %v3849 = vadd.f32 0.0, %v3848
        %v3850 = vpop.f32.mrb[0].mxu0
        %3851 = vmatprep.mubr.f32.mxu0 0.0
        %3852 = vmatmul.mubr.f32.gmra.mrb[0].mxu0 %v3666
        %v3853 = vpop.f32.mrb[0].mxu0
        %v3854 = vadd.f32 0.0, %v3853
        %v3855 = vpop.f32.mrb[0].mxu0
        %3856 = vmatprep.mubr.f32.mxu0 0.0
        %3857 = vmatmul.mubr.f32.gmra.mrb[0].mxu0 %v3667
        %v3858 = vpop.f32.mrb[0].mxu0
        %v3859 = vadd.f32 0.0, %v3858
        %v3860 = vpop.f32.mrb[0].mxu0
        %3861 = vmatprep.mubr.f32.mxu0 0.0
        %3862 = vmatmul.mubr.f32.gmra.mrb[0].mxu0 %v3668
        %v3863 = vpop.f32.mrb[0].mxu0
        %v3864 = vadd.f32 0.0, %v3863
        %v3865 = vpop.f32.mrb[0].mxu0
        %3866 = vmatprep.mubr.f32.mxu0 0.0
        %3867 = vmatmul.mubr.f32.gmra.mrb[0].mxu0 %v3669
        %v3868 = vpop.f32.mrb[0].mxu0
        %v3869 = vadd.f32 0.0, %v3868
        %v3870 = vpop.f32.mrb[0].mxu0
        %3871 = vmatprep.mubr.f32.mxu0 0.0
        %3872 = vmatmul.mubr.f32.gmra.mrb[0].mxu0 %v3670
        %v3873 = vpop.f32.mrb[0].mxu0
        %v3874 = vadd.f32 0.0, %v3873
        %v3875 = vpop.f32.mrb[0].mxu0
        %3876 = vmatprep.mubr.f32.mxu0 0.0
        %3877 = vmatmul.mubr.f32.gmra.mrb[0].mxu0 %v3671
        %v3878 = vpop.f32.mrb[0].mxu0
        %v3879 = vadd.f32 0.0, %v3878
        %v3880 = vpop.f32.mrb[0].mxu0
        %3881 = vmatprep.mubr.f32.mxu0 0.0
        %3882 = vmatmul.mubr.f32.gmra.mrb[0].mxu0 %v3672
        %v3883 = vpop.f32.mrb[0].mxu0
        %v3884 = vadd.f32 0.0, %v3883
        %v3885 = vpop.f32.mrb[0].mxu0
        %3886 = vmatprep.mubr.f32.mxu0 0.0
        %3887 = vmatmul.mubr.f32.gmra.mrb[0].mxu0 %v3673
        %v3888 = vpop.f32.mrb[0].mxu0
        %v3889 = vadd.f32 0.0, %v3888
        %v3890 = vpop.f32.mrb[0].mxu0
        %3891 = vmatprep.mubr.f32.mxu0 0.0
        %3892 = vmatmul.mubr.f32.gmra.mrb[0].mxu0 %v3674
        %v3893 = vpop.f32.mrb[0].mxu0
        %v3894 = vadd.f32 0.0, %v3893
        %v3895 = vpop.f32.mrb[0].mxu0
        %3896 = vmatprep.mubr.f32.mxu0 0.0
        %3897 = vmatmul.mubr.f32.gmra.mrb[0].mxu0 %v3675
        %v3898 = vpop.f32.mrb[0].mxu0
        %v3899 = vadd.f32 0.0, %v3898
        %v3900 = vpop.f32.mrb[0].mxu0
        %3901 = vmatprep.mubr.f32.mxu0 0.0
        %3902 = vmatmul.mubr.f32.gmra.mrb[0].mxu0 %v3676
        %v3903 = vpop.f32.mrb[0].mxu0
        %v3904 = vadd.f32 0.0, %v3903
        %v3905 = vpop.f32.mrb[0].mxu0
        %3906 = vmatprep.mubr.f32.mxu0 0.0
        %3907 = vmatmul.mubr.f32.gmra.mrb[0].mxu0 %v3677
        %v3908 = vpop.f32.mrb[0].mxu0
        %v3909 = vadd.f32 0.0, %v3908
        %v3910 = vpop.f32.mrb[0].mxu0
        %3911 = vmatprep.mubr.f32.mxu0 0.0
        %3912 = vmatmul.mubr.f32.gmra.mrb[0].mxu0 %v3678
        %v3913 = vpop.f32.mrb[0].mxu0
        %v3914 = vadd.f32 0.0, %v3913
        %v3915 = vpop.f32.mrb[0].mxu0
        %3916 = vmatprep.mubr.f32.mxu0 0.0
        %3917 = vmatmul.mubr.f32.gmra.mrb[0].mxu0 %v3679
        %v3918 = vpop.f32.mrb[0].mxu0
        %v3919 = vadd.f32 0.0, %v3918
        %v3920 = vpop.f32.mrb[0].mxu0
        %3921 = vmatprep.mubr.f32.mxu0 0.0
        %3922 = vmatmul.mubr.f32.gmra.mrb[0].mxu0 %v3680
        %v3923 = vpop.f32.mrb[0].mxu0
        %v3924 = vadd.f32 0.0, %v3923
        %v3925 = vpop.f32.mrb[0].mxu0
        %3926 = vmatprep.mubr.f32.mxu0 0.0
        %3927 = vmatmul.mubr.f32.gmra.mrb[0].mxu0 %v3681
        %v3928 = vpop.f32.mrb[0].mxu0
        %v3929 = vadd.f32 0.0, %v3928
        %v3930 = vpop.f32.mrb[0].mxu0
        %3931 = vmatprep.mubr.f32.mxu0 0.0
        %3932 = vmatmul.mubr.f32.gmra.mrb[0].mxu0 %v3682
        %v3933 = vpop.f32.mrb[0].mxu0
        %v3934 = vadd.f32 0.0, %v3933
        %v3935 = vpop.f32.mrb[0].mxu0
        %3936 = vmatprep.mubr.f32.mxu0 0.0
        %3937 = vmatmul.mubr.f32.gmra.mrb[0].mxu0 %v3683
        %v3938 = vpop.f32.mrb[0].mxu0
        %v3939 = vadd.f32 0.0, %v3938
        %v3940 = vpop.f32.mrb[0].mxu0
        %3941 = vmatprep.mubr.f32.mxu0 0.0
        %3942 = vmatmul.mubr.f32.gmra.mrb[0].mxu0 %v3684
        %v3943 = vpop.f32.mrb[0].mxu0
        %v3944 = vadd.f32 0.0, %v3943
        %v3945 = vpop.f32.mrb[0].mxu0
        %3946 = vdwg.mxu0
        %v3947 = vld [vmem:[%s286] sm:$0xff]
        %v3948 = vld [vmem:[%s286 + $0x8] sm:$0xff]
        %v3949 = vld [vmem:[%s286 + $0x10] sm:$0xff]
        %v3950 = vld [vmem:[%s286 + $0x18] sm:$0xff]
        %v3951 = vld [vmem:[%s286 + $0x20] sm:$0xff]
        %v3952 = vld [vmem:[%s286 + $0x28] sm:$0xff]
        %v3953 = vld [vmem:[%s286 + $0x30] sm:$0xff]
        %v3954 = vld [vmem:[%s286 + $0x38] sm:$0xff]
        %v3955 = vld [vmem:[%s286 + $0x40] sm:$0xff]
        %v3956 = vld [vmem:[%s286 + $0x48] sm:$0xff]
        %v3957 = vld [vmem:[%s286 + $0x50] sm:$0xff]
        %v3958 = vld [vmem:[%s286 + $0x58] sm:$0xff]
        %v3959 = vld [vmem:[%s286 + $0x60] sm:$0xff]
        %v3960 = vld [vmem:[%s286 + $0x68] sm:$0xff]
        %v3961 = vld [vmem:[%s286 + $0x70] sm:$0xff]
        %v3962 = vld [vmem:[%s286 + $0x78] sm:$0xff]
        %v3963 = vld [vmem:[%s286 + $0x80] sm:$0xff]
        %v3964 = vld [vmem:[%s286 + $0x88] sm:$0xff]
        %v3965 = vld [vmem:[%s286 + $0x90] sm:$0xff]
        %v3966 = vld [vmem:[%s286 + $0x98] sm:$0xff]
        %v3967 = vld [vmem:[%s286 + $0xa0] sm:$0xff]
        %v3968 = vld [vmem:[%s286 + $0xa8] sm:$0xff]
        %v3969 = vld [vmem:[%s286 + $0xb0] sm:$0xff]
        %v3970 = vld [vmem:[%s286 + $0xb8] sm:$0xff]
        %v3971 = vld [vmem:[%s286 + $0xc0] sm:$0xff]
        %v3972 = vld [vmem:[%s286 + $0xc8] sm:$0xff]
        %v3973 = vld [vmem:[%s286 + $0xd0] sm:$0xff]
        %v3974 = vld [vmem:[%s286 + $0xd8] sm:$0xff]
        %v3975 = vld [vmem:[%s286 + $0xe0] sm:$0xff]
        %v3976 = vld [vmem:[%s286 + $0xe8] sm:$0xff]
        %v3977 = vld [vmem:[%s286 + $0xf0] sm:$0xff]
        %v3978 = vld [vmem:[%s286 + $0xf8] sm:$0xff]
        %v3979 = vld [vmem:[%s286 + $0x100] sm:$0xff]
        %v3980 = vld [vmem:[%s286 + $0x108] sm:$0xff]
        %v3981 = vld [vmem:[%s286 + $0x110] sm:$0xff]
        %v3982 = vld [vmem:[%s286 + $0x118] sm:$0xff]
        %v3983 = vadd.f32 %v3947, %v3769
        %v3984 = vadd.f32 %v3948, %v3774
        %v3985 = vadd.f32 %v3949, %v3779
        %v3986 = vadd.f32 %v3950, %v3784
        %v3987 = vadd.f32 %v3951, %v3789
        %v3988 = vadd.f32 %v3952, %v3794
        %v3989 = vadd.f32 %v3953, %v3799
        %v3990 = vadd.f32 %v3954, %v3804
        %v3991 = vadd.f32 %v3955, %v3809
        %v3992 = vadd.f32 %v3956, %v3814
        %v3993 = vadd.f32 %v3957, %v3819
        %v3994 = vadd.f32 %v3958, %v3824
        %v3995 = vadd.f32 %v3959, %v3829
        %v3996 = vadd.f32 %v3960, %v3834
        %v3997 = vadd.f32 %v3961, %v3839
        %v3998 = vadd.f32 %v3962, %v3844
        %v3999 = vadd.f32 %v3963, %v3849
        %v4000 = vadd.f32 %v3964, %v3854
        %v4001 = vadd.f32 %v3965, %v3859
        %v4002 = vadd.f32 %v3966, %v3864
        %v4003 = vadd.f32 %v3967, %v3869
        %v4004 = vadd.f32 %v3968, %v3874
        %v4005 = vadd.f32 %v3969, %v3879
        %v4006 = vadd.f32 %v3970, %v3884
        %v4007 = vadd.f32 %v3971, %v3889
        %v4008 = vadd.f32 %v3972, %v3894
        %v4009 = vadd.f32 %v3973, %v3899
        %v4010 = vadd.f32 %v3974, %v3904
        %v4011 = vadd.f32 %v3975, %v3909
        %v4012 = vadd.f32 %v3976, %v3914
        %v4013 = vadd.f32 %v3977, %v3919
        %v4014 = vadd.f32 %v3978, %v3924
        %v4015 = vadd.f32 %v3979, %v3929
        %v4016 = vadd.f32 %v3980, %v3934
        %v4017 = vadd.f32 %v3981, %v3939
        %v4018 = vadd.f32 %v3982, %v3944
        %4019 = vst [vmem:[%s286] sm:$0xff] %v3983
        %4020 = vst [vmem:[%s286 + $0x8] sm:$0xff] %v3984
        %4021 = vst [vmem:[%s286 + $0x10] sm:$0xff] %v3985
        %4022 = vst [vmem:[%s286 + $0x18] sm:$0xff] %v3986
        %4023 = vst [vmem:[%s286 + $0x20] sm:$0xff] %v3987
        %4024 = vst [vmem:[%s286 + $0x28] sm:$0xff] %v3988
        %4025 = vst [vmem:[%s286 + $0x30] sm:$0xff] %v3989
        %4026 = vst [vmem:[%s286 + $0x38] sm:$0xff] %v3990
        %4027 = vst [vmem:[%s286 + $0x40] sm:$0xff] %v3991
        %4028 = vst [vmem:[%s286 + $0x48] sm:$0xff] %v3992
        %4029 = vst [vmem:[%s286 + $0x50] sm:$0xff] %v3993
        %4030 = vst [vmem:[%s286 + $0x58] sm:$0xff] %v3994
        %4031 = vst [vmem:[%s286 + $0x60] sm:$0xff] %v3995
        %4032 = vst [vmem:[%s286 + $0x68] sm:$0xff] %v3996
        %4033 = vst [vmem:[%s286 + $0x70] sm:$0xff] %v3997
        %4034 = vst [vmem:[%s286 + $0x78] sm:$0xff] %v3998
        %4035 = vst [vmem:[%s286 + $0x80] sm:$0xff] %v3999
        %4036 = vst [vmem:[%s286 + $0x88] sm:$0xff] %v4000
        %4037 = vst [vmem:[%s286 + $0x90] sm:$0xff] %v4001
        %4038 = vst [vmem:[%s286 + $0x98] sm:$0xff] %v4002
        %4039 = vst [vmem:[%s286 + $0xa0] sm:$0xff] %v4003
        %4040 = vst [vmem:[%s286 + $0xa8] sm:$0xff] %v4004
        %4041 = vst [vmem:[%s286 + $0xb0] sm:$0xff] %v4005
        %4042 = vst [vmem:[%s286 + $0xb8] sm:$0xff] %v4006
        %4043 = vst [vmem:[%s286 + $0xc0] sm:$0xff] %v4007
        %4044 = vst [vmem:[%s286 + $0xc8] sm:$0xff] %v4008
        %4045 = vst [vmem:[%s286 + $0xd0] sm:$0xff] %v4009
        %4046 = vst [vmem:[%s286 + $0xd8] sm:$0xff] %v4010
        %4047 = vst [vmem:[%s286 + $0xe0] sm:$0xff] %v4011
        %4048 = vst [vmem:[%s286 + $0xe8] sm:$0xff] %v4012
        %4049 = vst [vmem:[%s286 + $0xf0] sm:$0xff] %v4013
        %4050 = vst [vmem:[%s286 + $0xf8] sm:$0xff] %v4014
        %4051 = vst [vmem:[%s286 + $0x100] sm:$0xff] %v4015
        %4052 = vst [vmem:[%s286 + $0x108] sm:$0xff] %v4016
        %4053 = vst [vmem:[%s286 + $0x110] sm:$0xff] %v4017
        %4054 = vst [vmem:[%s286 + $0x118] sm:$0xff] %v4018
        %v4055 = vld [vmem:[#allocation2 + $0x25] sm:$0xff]
        %v4056 = vld [vmem:[#allocation2 + $0x2d] sm:$0xff]
        %v4057 = vld [vmem:[#allocation2 + $0x35] sm:$0xff]
        %v4058 = vld [vmem:[#allocation2 + $0x3d] sm:$0xff]
        %v4059 = vld [vmem:[#allocation2 + $0x45] sm:$0xff]
        %v4060 = vld [vmem:[#allocation2 + $0x4d] sm:$0xff]
        %v4061 = vld [vmem:[#allocation2 + $0x55] sm:$0xff]
        %v4062 = vld [vmem:[#allocation2 + $0x5d] sm:$0xff]
        %v4063 = vld [vmem:[#allocation2 + $0x65] sm:$0xff]
        %v4064 = vld [vmem:[#allocation2 + $0x6d] sm:$0xff]
        %v4065 = vld [vmem:[#allocation2 + $0x75] sm:$0xff]
        %v4066 = vld [vmem:[#allocation2 + $0x7d] sm:$0xff]
        %v4067 = vld [vmem:[#allocation2 + $0x85] sm:$0xff]
        %v4068 = vld [vmem:[#allocation2 + $0x8d] sm:$0xff]
        %v4069 = vld [vmem:[#allocation2 + $0x95] sm:$0xff]
        %v4070 = vld [vmem:[#allocation2 + $0x9d] sm:$0xff]
        %v4071 = vld [vmem:[#allocation2 + $0xa5] sm:$0xff]
        %v4072 = vld [vmem:[#allocation2 + $0xad] sm:$0xff]
        %v4073 = vld [vmem:[#allocation2 + $0xb5] sm:$0xff]
        %v4074 = vld [vmem:[#allocation2 + $0xbd] sm:$0xff]
        %v4075 = vld [vmem:[#allocation2 + $0xc5] sm:$0xff]
        %v4076 = vld [vmem:[#allocation2 + $0xcd] sm:$0xff]
        %v4077 = vld [vmem:[#allocation2 + $0xd5] sm:$0xff]
        %v4078 = vld [vmem:[#allocation2 + $0xdd] sm:$0xff]
        %v4079 = vld [vmem:[#allocation2 + $0xe5] sm:$0xff]
        %v4080 = vld [vmem:[#allocation2 + $0xed] sm:$0xff]
        %v4081 = vld [vmem:[#allocation2 + $0xf5] sm:$0xff]
        %v4082 = vld [vmem:[#allocation2 + $0xfd] sm:$0xff]
        %v4083 = vld [vmem:[#allocation2 + $0x105] sm:$0xff]
        %v4084 = vld [vmem:[#allocation2 + $0x10d] sm:$0xff]
        %v4085 = vld [vmem:[#allocation2 + $0x115] sm:$0xff]
        %v4086 = vld [vmem:[#allocation2 + $0x11d] sm:$0xff]
        %v4087 = vld [vmem:[#allocation2 + $0x125] sm:$0xff]
        %v4088 = vld [vmem:[#allocation2 + $0x12d] sm:$0xff]
        %v4089 = vld [vmem:[#allocation2 + $0x135] sm:$0xff]
        %v4090 = vld [vmem:[#allocation2 + $0x13d] sm:$0xff]
        %s4091 = scalar_lea.vmem [#allocation3], 896
        %v4092 = vld [vmem:[%s4091] sm:$0xff]
        %v4093 = vld [vmem:[%s4091 + $0x8] sm:$0xff]
        %v4094 = vld [vmem:[%s4091 + $0x10] sm:$0xff]
        %v4095 = vld [vmem:[%s4091 + $0x18] sm:$0xff]
        %v4096 = vld [vmem:[%s4091 + $0x20] sm:$0xff]
        %v4097 = vld [vmem:[%s4091 + $0x28] sm:$0xff]
        %v4098 = vld [vmem:[%s4091 + $0x30] sm:$0xff]
        %v4099 = vld [vmem:[%s4091 + $0x38] sm:$0xff]
        %v4100 = vld [vmem:[%s4091 + $0x40] sm:$0xff]
        %v4101 = vld [vmem:[%s4091 + $0x48] sm:$0xff]
        %v4102 = vld [vmem:[%s4091 + $0x50] sm:$0xff]
        %v4103 = vld [vmem:[%s4091 + $0x58] sm:$0xff]
        %v4104 = vld [vmem:[%s4091 + $0x60] sm:$0xff]
        %v4105 = vld [vmem:[%s4091 + $0x68] sm:$0xff]
        %v4106 = vld [vmem:[%s4091 + $0x70] sm:$0xff]
        %v4107 = vld [vmem:[%s4091 + $0x78] sm:$0xff]
        %4108 = vmatprep.subr.mxu0 0.0
        %4109 = vmatpush1.msra.mxu0 %v4092
        %4110 = vmatprep.subr.mxu0 0.0
        %4111 = vmatpush1.msra.mxu0 %v4093
        %4112 = vmatprep.subr.mxu0 0.0
        %4113 = vmatpush1.msra.mxu0 %v4094
        %4114 = vmatprep.subr.mxu0 0.0
        %4115 = vmatpush1.msra.mxu0 %v4095
        %4116 = vmatprep.subr.mxu0 0.0
        %4117 = vmatpush1.msra.mxu0 %v4096
        %4118 = vmatprep.subr.mxu0 0.0
        %4119 = vmatpush1.msra.mxu0 %v4097
        %4120 = vmatprep.subr.mxu0 0.0
        %4121 = vmatpush1.msra.mxu0 %v4098
        %4122 = vmatprep.subr.mxu0 0.0
        %4123 = vmatpush1.msra.mxu0 %v4099
        %4124 = vmatprep.subr.mxu0 0.0
        %4125 = vmatpush1.msra.mxu0 %v4100
        %4126 = vmatprep.subr.mxu0 0.0
        %4127 = vmatpush1.msra.mxu0 %v4101
        %4128 = vmatprep.subr.mxu0 0.0
        %4129 = vmatpush1.msra.mxu0 %v4102
        %4130 = vmatprep.subr.mxu0 0.0
        %4131 = vmatpush1.msra.mxu0 %v4103
        %4132 = vmatprep.subr.mxu0 0.0
        %4133 = vmatpush1.msra.mxu0 %v4104
        %4134 = vmatprep.subr.mxu0 0.0
        %4135 = vmatpush1.msra.mxu0 %v4105
        %4136 = vmatprep.subr.mxu0 0.0
        %4137 = vmatpush1.msra.mxu0 %v4106
        %4138 = vmatprep.subr.mxu0 0.0
        %4139 = vmatpush1.msra.mxu0 %v4107
        %4140 = vmatprep.subr.mxu0 0.0
        %4141 = vmatpush1.msra.mxu0 0.0
        %4142 = vmatprep.subr.mxu0 0.0
        %4143 = vmatpush1.msra.mxu0 0.0
        %4144 = vmatprep.subr.mxu0 0.0
        %4145 = vmatpush1.msra.mxu0 0.0
        %4146 = vmatprep.subr.mxu0 0.0
        %4147 = vmatpush1.msra.mxu0 0.0
        %4148 = vmatprep.subr.mxu0 0.0
        %4149 = vmatpush1.msra.mxu0 0.0
        %4150 = vmatprep.subr.mxu0 0.0
        %4151 = vmatpush1.msra.mxu0 0.0
        %4152 = vmatprep.subr.mxu0 0.0
        %4153 = vmatpush1.msra.mxu0 0.0
        %4154 = vmatprep.subr.mxu0 0.0
        %4155 = vmatpush1.msra.mxu0 0.0
        %4156 = vmatprep.subr.mxu0 0.0
        %4157 = vmatpush1.msra.mxu0 0.0
        %4158 = vmatprep.subr.mxu0 0.0
        %4159 = vmatpush1.msra.mxu0 0.0
        %4160 = vmatprep.subr.mxu0 0.0
        %4161 = vmatpush1.msra.mxu0 0.0
        %4162 = vmatprep.subr.mxu0 0.0
        %4163 = vmatpush1.msra.mxu0 0.0
        %4164 = vmatprep.subr.mxu0 0.0
        %4165 = vmatpush1.msra.mxu0 0.0
        %4166 = vmatprep.subr.mxu0 0.0
        %4167 = vmatpush1.msra.mxu0 0.0
        %4168 = vmatprep.subr.mxu0 0.0
        %4169 = vmatpush1.msra.mxu0 0.0
        %4170 = vmatprep.subr.mxu0 0.0
        %4171 = vmatpush1.msra.mxu0 0.0
        %4172 = vmatprep.mubr.f32.mxu0 0.0
        %4173 = vmatmul.mubr.f32.gmra.mrb[0].mxu0 %v4055
        %v4174 = vpop.f32.mrb[0].mxu0
        %v4175 = vadd.f32 0.0, %v4174
        %v4176 = vpop.f32.mrb[0].mxu0
        %4177 = vmatprep.mubr.f32.mxu0 0.0
        %4178 = vmatmul.mubr.f32.gmra.mrb[0].mxu0 %v4056
        %v4179 = vpop.f32.mrb[0].mxu0
        %v4180 = vadd.f32 0.0, %v4179
        %v4181 = vpop.f32.mrb[0].mxu0
        %4182 = vmatprep.mubr.f32.mxu0 0.0
        %4183 = vmatmul.mubr.f32.gmra.mrb[0].mxu0 %v4057
        %v4184 = vpop.f32.mrb[0].mxu0
        %v4185 = vadd.f32 0.0, %v4184
        %v4186 = vpop.f32.mrb[0].mxu0
        %4187 = vmatprep.mubr.f32.mxu0 0.0
        %4188 = vmatmul.mubr.f32.gmra.mrb[0].mxu0 %v4058
        %v4189 = vpop.f32.mrb[0].mxu0
        %v4190 = vadd.f32 0.0, %v4189
        %v4191 = vpop.f32.mrb[0].mxu0
        %4192 = vmatprep.mubr.f32.mxu0 0.0
        %4193 = vmatmul.mubr.f32.gmra.mrb[0].mxu0 %v4059
        %v4194 = vpop.f32.mrb[0].mxu0
        %v4195 = vadd.f32 0.0, %v4194
        %v4196 = vpop.f32.mrb[0].mxu0
        %4197 = vmatprep.mubr.f32.mxu0 0.0
        %4198 = vmatmul.mubr.f32.gmra.mrb[0].mxu0 %v4060
        %v4199 = vpop.f32.mrb[0].mxu0
        %v4200 = vadd.f32 0.0, %v4199
        %v4201 = vpop.f32.mrb[0].mxu0
        %4202 = vmatprep.mubr.f32.mxu0 0.0
        %4203 = vmatmul.mubr.f32.gmra.mrb[0].mxu0 %v4061
        %v4204 = vpop.f32.mrb[0].mxu0
        %v4205 = vadd.f32 0.0, %v4204
        %v4206 = vpop.f32.mrb[0].mxu0
        %4207 = vmatprep.mubr.f32.mxu0 0.0
        %4208 = vmatmul.mubr.f32.gmra.mrb[0].mxu0 %v4062
        %v4209 = vpop.f32.mrb[0].mxu0
        %v4210 = vadd.f32 0.0, %v4209
        %v4211 = vpop.f32.mrb[0].mxu0
        %4212 = vmatprep.mubr.f32.mxu0 0.0
        %4213 = vmatmul.mubr.f32.gmra.mrb[0].mxu0 %v4063
        %v4214 = vpop.f32.mrb[0].mxu0
        %v4215 = vadd.f32 0.0, %v4214
        %v4216 = vpop.f32.mrb[0].mxu0
        %4217 = vmatprep.mubr.f32.mxu0 0.0
        %4218 = vmatmul.mubr.f32.gmra.mrb[0].mxu0 %v4064
        %v4219 = vpop.f32.mrb[0].mxu0
        %v4220 = vadd.f32 0.0, %v4219
        %v4221 = vpop.f32.mrb[0].mxu0
        %4222 = vmatprep.mubr.f32.mxu0 0.0
        %4223 = vmatmul.mubr.f32.gmra.mrb[0].mxu0 %v4065
        %v4224 = vpop.f32.mrb[0].mxu0
        %v4225 = vadd.f32 0.0, %v4224
        %v4226 = vpop.f32.mrb[0].mxu0
        %4227 = vmatprep.mubr.f32.mxu0 0.0
        %4228 = vmatmul.mubr.f32.gmra.mrb[0].mxu0 %v4066
        %v4229 = vpop.f32.mrb[0].mxu0
        %v4230 = vadd.f32 0.0, %v4229
        %v4231 = vpop.f32.mrb[0].mxu0
        %4232 = vmatprep.mubr.f32.mxu0 0.0
        %4233 = vmatmul.mubr.f32.gmra.mrb[0].mxu0 %v4067
        %v4234 = vpop.f32.mrb[0].mxu0
        %v4235 = vadd.f32 0.0, %v4234
        %v4236 = vpop.f32.mrb[0].mxu0
        %4237 = vmatprep.mubr.f32.mxu0 0.0
        %4238 = vmatmul.mubr.f32.gmra.mrb[0].mxu0 %v4068
        %v4239 = vpop.f32.mrb[0].mxu0
        %v4240 = vadd.f32 0.0, %v4239
        %v4241 = vpop.f32.mrb[0].mxu0
        %4242 = vmatprep.mubr.f32.mxu0 0.0
        %4243 = vmatmul.mubr.f32.gmra.mrb[0].mxu0 %v4069
        %v4244 = vpop.f32.mrb[0].mxu0
        %v4245 = vadd.f32 0.0, %v4244
        %v4246 = vpop.f32.mrb[0].mxu0
        %4247 = vmatprep.mubr.f32.mxu0 0.0
        %4248 = vmatmul.mubr.f32.gmra.mrb[0].mxu0 %v4070
        %v4249 = vpop.f32.mrb[0].mxu0
        %v4250 = vadd.f32 0.0, %v4249
        %v4251 = vpop.f32.mrb[0].mxu0
        %4252 = vmatprep.mubr.f32.mxu0 0.0
        %4253 = vmatmul.mubr.f32.gmra.mrb[0].mxu0 %v4071
        %v4254 = vpop.f32.mrb[0].mxu0
        %v4255 = vadd.f32 0.0, %v4254
        %v4256 = vpop.f32.mrb[0].mxu0
        %4257 = vmatprep.mubr.f32.mxu0 0.0
        %4258 = vmatmul.mubr.f32.gmra.mrb[0].mxu0 %v4072
        %v4259 = vpop.f32.mrb[0].mxu0
        %v4260 = vadd.f32 0.0, %v4259
        %v4261 = vpop.f32.mrb[0].mxu0
        %4262 = vmatprep.mubr.f32.mxu0 0.0
        %4263 = vmatmul.mubr.f32.gmra.mrb[0].mxu0 %v4073
        %v4264 = vpop.f32.mrb[0].mxu0
        %v4265 = vadd.f32 0.0, %v4264
        %v4266 = vpop.f32.mrb[0].mxu0
        %4267 = vmatprep.mubr.f32.mxu0 0.0
        %4268 = vmatmul.mubr.f32.gmra.mrb[0].mxu0 %v4074
        %v4269 = vpop.f32.mrb[0].mxu0
        %v4270 = vadd.f32 0.0, %v4269
        %v4271 = vpop.f32.mrb[0].mxu0
        %4272 = vmatprep.mubr.f32.mxu0 0.0
        %4273 = vmatmul.mubr.f32.gmra.mrb[0].mxu0 %v4075
        %v4274 = vpop.f32.mrb[0].mxu0
        %v4275 = vadd.f32 0.0, %v4274
        %v4276 = vpop.f32.mrb[0].mxu0
        %4277 = vmatprep.mubr.f32.mxu0 0.0
        %4278 = vmatmul.mubr.f32.gmra.mrb[0].mxu0 %v4076
        %v4279 = vpop.f32.mrb[0].mxu0
        %v4280 = vadd.f32 0.0, %v4279
        %v4281 = vpop.f32.mrb[0].mxu0
        %4282 = vmatprep.mubr.f32.mxu0 0.0
        %4283 = vmatmul.mubr.f32.gmra.mrb[0].mxu0 %v4077
        %v4284 = vpop.f32.mrb[0].mxu0
        %v4285 = vadd.f32 0.0, %v4284
        %v4286 = vpop.f32.mrb[0].mxu0
        %4287 = vmatprep.mubr.f32.mxu0 0.0
        %4288 = vmatmul.mubr.f32.gmra.mrb[0].mxu0 %v4078
        %v4289 = vpop.f32.mrb[0].mxu0
        %v4290 = vadd.f32 0.0, %v4289
        %v4291 = vpop.f32.mrb[0].mxu0
        %4292 = vmatprep.mubr.f32.mxu0 0.0
        %4293 = vmatmul.mubr.f32.gmra.mrb[0].mxu0 %v4079
        %v4294 = vpop.f32.mrb[0].mxu0
        %v4295 = vadd.f32 0.0, %v4294
        %v4296 = vpop.f32.mrb[0].mxu0
        %4297 = vmatprep.mubr.f32.mxu0 0.0
        %4298 = vmatmul.mubr.f32.gmra.mrb[0].mxu0 %v4080
        %v4299 = vpop.f32.mrb[0].mxu0
        %v4300 = vadd.f32 0.0, %v4299
        %v4301 = vpop.f32.mrb[0].mxu0
        %4302 = vmatprep.mubr.f32.mxu0 0.0
        %4303 = vmatmul.mubr.f32.gmra.mrb[0].mxu0 %v4081
        %v4304 = vpop.f32.mrb[0].mxu0
        %v4305 = vadd.f32 0.0, %v4304
        %v4306 = vpop.f32.mrb[0].mxu0
        %4307 = vmatprep.mubr.f32.mxu0 0.0
        %4308 = vmatmul.mubr.f32.gmra.mrb[0].mxu0 %v4082
        %v4309 = vpop.f32.mrb[0].mxu0
        %v4310 = vadd.f32 0.0, %v4309
        %v4311 = vpop.f32.mrb[0].mxu0
        %4312 = vmatprep.mubr.f32.mxu0 0.0
        %4313 = vmatmul.mubr.f32.gmra.mrb[0].mxu0 %v4083
        %v4314 = vpop.f32.mrb[0].mxu0
        %v4315 = vadd.f32 0.0, %v4314
        %v4316 = vpop.f32.mrb[0].mxu0
        %4317 = vmatprep.mubr.f32.mxu0 0.0
        %4318 = vmatmul.mubr.f32.gmra.mrb[0].mxu0 %v4084
        %v4319 = vpop.f32.mrb[0].mxu0
        %v4320 = vadd.f32 0.0, %v4319
        %v4321 = vpop.f32.mrb[0].mxu0
        %4322 = vmatprep.mubr.f32.mxu0 0.0
        %4323 = vmatmul.mubr.f32.gmra.mrb[0].mxu0 %v4085
        %v4324 = vpop.f32.mrb[0].mxu0
        %v4325 = vadd.f32 0.0, %v4324
        %v4326 = vpop.f32.mrb[0].mxu0
        %4327 = vmatprep.mubr.f32.mxu0 0.0
        %4328 = vmatmul.mubr.f32.gmra.mrb[0].mxu0 %v4086
        %v4329 = vpop.f32.mrb[0].mxu0
        %v4330 = vadd.f32 0.0, %v4329
        %v4331 = vpop.f32.mrb[0].mxu0
        %4332 = vmatprep.mubr.f32.mxu0 0.0
        %4333 = vmatmul.mubr.f32.gmra.mrb[0].mxu0 %v4087
        %v4334 = vpop.f32.mrb[0].mxu0
        %v4335 = vadd.f32 0.0, %v4334
        %v4336 = vpop.f32.mrb[0].mxu0
        %4337 = vmatprep.mubr.f32.mxu0 0.0
        %4338 = vmatmul.mubr.f32.gmra.mrb[0].mxu0 %v4088
        %v4339 = vpop.f32.mrb[0].mxu0
        %v4340 = vadd.f32 0.0, %v4339
        %v4341 = vpop.f32.mrb[0].mxu0
        %4342 = vmatprep.mubr.f32.mxu0 0.0
        %4343 = vmatmul.mubr.f32.gmra.mrb[0].mxu0 %v4089
        %v4344 = vpop.f32.mrb[0].mxu0
        %v4345 = vadd.f32 0.0, %v4344
        %v4346 = vpop.f32.mrb[0].mxu0
        %4347 = vmatprep.mubr.f32.mxu0 0.0
        %4348 = vmatmul.mubr.f32.gmra.mrb[0].mxu0 %v4090
        %v4349 = vpop.f32.mrb[0].mxu0
        %v4350 = vadd.f32 0.0, %v4349
        %v4351 = vpop.f32.mrb[0].mxu0
        %4352 = vdwg.mxu0
        %v4353 = vld [vmem:[%s286] sm:$0xff]
        %v4354 = vld [vmem:[%s286 + $0x8] sm:$0xff]
        %v4355 = vld [vmem:[%s286 + $0x10] sm:$0xff]
        %v4356 = vld [vmem:[%s286 + $0x18] sm:$0xff]
        %v4357 = vld [vmem:[%s286 + $0x20] sm:$0xff]
        %v4358 = vld [vmem:[%s286 + $0x28] sm:$0xff]
        %v4359 = vld [vmem:[%s286 + $0x30] sm:$0xff]
        %v4360 = vld [vmem:[%s286 + $0x38] sm:$0xff]
        %v4361 = vld [vmem:[%s286 + $0x40] sm:$0xff]
        %v4362 = vld [vmem:[%s286 + $0x48] sm:$0xff]
        %v4363 = vld [vmem:[%s286 + $0x50] sm:$0xff]
        %v4364 = vld [vmem:[%s286 + $0x58] sm:$0xff]
        %v4365 = vld [vmem:[%s286 + $0x60] sm:$0xff]
        %v4366 = vld [vmem:[%s286 + $0x68] sm:$0xff]
        %v4367 = vld [vmem:[%s286 + $0x70] sm:$0xff]
        %v4368 = vld [vmem:[%s286 + $0x78] sm:$0xff]
        %v4369 = vld [vmem:[%s286 + $0x80] sm:$0xff]
        %v4370 = vld [vmem:[%s286 + $0x88] sm:$0xff]
        %v4371 = vld [vmem:[%s286 + $0x90] sm:$0xff]
        %v4372 = vld [vmem:[%s286 + $0x98] sm:$0xff]
        %v4373 = vld [vmem:[%s286 + $0xa0] sm:$0xff]
        %v4374 = vld [vmem:[%s286 + $0xa8] sm:$0xff]
        %v4375 = vld [vmem:[%s286 + $0xb0] sm:$0xff]
        %v4376 = vld [vmem:[%s286 + $0xb8] sm:$0xff]
        %v4377 = vld [vmem:[%s286 + $0xc0] sm:$0xff]
        %v4378 = vld [vmem:[%s286 + $0xc8] sm:$0xff]
        %v4379 = vld [vmem:[%s286 + $0xd0] sm:$0xff]
        %v4380 = vld [vmem:[%s286 + $0xd8] sm:$0xff]
        %v4381 = vld [vmem:[%s286 + $0xe0] sm:$0xff]
        %v4382 = vld [vmem:[%s286 + $0xe8] sm:$0xff]
        %v4383 = vld [vmem:[%s286 + $0xf0] sm:$0xff]
        %v4384 = vld [vmem:[%s286 + $0xf8] sm:$0xff]
        %v4385 = vld [vmem:[%s286 + $0x100] sm:$0xff]
        %v4386 = vld [vmem:[%s286 + $0x108] sm:$0xff]
        %v4387 = vld [vmem:[%s286 + $0x110] sm:$0xff]
        %v4388 = vld [vmem:[%s286 + $0x118] sm:$0xff]
        %v4389 = vadd.f32 %v4353, %v4175
        %v4390 = vadd.f32 %v4354, %v4180
        %v4391 = vadd.f32 %v4355, %v4185
        %v4392 = vadd.f32 %v4356, %v4190
        %v4393 = vadd.f32 %v4357, %v4195
        %v4394 = vadd.f32 %v4358, %v4200
        %v4395 = vadd.f32 %v4359, %v4205
        %v4396 = vadd.f32 %v4360, %v4210
        %v4397 = vadd.f32 %v4361, %v4215
        %v4398 = vadd.f32 %v4362, %v4220
        %v4399 = vadd.f32 %v4363, %v4225
        %v4400 = vadd.f32 %v4364, %v4230
        %v4401 = vadd.f32 %v4365, %v4235
        %v4402 = vadd.f32 %v4366, %v4240
        %v4403 = vadd.f32 %v4367, %v4245
        %v4404 = vadd.f32 %v4368, %v4250
        %v4405 = vadd.f32 %v4369, %v4255
        %v4406 = vadd.f32 %v4370, %v4260
        %v4407 = vadd.f32 %v4371, %v4265
        %v4408 = vadd.f32 %v4372, %v4270
        %v4409 = vadd.f32 %v4373, %v4275
        %v4410 = vadd.f32 %v4374, %v4280
        %v4411 = vadd.f32 %v4375, %v4285
        %v4412 = vadd.f32 %v4376, %v4290
        %v4413 = vadd.f32 %v4377, %v4295
        %v4414 = vadd.f32 %v4378, %v4300
        %v4415 = vadd.f32 %v4379, %v4305
        %v4416 = vadd.f32 %v4380, %v4310
        %v4417 = vadd.f32 %v4381, %v4315
        %v4418 = vadd.f32 %v4382, %v4320
        %v4419 = vadd.f32 %v4383, %v4325
        %v4420 = vadd.f32 %v4384, %v4330
        %v4421 = vadd.f32 %v4385, %v4335
        %v4422 = vadd.f32 %v4386, %v4340
        %v4423 = vadd.f32 %v4387, %v4345
        %v4424 = vadd.f32 %v4388, %v4350
        %4425 = vst [vmem:[%s286] sm:$0xff] %v4389
        %4426 = vst [vmem:[%s286 + $0x8] sm:$0xff] %v4390
        %4427 = vst [vmem:[%s286 + $0x10] sm:$0xff] %v4391
        %4428 = vst [vmem:[%s286 + $0x18] sm:$0xff] %v4392
        %4429 = vst [vmem:[%s286 + $0x20] sm:$0xff] %v4393
        %4430 = vst [vmem:[%s286 + $0x28] sm:$0xff] %v4394
        %4431 = vst [vmem:[%s286 + $0x30] sm:$0xff] %v4395
        %4432 = vst [vmem:[%s286 + $0x38] sm:$0xff] %v4396
        %4433 = vst [vmem:[%s286 + $0x40] sm:$0xff] %v4397
        %4434 = vst [vmem:[%s286 + $0x48] sm:$0xff] %v4398
        %4435 = vst [vmem:[%s286 + $0x50] sm:$0xff] %v4399
        %4436 = vst [vmem:[%s286 + $0x58] sm:$0xff] %v4400
        %4437 = vst [vmem:[%s286 + $0x60] sm:$0xff] %v4401
        %4438 = vst [vmem:[%s286 + $0x68] sm:$0xff] %v4402
        %4439 = vst [vmem:[%s286 + $0x70] sm:$0xff] %v4403
        %4440 = vst [vmem:[%s286 + $0x78] sm:$0xff] %v4404
        %4441 = vst [vmem:[%s286 + $0x80] sm:$0xff] %v4405
        %4442 = vst [vmem:[%s286 + $0x88] sm:$0xff] %v4406
        %4443 = vst [vmem:[%s286 + $0x90] sm:$0xff] %v4407
        %4444 = vst [vmem:[%s286 + $0x98] sm:$0xff] %v4408
        %4445 = vst [vmem:[%s286 + $0xa0] sm:$0xff] %v4409
        %4446 = vst [vmem:[%s286 + $0xa8] sm:$0xff] %v4410
        %4447 = vst [vmem:[%s286 + $0xb0] sm:$0xff] %v4411
        %4448 = vst [vmem:[%s286 + $0xb8] sm:$0xff] %v4412
        %4449 = vst [vmem:[%s286 + $0xc0] sm:$0xff] %v4413
        %4450 = vst [vmem:[%s286 + $0xc8] sm:$0xff] %v4414
        %4451 = vst [vmem:[%s286 + $0xd0] sm:$0xff] %v4415
        %4452 = vst [vmem:[%s286 + $0xd8] sm:$0xff] %v4416
        %4453 = vst [vmem:[%s286 + $0xe0] sm:$0xff] %v4417
        %4454 = vst [vmem:[%s286 + $0xe8] sm:$0xff] %v4418
        %4455 = vst [vmem:[%s286 + $0xf0] sm:$0xff] %v4419
        %4456 = vst [vmem:[%s286 + $0xf8] sm:$0xff] %v4420
        %4457 = vst [vmem:[%s286 + $0x100] sm:$0xff] %v4421
        %4458 = vst [vmem:[%s286 + $0x108] sm:$0xff] %v4422
        %4459 = vst [vmem:[%s286 + $0x110] sm:$0xff] %v4423
        %4460 = vst [vmem:[%s286 + $0x118] sm:$0xff] %v4424
        %v4461 = vld [vmem:[#allocation2 + $0x26] sm:$0xff]
        %v4462 = vld [vmem:[#allocation2 + $0x2e] sm:$0xff]
        %v4463 = vld [vmem:[#allocation2 + $0x36] sm:$0xff]
        %v4464 = vld [vmem:[#allocation2 + $0x3e] sm:$0xff]
        %v4465 = vld [vmem:[#allocation2 + $0x46] sm:$0xff]
        %v4466 = vld [vmem:[#allocation2 + $0x4e] sm:$0xff]
        %v4467 = vld [vmem:[#allocation2 + $0x56] sm:$0xff]
        %v4468 = vld [vmem:[#allocation2 + $0x5e] sm:$0xff]
        %v4469 = vld [vmem:[#allocation2 + $0x66] sm:$0xff]
        %v4470 = vld [vmem:[#allocation2 + $0x6e] sm:$0xff]
        %v4471 = vld [vmem:[#allocation2 + $0x76] sm:$0xff]
        %v4472 = vld [vmem:[#allocation2 + $0x7e] sm:$0xff]
        %v4473 = vld [vmem:[#allocation2 + $0x86] sm:$0xff]
        %v4474 = vld [vmem:[#allocation2 + $0x8e] sm:$0xff]
        %v4475 = vld [vmem:[#allocation2 + $0x96] sm:$0xff]
        %v4476 = vld [vmem:[#allocation2 + $0x9e] sm:$0xff]
        %v4477 = vld [vmem:[#allocation2 + $0xa6] sm:$0xff]
        %v4478 = vld [vmem:[#allocation2 + $0xae] sm:$0xff]
        %v4479 = vld [vmem:[#allocation2 + $0xb6] sm:$0xff]
        %v4480 = vld [vmem:[#allocation2 + $0xbe] sm:$0xff]
        %v4481 = vld [vmem:[#allocation2 + $0xc6] sm:$0xff]
        %v4482 = vld [vmem:[#allocation2 + $0xce] sm:$0xff]
        %v4483 = vld [vmem:[#allocation2 + $0xd6] sm:$0xff]
        %v4484 = vld [vmem:[#allocation2 + $0xde] sm:$0xff]
        %v4485 = vld [vmem:[#allocation2 + $0xe6] sm:$0xff]
        %v4486 = vld [vmem:[#allocation2 + $0xee] sm:$0xff]
        %v4487 = vld [vmem:[#allocation2 + $0xf6] sm:$0xff]
        %v4488 = vld [vmem:[#allocation2 + $0xfe] sm:$0xff]
        %v4489 = vld [vmem:[#allocation2 + $0x106] sm:$0xff]
        %v4490 = vld [vmem:[#allocation2 + $0x10e] sm:$0xff]
        %v4491 = vld [vmem:[#allocation2 + $0x116] sm:$0xff]
        %v4492 = vld [vmem:[#allocation2 + $0x11e] sm:$0xff]
        %v4493 = vld [vmem:[#allocation2 + $0x126] sm:$0xff]
        %v4494 = vld [vmem:[#allocation2 + $0x12e] sm:$0xff]
        %v4495 = vld [vmem:[#allocation2 + $0x136] sm:$0xff]
        %v4496 = vld [vmem:[#allocation2 + $0x13e] sm:$0xff]
        %s4497 = scalar_lea.vmem [#allocation3], 1024
        %v4498 = vld [vmem:[%s4497] sm:$0xff]
        %v4499 = vld [vmem:[%s4497 + $0x8] sm:$0xff]
        %v4500 = vld [vmem:[%s4497 + $0x10] sm:$0xff]
        %v4501 = vld [vmem:[%s4497 + $0x18] sm:$0xff]
        %v4502 = vld [vmem:[%s4497 + $0x20] sm:$0xff]
        %v4503 = vld [vmem:[%s4497 + $0x28] sm:$0xff]
        %v4504 = vld [vmem:[%s4497 + $0x30] sm:$0xff]
        %v4505 = vld [vmem:[%s4497 + $0x38] sm:$0xff]
        %v4506 = vld [vmem:[%s4497 + $0x40] sm:$0xff]
        %v4507 = vld [vmem:[%s4497 + $0x48] sm:$0xff]
        %v4508 = vld [vmem:[%s4497 + $0x50] sm:$0xff]
        %v4509 = vld [vmem:[%s4497 + $0x58] sm:$0xff]
        %v4510 = vld [vmem:[%s4497 + $0x60] sm:$0xff]
        %v4511 = vld [vmem:[%s4497 + $0x68] sm:$0xff]
        %v4512 = vld [vmem:[%s4497 + $0x70] sm:$0xff]
        %v4513 = vld [vmem:[%s4497 + $0x78] sm:$0xff]
        %4514 = vmatprep.subr.mxu0 0.0
        %4515 = vmatpush1.msra.mxu0 %v4498
        %4516 = vmatprep.subr.mxu0 0.0
        %4517 = vmatpush1.msra.mxu0 %v4499
        %4518 = vmatprep.subr.mxu0 0.0
        %4519 = vmatpush1.msra.mxu0 %v4500
        %4520 = vmatprep.subr.mxu0 0.0
        %4521 = vmatpush1.msra.mxu0 %v4501
        %4522 = vmatprep.subr.mxu0 0.0
        %4523 = vmatpush1.msra.mxu0 %v4502
        %4524 = vmatprep.subr.mxu0 0.0
        %4525 = vmatpush1.msra.mxu0 %v4503
        %4526 = vmatprep.subr.mxu0 0.0
        %4527 = vmatpush1.msra.mxu0 %v4504
        %4528 = vmatprep.subr.mxu0 0.0
        %4529 = vmatpush1.msra.mxu0 %v4505
        %4530 = vmatprep.subr.mxu0 0.0
        %4531 = vmatpush1.msra.mxu0 %v4506
        %4532 = vmatprep.subr.mxu0 0.0
        %4533 = vmatpush1.msra.mxu0 %v4507
        %4534 = vmatprep.subr.mxu0 0.0
        %4535 = vmatpush1.msra.mxu0 %v4508
        %4536 = vmatprep.subr.mxu0 0.0
        %4537 = vmatpush1.msra.mxu0 %v4509
        %4538 = vmatprep.subr.mxu0 0.0
        %4539 = vmatpush1.msra.mxu0 %v4510
        %4540 = vmatprep.subr.mxu0 0.0
        %4541 = vmatpush1.msra.mxu0 %v4511
        %4542 = vmatprep.subr.mxu0 0.0
        %4543 = vmatpush1.msra.mxu0 %v4512
        %4544 = vmatprep.subr.mxu0 0.0
        %4545 = vmatpush1.msra.mxu0 %v4513
        %4546 = vmatprep.subr.mxu0 0.0
        %4547 = vmatpush1.msra.mxu0 0.0
        %4548 = vmatprep.subr.mxu0 0.0
        %4549 = vmatpush1.msra.mxu0 0.0
        %4550 = vmatprep.subr.mxu0 0.0
        %4551 = vmatpush1.msra.mxu0 0.0
        %4552 = vmatprep.subr.mxu0 0.0
        %4553 = vmatpush1.msra.mxu0 0.0
        %4554 = vmatprep.subr.mxu0 0.0
        %4555 = vmatpush1.msra.mxu0 0.0
        %4556 = vmatprep.subr.mxu0 0.0
        %4557 = vmatpush1.msra.mxu0 0.0
        %4558 = vmatprep.subr.mxu0 0.0
        %4559 = vmatpush1.msra.mxu0 0.0
        %4560 = vmatprep.subr.mxu0 0.0
        %4561 = vmatpush1.msra.mxu0 0.0
        %4562 = vmatprep.subr.mxu0 0.0
        %4563 = vmatpush1.msra.mxu0 0.0
        %4564 = vmatprep.subr.mxu0 0.0
        %4565 = vmatpush1.msra.mxu0 0.0
        %4566 = vmatprep.subr.mxu0 0.0
        %4567 = vmatpush1.msra.mxu0 0.0
        %4568 = vmatprep.subr.mxu0 0.0
        %4569 = vmatpush1.msra.mxu0 0.0
        %4570 = vmatprep.subr.mxu0 0.0
        %4571 = vmatpush1.msra.mxu0 0.0
        %4572 = vmatprep.subr.mxu0 0.0
        %4573 = vmatpush1.msra.mxu0 0.0
        %4574 = vmatprep.subr.mxu0 0.0
        %4575 = vmatpush1.msra.mxu0 0.0
        %4576 = vmatprep.subr.mxu0 0.0
        %4577 = vmatpush1.msra.mxu0 0.0
        %4578 = vmatprep.mubr.f32.mxu0 0.0
        %4579 = vmatmul.mubr.f32.gmra.mrb[0].mxu0 %v4461
        %v4580 = vpop.f32.mrb[0].mxu0
        %v4581 = vadd.f32 0.0, %v4580
        %v4582 = vpop.f32.mrb[0].mxu0
        %4583 = vmatprep.mubr.f32.mxu0 0.0
        %4584 = vmatmul.mubr.f32.gmra.mrb[0].mxu0 %v4462
        %v4585 = vpop.f32.mrb[0].mxu0
        %v4586 = vadd.f32 0.0, %v4585
        %v4587 = vpop.f32.mrb[0].mxu0
        %4588 = vmatprep.mubr.f32.mxu0 0.0
        %4589 = vmatmul.mubr.f32.gmra.mrb[0].mxu0 %v4463
        %v4590 = vpop.f32.mrb[0].mxu0
        %v4591 = vadd.f32 0.0, %v4590
        %v4592 = vpop.f32.mrb[0].mxu0
        %4593 = vmatprep.mubr.f32.mxu0 0.0
        %4594 = vmatmul.mubr.f32.gmra.mrb[0].mxu0 %v4464
        %v4595 = vpop.f32.mrb[0].mxu0
        %v4596 = vadd.f32 0.0, %v4595
        %v4597 = vpop.f32.mrb[0].mxu0
        %4598 = vmatprep.mubr.f32.mxu0 0.0
        %4599 = vmatmul.mubr.f32.gmra.mrb[0].mxu0 %v4465
        %v4600 = vpop.f32.mrb[0].mxu0
        %v4601 = vadd.f32 0.0, %v4600
        %v4602 = vpop.f32.mrb[0].mxu0
        %4603 = vmatprep.mubr.f32.mxu0 0.0
        %4604 = vmatmul.mubr.f32.gmra.mrb[0].mxu0 %v4466
        %v4605 = vpop.f32.mrb[0].mxu0
        %v4606 = vadd.f32 0.0, %v4605
        %v4607 = vpop.f32.mrb[0].mxu0
        %4608 = vmatprep.mubr.f32.mxu0 0.0
        %4609 = vmatmul.mubr.f32.gmra.mrb[0].mxu0 %v4467
        %v4610 = vpop.f32.mrb[0].mxu0
        %v4611 = vadd.f32 0.0, %v4610
        %v4612 = vpop.f32.mrb[0].mxu0
        %4613 = vmatprep.mubr.f32.mxu0 0.0
        %4614 = vmatmul.mubr.f32.gmra.mrb[0].mxu0 %v4468
        %v4615 = vpop.f32.mrb[0].mxu0
        %v4616 = vadd.f32 0.0, %v4615
        %v4617 = vpop.f32.mrb[0].mxu0
        %4618 = vmatprep.mubr.f32.mxu0 0.0
        %4619 = vmatmul.mubr.f32.gmra.mrb[0].mxu0 %v4469
        %v4620 = vpop.f32.mrb[0].mxu0
        %v4621 = vadd.f32 0.0, %v4620
        %v4622 = vpop.f32.mrb[0].mxu0
        %4623 = vmatprep.mubr.f32.mxu0 0.0
        %4624 = vmatmul.mubr.f32.gmra.mrb[0].mxu0 %v4470
        %v4625 = vpop.f32.mrb[0].mxu0
        %v4626 = vadd.f32 0.0, %v4625
        %v4627 = vpop.f32.mrb[0].mxu0
        %4628 = vmatprep.mubr.f32.mxu0 0.0
        %4629 = vmatmul.mubr.f32.gmra.mrb[0].mxu0 %v4471
        %v4630 = vpop.f32.mrb[0].mxu0
        %v4631 = vadd.f32 0.0, %v4630
        %v4632 = vpop.f32.mrb[0].mxu0
        %4633 = vmatprep.mubr.f32.mxu0 0.0
        %4634 = vmatmul.mubr.f32.gmra.mrb[0].mxu0 %v4472
        %v4635 = vpop.f32.mrb[0].mxu0
        %v4636 = vadd.f32 0.0, %v4635
        %v4637 = vpop.f32.mrb[0].mxu0
        %4638 = vmatprep.mubr.f32.mxu0 0.0
        %4639 = vmatmul.mubr.f32.gmra.mrb[0].mxu0 %v4473
        %v4640 = vpop.f32.mrb[0].mxu0
        %v4641 = vadd.f32 0.0, %v4640
        %v4642 = vpop.f32.mrb[0].mxu0
        %4643 = vmatprep.mubr.f32.mxu0 0.0
        %4644 = vmatmul.mubr.f32.gmra.mrb[0].mxu0 %v4474
        %v4645 = vpop.f32.mrb[0].mxu0
        %v4646 = vadd.f32 0.0, %v4645
        %v4647 = vpop.f32.mrb[0].mxu0
        %4648 = vmatprep.mubr.f32.mxu0 0.0
        %4649 = vmatmul.mubr.f32.gmra.mrb[0].mxu0 %v4475
        %v4650 = vpop.f32.mrb[0].mxu0
        %v4651 = vadd.f32 0.0, %v4650
        %v4652 = vpop.f32.mrb[0].mxu0
        %4653 = vmatprep.mubr.f32.mxu0 0.0
        %4654 = vmatmul.mubr.f32.gmra.mrb[0].mxu0 %v4476
        %v4655 = vpop.f32.mrb[0].mxu0
        %v4656 = vadd.f32 0.0, %v4655
        %v4657 = vpop.f32.mrb[0].mxu0
        %4658 = vmatprep.mubr.f32.mxu0 0.0
        %4659 = vmatmul.mubr.f32.gmra.mrb[0].mxu0 %v4477
        %v4660 = vpop.f32.mrb[0].mxu0
        %v4661 = vadd.f32 0.0, %v4660
        %v4662 = vpop.f32.mrb[0].mxu0
        %4663 = vmatprep.mubr.f32.mxu0 0.0
        %4664 = vmatmul.mubr.f32.gmra.mrb[0].mxu0 %v4478
        %v4665 = vpop.f32.mrb[0].mxu0
        %v4666 = vadd.f32 0.0, %v4665
        %v4667 = vpop.f32.mrb[0].mxu0
        %4668 = vmatprep.mubr.f32.mxu0 0.0
        %4669 = vmatmul.mubr.f32.gmra.mrb[0].mxu0 %v4479
        %v4670 = vpop.f32.mrb[0].mxu0
        %v4671 = vadd.f32 0.0, %v4670
        %v4672 = vpop.f32.mrb[0].mxu0
        %4673 = vmatprep.mubr.f32.mxu0 0.0
        %4674 = vmatmul.mubr.f32.gmra.mrb[0].mxu0 %v4480
        %v4675 = vpop.f32.mrb[0].mxu0
        %v4676 = vadd.f32 0.0, %v4675
        %v4677 = vpop.f32.mrb[0].mxu0
        %4678 = vmatprep.mubr.f32.mxu0 0.0
        %4679 = vmatmul.mubr.f32.gmra.mrb[0].mxu0 %v4481
        %v4680 = vpop.f32.mrb[0].mxu0
        %v4681 = vadd.f32 0.0, %v4680
        %v4682 = vpop.f32.mrb[0].mxu0
        %4683 = vmatprep.mubr.f32.mxu0 0.0
        %4684 = vmatmul.mubr.f32.gmra.mrb[0].mxu0 %v4482
        %v4685 = vpop.f32.mrb[0].mxu0
        %v4686 = vadd.f32 0.0, %v4685
        %v4687 = vpop.f32.mrb[0].mxu0
        %4688 = vmatprep.mubr.f32.mxu0 0.0
        %4689 = vmatmul.mubr.f32.gmra.mrb[0].mxu0 %v4483
        %v4690 = vpop.f32.mrb[0].mxu0
        %v4691 = vadd.f32 0.0, %v4690
        %v4692 = vpop.f32.mrb[0].mxu0
        %4693 = vmatprep.mubr.f32.mxu0 0.0
        %4694 = vmatmul.mubr.f32.gmra.mrb[0].mxu0 %v4484
        %v4695 = vpop.f32.mrb[0].mxu0
        %v4696 = vadd.f32 0.0, %v4695
        %v4697 = vpop.f32.mrb[0].mxu0
        %4698 = vmatprep.mubr.f32.mxu0 0.0
        %4699 = vmatmul.mubr.f32.gmra.mrb[0].mxu0 %v4485
        %v4700 = vpop.f32.mrb[0].mxu0
        %v4701 = vadd.f32 0.0, %v4700
        %v4702 = vpop.f32.mrb[0].mxu0
        %4703 = vmatprep.mubr.f32.mxu0 0.0
        %4704 = vmatmul.mubr.f32.gmra.mrb[0].mxu0 %v4486
        %v4705 = vpop.f32.mrb[0].mxu0
        %v4706 = vadd.f32 0.0, %v4705
        %v4707 = vpop.f32.mrb[0].mxu0
        %4708 = vmatprep.mubr.f32.mxu0 0.0
        %4709 = vmatmul.mubr.f32.gmra.mrb[0].mxu0 %v4487
        %v4710 = vpop.f32.mrb[0].mxu0
        %v4711 = vadd.f32 0.0, %v4710
        %v4712 = vpop.f32.mrb[0].mxu0
        %4713 = vmatprep.mubr.f32.mxu0 0.0
        %4714 = vmatmul.mubr.f32.gmra.mrb[0].mxu0 %v4488
        %v4715 = vpop.f32.mrb[0].mxu0
        %v4716 = vadd.f32 0.0, %v4715
        %v4717 = vpop.f32.mrb[0].mxu0
        %4718 = vmatprep.mubr.f32.mxu0 0.0
        %4719 = vmatmul.mubr.f32.gmra.mrb[0].mxu0 %v4489
        %v4720 = vpop.f32.mrb[0].mxu0
        %v4721 = vadd.f32 0.0, %v4720
        %v4722 = vpop.f32.mrb[0].mxu0
        %4723 = vmatprep.mubr.f32.mxu0 0.0
        %4724 = vmatmul.mubr.f32.gmra.mrb[0].mxu0 %v4490
        %v4725 = vpop.f32.mrb[0].mxu0
        %v4726 = vadd.f32 0.0, %v4725
        %v4727 = vpop.f32.mrb[0].mxu0
        %4728 = vmatprep.mubr.f32.mxu0 0.0
        %4729 = vmatmul.mubr.f32.gmra.mrb[0].mxu0 %v4491
        %v4730 = vpop.f32.mrb[0].mxu0
        %v4731 = vadd.f32 0.0, %v4730
        %v4732 = vpop.f32.mrb[0].mxu0
        %4733 = vmatprep.mubr.f32.mxu0 0.0
        %4734 = vmatmul.mubr.f32.gmra.mrb[0].mxu0 %v4492
        %v4735 = vpop.f32.mrb[0].mxu0
        %v4736 = vadd.f32 0.0, %v4735
        %v4737 = vpop.f32.mrb[0].mxu0
        %4738 = vmatprep.mubr.f32.mxu0 0.0
        %4739 = vmatmul.mubr.f32.gmra.mrb[0].mxu0 %v4493
        %v4740 = vpop.f32.mrb[0].mxu0
        %v4741 = vadd.f32 0.0, %v4740
        %v4742 = vpop.f32.mrb[0].mxu0
        %4743 = vmatprep.mubr.f32.mxu0 0.0
        %4744 = vmatmul.mubr.f32.gmra.mrb[0].mxu0 %v4494
        %v4745 = vpop.f32.mrb[0].mxu0
        %v4746 = vadd.f32 0.0, %v4745
        %v4747 = vpop.f32.mrb[0].mxu0
        %4748 = vmatprep.mubr.f32.mxu0 0.0
        %4749 = vmatmul.mubr.f32.gmra.mrb[0].mxu0 %v4495
        %v4750 = vpop.f32.mrb[0].mxu0
        %v4751 = vadd.f32 0.0, %v4750
        %v4752 = vpop.f32.mrb[0].mxu0
        %4753 = vmatprep.mubr.f32.mxu0 0.0
        %4754 = vmatmul.mubr.f32.gmra.mrb[0].mxu0 %v4496
        %v4755 = vpop.f32.mrb[0].mxu0
        %v4756 = vadd.f32 0.0, %v4755
        %v4757 = vpop.f32.mrb[0].mxu0
        %4758 = vdwg.mxu0
        %v4759 = vld [vmem:[%s286] sm:$0xff]
        %v4760 = vld [vmem:[%s286 + $0x8] sm:$0xff]
        %v4761 = vld [vmem:[%s286 + $0x10] sm:$0xff]
        %v4762 = vld [vmem:[%s286 + $0x18] sm:$0xff]
        %v4763 = vld [vmem:[%s286 + $0x20] sm:$0xff]
        %v4764 = vld [vmem:[%s286 + $0x28] sm:$0xff]
        %v4765 = vld [vmem:[%s286 + $0x30] sm:$0xff]
        %v4766 = vld [vmem:[%s286 + $0x38] sm:$0xff]
        %v4767 = vld [vmem:[%s286 + $0x40] sm:$0xff]
        %v4768 = vld [vmem:[%s286 + $0x48] sm:$0xff]
        %v4769 = vld [vmem:[%s286 + $0x50] sm:$0xff]
        %v4770 = vld [vmem:[%s286 + $0x58] sm:$0xff]
        %v4771 = vld [vmem:[%s286 + $0x60] sm:$0xff]
        %v4772 = vld [vmem:[%s286 + $0x68] sm:$0xff]
        %v4773 = vld [vmem:[%s286 + $0x70] sm:$0xff]
        %v4774 = vld [vmem:[%s286 + $0x78] sm:$0xff]
        %v4775 = vld [vmem:[%s286 + $0x80] sm:$0xff]
        %v4776 = vld [vmem:[%s286 + $0x88] sm:$0xff]
        %v4777 = vld [vmem:[%s286 + $0x90] sm:$0xff]
        %v4778 = vld [vmem:[%s286 + $0x98] sm:$0xff]
        %v4779 = vld [vmem:[%s286 + $0xa0] sm:$0xff]
        %v4780 = vld [vmem:[%s286 + $0xa8] sm:$0xff]
        %v4781 = vld [vmem:[%s286 + $0xb0] sm:$0xff]
        %v4782 = vld [vmem:[%s286 + $0xb8] sm:$0xff]
        %v4783 = vld [vmem:[%s286 + $0xc0] sm:$0xff]
        %v4784 = vld [vmem:[%s286 + $0xc8] sm:$0xff]
        %v4785 = vld [vmem:[%s286 + $0xd0] sm:$0xff]
        %v4786 = vld [vmem:[%s286 + $0xd8] sm:$0xff]
        %v4787 = vld [vmem:[%s286 + $0xe0] sm:$0xff]
        %v4788 = vld [vmem:[%s286 + $0xe8] sm:$0xff]
        %v4789 = vld [vmem:[%s286 + $0xf0] sm:$0xff]
        %v4790 = vld [vmem:[%s286 + $0xf8] sm:$0xff]
        %v4791 = vld [vmem:[%s286 + $0x100] sm:$0xff]
        %v4792 = vld [vmem:[%s286 + $0x108] sm:$0xff]
        %v4793 = vld [vmem:[%s286 + $0x110] sm:$0xff]
        %v4794 = vld [vmem:[%s286 + $0x118] sm:$0xff]
        %v4795 = vadd.f32 %v4759, %v4581
        %v4796 = vadd.f32 %v4760, %v4586
        %v4797 = vadd.f32 %v4761, %v4591
        %v4798 = vadd.f32 %v4762, %v4596
        %v4799 = vadd.f32 %v4763, %v4601
        %v4800 = vadd.f32 %v4764, %v4606
        %v4801 = vadd.f32 %v4765, %v4611
        %v4802 = vadd.f32 %v4766, %v4616
        %v4803 = vadd.f32 %v4767, %v4621
        %v4804 = vadd.f32 %v4768, %v4626
        %v4805 = vadd.f32 %v4769, %v4631
        %v4806 = vadd.f32 %v4770, %v4636
        %v4807 = vadd.f32 %v4771, %v4641
        %v4808 = vadd.f32 %v4772, %v4646
        %v4809 = vadd.f32 %v4773, %v4651
        %v4810 = vadd.f32 %v4774, %v4656
        %v4811 = vadd.f32 %v4775, %v4661
        %v4812 = vadd.f32 %v4776, %v4666
        %v4813 = vadd.f32 %v4777, %v4671
        %v4814 = vadd.f32 %v4778, %v4676
        %v4815 = vadd.f32 %v4779, %v4681
        %v4816 = vadd.f32 %v4780, %v4686
        %v4817 = vadd.f32 %v4781, %v4691
        %v4818 = vadd.f32 %v4782, %v4696
        %v4819 = vadd.f32 %v4783, %v4701
        %v4820 = vadd.f32 %v4784, %v4706
        %v4821 = vadd.f32 %v4785, %v4711
        %v4822 = vadd.f32 %v4786, %v4716
        %v4823 = vadd.f32 %v4787, %v4721
        %v4824 = vadd.f32 %v4788, %v4726
        %v4825 = vadd.f32 %v4789, %v4731
        %v4826 = vadd.f32 %v4790, %v4736
        %v4827 = vadd.f32 %v4791, %v4741
        %v4828 = vadd.f32 %v4792, %v4746
        %v4829 = vadd.f32 %v4793, %v4751
        %v4830 = vadd.f32 %v4794, %v4756
        %4831 = vst [vmem:[%s286] sm:$0xff] %v4795
        %4832 = vst [vmem:[%s286 + $0x8] sm:$0xff] %v4796
        %4833 = vst [vmem:[%s286 + $0x10] sm:$0xff] %v4797
        %4834 = vst [vmem:[%s286 + $0x18] sm:$0xff] %v4798
        %4835 = vst [vmem:[%s286 + $0x20] sm:$0xff] %v4799
        %4836 = vst [vmem:[%s286 + $0x28] sm:$0xff] %v4800
        %4837 = vst [vmem:[%s286 + $0x30] sm:$0xff] %v4801
        %4838 = vst [vmem:[%s286 + $0x38] sm:$0xff] %v4802
        %4839 = vst [vmem:[%s286 + $0x40] sm:$0xff] %v4803
        %4840 = vst [vmem:[%s286 + $0x48] sm:$0xff] %v4804
        %4841 = vst [vmem:[%s286 + $0x50] sm:$0xff] %v4805
        %4842 = vst [vmem:[%s286 + $0x58] sm:$0xff] %v4806
        %4843 = vst [vmem:[%s286 + $0x60] sm:$0xff] %v4807
        %4844 = vst [vmem:[%s286 + $0x68] sm:$0xff] %v4808
        %4845 = vst [vmem:[%s286 + $0x70] sm:$0xff] %v4809
        %4846 = vst [vmem:[%s286 + $0x78] sm:$0xff] %v4810
        %4847 = vst [vmem:[%s286 + $0x80] sm:$0xff] %v4811
        %4848 = vst [vmem:[%s286 + $0x88] sm:$0xff] %v4812
        %4849 = vst [vmem:[%s286 + $0x90] sm:$0xff] %v4813
        %4850 = vst [vmem:[%s286 + $0x98] sm:$0xff] %v4814
        %4851 = vst [vmem:[%s286 + $0xa0] sm:$0xff] %v4815
        %4852 = vst [vmem:[%s286 + $0xa8] sm:$0xff] %v4816
        %4853 = vst [vmem:[%s286 + $0xb0] sm:$0xff] %v4817
        %4854 = vst [vmem:[%s286 + $0xb8] sm:$0xff] %v4818
        %4855 = vst [vmem:[%s286 + $0xc0] sm:$0xff] %v4819
        %4856 = vst [vmem:[%s286 + $0xc8] sm:$0xff] %v4820
        %4857 = vst [vmem:[%s286 + $0xd0] sm:$0xff] %v4821
        %4858 = vst [vmem:[%s286 + $0xd8] sm:$0xff] %v4822
        %4859 = vst [vmem:[%s286 + $0xe0] sm:$0xff] %v4823
        %4860 = vst [vmem:[%s286 + $0xe8] sm:$0xff] %v4824
        %4861 = vst [vmem:[%s286 + $0xf0] sm:$0xff] %v4825
        %4862 = vst [vmem:[%s286 + $0xf8] sm:$0xff] %v4826
        %4863 = vst [vmem:[%s286 + $0x100] sm:$0xff] %v4827
        %4864 = vst [vmem:[%s286 + $0x108] sm:$0xff] %v4828
        %4865 = vst [vmem:[%s286 + $0x110] sm:$0xff] %v4829
        %4866 = vst [vmem:[%s286 + $0x118] sm:$0xff] %v4830
        %s4867 = sand.u32 %s182, 1
        %s4868 = scalar_lea.sflag [#allocation5], %s4867
        %s4869 = sand.u32 %s182, 1
        %s4870 = smul.addr %s4869, 288
        %s4871 = scalar_lea.vmem [#allocation6], %s4870
        // Predicated region
        $region53: #{tpu_custom_call.1} parent=47 // pred_check
          %p4872 = pneg %p192
        $region54: #{tpu_custom_call.1} parent=47 // pred_check_branch
          %4874 = sbr.rel (%p4872) target = $region56
        $region55: #{tpu_custom_call.1} parent=47 // pred_region
          %s4876 = ssub.s32 4608, 4608
          %4877 = vsyncadd %s4868, %s4876
          %s4878 = smul.addr %s22, 36
          %s4879 = smul.addr %s4878, 128
          %s4880 = scalar_lea.hbm %s7, %s4879
          %s4881 = sshll.u32 %s4871, 4
          %s4882 = int_to_ptr.vmem [resolvable:$true] %s4881
          %4887 = dma.vmem_to_hbm [thread:$0]  %s4882, 4608, %s4880, %s4868, 128, 128, 8
        $region56: #{tpu_custom_call.1} parent=47 // pred_fallthru
          _
      $region48: #{tpu_custom_call.1} parent=5 // pred_fallthru
        _
      %p4888 = scmp.le.s32.totalorder 2, %s17
      // Predicated region
      $region57: #{tpu_custom_call.1} parent=5 // pred_check
        %p4889 = pneg %p4888
      $region58: #{tpu_custom_call.1} parent=5 // pred_check_branch
        %4891 = sbr.rel (%p4889) target = $region60
      $region59: #{tpu_custom_call.1} parent=5 // pred_region
        %s4892 = ssub.s32 %s17, 2
        // Predicated region
        $region61: #{tpu_custom_call.1} parent=59 // pred_check
          %p4893 = pneg %p198
        $region62: #{tpu_custom_call.1} parent=59 // pred_check_branch
          %4895 = sbr.rel (%p4893) target = $region64
        $region63: #{tpu_custom_call.1} parent=59 // pred_region
          %s4896 = sand.u32 %s183, 1
          %s4897 = scalar_lea.sflag [#allocation5], %s4896
          %s4898 = sand.u32 %s183, 1
          %s4899 = smul.addr %s4898, 288
          %s4900 = scalar_lea.vmem [#allocation6], %s4899
          %4901 = dma.done %s4897, 4608
        $region64: #{tpu_custom_call.1} parent=59 // pred_fallthru
          _
      $region60: #{tpu_custom_call.1} parent=5 // pred_fallthru
        _
    $region6: #{tpu_custom_call.1} parent=1 // loop_footer
      %s21 = sadd.s32 1, %s17
    $region7: #{tpu_custom_call.1} parent=1 // loop_footer_branch
      %16 = sbr.rel target = $region3
    $region8: #{tpu_custom_call.1} parent=1 // loop_exit
      _
    %4902 = vsyncpa [#allocation4], 1
    %s4903 = scalar_lea.sflag [#allocation4], 1
    %4904 = vsyncpa %s4903, 1
    %4905 = vsyncpa [#allocation5], 1
    %s4906 = scalar_lea.sflag [#allocation5], 1
    %4907 = vsyncpa %s4906, 1

</llo_original>
